<compile_context>
chip_gen: v5e
topology: v5e:2x2
jax: 0.10.0
libtpu: 0.0.40
codegen_flags: <defaults>
</compile_context>

<pallas_src>
import functools

import jax
import jax.numpy as jnp
from jax.experimental import pallas as pl
from jax.experimental.pallas import tpu as pltpu

HIDDEN = 4096          # fixed by the module: nn.Linear(in_features, 4096)
NEG_SLOPE = 0.2        # nn.LeakyReLU(0.2)


def _round_up(x, m):
    return (x + m - 1) // m * m


def _vmem_limit_bytes():
    """Per-generation scoped-VMEM limit (v5e/v6e ~96 MiB, v7x ~48 MiB)."""
    try:
        cap = int(pltpu.get_tpu_info().vmem_capacity_bytes)
    except Exception:
        cap = 64 * 1024 * 1024        # safe default: v7x has 64 MiB per TC
    return min((cap * 3) // 4, 100 * 1024 * 1024)


def _footprint(tn, th, to, dp, x_by, w_by, out_by):
    """Estimated per-step VMEM bytes (double-buffered inputs/outputs + scratch)."""
    f = 2 * tn * dp * x_by            # x tile      (compute dtype)
    f += 2 * dp * th * w_by           # W1 tile
    f += 2 * 8 * th * 4               # b1 tile (1,TH) f32, 8-sublane padded
    f += 2 * th * to * w_by           # W2 tile
    f += 2 * 8 * to * 4               # b2 tile
    f += tn * to * 4                  # f32 accumulator scratch
    f += 2 * tn * to * out_by         # output tile
    return f


def _select_tiles(n, dp, op, x_by, w_by, out_by, budget):
    """Pick (TN, TH, TO) so the footprint fits `budget`."""
    # Row tile: as large as possible without >25% padded rows.
    tn = 8
    for cand in (512, 256, 128, 64, 32, 16, 8):
        if _round_up(n, cand) - n <= max(n // 4, 7):
            tn = cand
            break
    # Megacore / 2-TC: try to give a parallel axis at least 2 tiles.
    while tn > 8 and _round_up(n, tn) // tn < 2:
        tn //= 2

    to_cands = []
    for c in (op, 2048, 1024, 512, 256, 128):
        if c <= op and op % c == 0 and c not in to_cands:
            to_cands.append(c)
    th_cands = (4096, 2048, 1024, 512, 256)     # all divide HIDDEN=4096

    # Prefer NJ == 1 (no fc1 recompute), then the largest hidden tile.
    for to in to_cands:
        for th in th_cands:
            if _footprint(tn, th, to, dp, x_by, w_by, out_by) <= budget:
                return tn, th, to
    # Nothing fits: shrink the row tile and take the smallest TO/TH that fit.
    while tn > 8:
        tn //= 2
        for to in reversed(to_cands):
            for th in reversed(th_cands):
                if _footprint(tn, th, to, dp, x_by, w_by, out_by) <= budget:
                    return tn, th, to
    # TODO(synk): for extremely large in_features the fc1 contraction itself
    # would need tiling (in-kernel loop over D_in slices); not implemented.
    return 8, 256, to_cands[-1]


def _semalign_kernel(x_ref, w1_ref, b1_ref, w2_ref, b2_ref, out_ref, acc_ref):
    # Grid: (row tile i, out-col tile j, hidden tile h); h is the fc2 reduction.
    h_idx = pl.program_id(2)

    @pl.when(h_idx == 0)
    def _():
        acc_ref[...] = jnp.zeros_like(acc_ref)

    # fc1 tile: (TN, Dp) @ (Dp, TH) -> (TN, TH). bf16 operands, f32 accumulate.
    h = jnp.dot(x_ref[...], w1_ref[...], preferred_element_type=jnp.float32)
    h = h + b1_ref[...]                        # (1, TH) f32 broadcast add

    # LeakyReLU(0.2)
    h = jnp.where(h > 0, h, NEG_SLOPE * h)

    # TODO(synk): nn.Dropout(0.5) is applied with eval-mode semantics
    # (identity). A training path would draw a mask via pltpu.prng_seed /
    # pltpu.prng_random_bits and scale by 1/(1-p).

    # fc2 partial sum over this hidden tile: (TN, TH) @ (TH, TO) -> (TN, TO).
    acc_ref[...] += jnp.dot(h.astype(w2_ref.dtype), w2_ref[...],
                            preferred_element_type=jnp.float32)

    @pl.when(h_idx == pl.num_programs(2) - 1)
    def _():
        out_ref[...] = (acc_ref[...] + b2_ref[...]).astype(out_ref.dtype)


def prepare_params(w1, b1, w2, b2, compute_dtype=jnp.bfloat16):
    """One-time weight prep: cast to the MXU compute dtype and 128-pad.

    w1: (D_in, 4096), b1: (4096,), w2: (4096, D_out), b2: (D_out,)
    (weights are transposed vs. torch's nn.Linear .weight layout)
    """
    d_in, h = w1.shape
    assert h == HIDDEN and w2.shape[0] == HIDDEN
    d_out = w2.shape[1]
    dp = _round_up(d_in, 128)
    op = _round_up(d_out, 128)

    w1_p = w1.astype(compute_dtype)
    if dp != d_in:
        w1_p = jnp.pad(w1_p, ((0, dp - d_in), (0, 0)))
    w2_p = w2.astype(compute_dtype)
    if op != d_out:
        w2_p = jnp.pad(w2_p, ((0, 0), (0, op - d_out)))
    b1_p = b1.astype(jnp.float32).reshape(1, HIDDEN)
    b2_p = b2.astype(jnp.float32)
    if op != d_out:
        b2_p = jnp.pad(b2_p, (0, op - d_out))
    b2_p = b2_p.reshape(1, op)
    return w1_p, b1_p, w2_p, b2_p


@functools.partial(jax.jit, static_argnames=("d_out",))
def sem_align(x, w1_p, b1_p, w2_p, b2_p, *, d_out):
    """SemAlign forward. x: (N, D_in); params from prepare_params(); -> (N, d_out)."""
    n, d_in = x.shape
    dp, h = w1_p.shape
    op = w2_p.shape[1]
    assert h == HIDDEN and dp % 128 == 0 and op % 128 == 0 and d_in <= dp

    cdt = w1_p.dtype                      # compute dtype (bf16 by default)
    x_by = jnp.dtype(cdt).itemsize
    w_by = jnp.dtype(w2_p.dtype).itemsize
    out_by = jnp.dtype(x.dtype).itemsize

    vmem_limit = _vmem_limit_bytes()
    tn, th, to = _select_tiles(n, dp, op, x_by, w_by, out_by,
                               budget=int(vmem_limit * 0.8))
    np_ = _round_up(n, tn)

    x_c = x.astype(cdt)
    if np_ != n or dp != d_in:
        x_c = jnp.pad(x_c, ((0, np_ - n), (0, dp - d_in)))

    grid = (np_ // tn, op // to, HIDDEN // th)

    out = pl.pallas_call(
        _semalign_kernel,
        out_shape=jax.ShapeDtypeStruct((np_, op), x.dtype),
        grid_spec=pltpu.PrefetchScalarGridSpec(
            num_scalar_prefetch=0,
            grid=grid,
            in_specs=[
                pl.BlockSpec((tn, dp), lambda i, j, h: (i, 0)),   # x rows
                pl.BlockSpec((dp, th), lambda i, j, h: (0, h)),   # W1 hidden tile
                pl.BlockSpec((1, th), lambda i, j, h: (0, h)),    # b1 hidden tile
                pl.BlockSpec((th, to), lambda i, j, h: (h, j)),   # W2 tile
                pl.BlockSpec((1, to), lambda i, j, h: (0, j)),    # b2 tile
            ],
            out_specs=pl.BlockSpec((tn, to), lambda i, j, h: (i, j)),
            scratch_shapes=[pltpu.VMEM((tn, to), jnp.float32)],
        ),
        compiler_params=pltpu.CompilerParams(
            dimension_semantics=("parallel", "parallel", "arbitrary"),
            vmem_limit_bytes=vmem_limit,
        ),
    )(x_c, w1_p, b1_p, w2_p, b2_p)

    return out[:n, :d_out]


def _reference(x, w1, b1, w2, b2):
    h = x @ w1 + b1
    h = jnp.where(h > 0, h, NEG_SLOPE * h)
    return h @ w2 + b2


if __name__ == "__main__":
    key = jax.random.PRNGKey(0)
    kx, kw1, kw2, kb1, kb2 = jax.random.split(key, 5)

    # Small demo shapes consistent with the module (hidden is fixed at 4096).
    N, D_in, D_out = 8, 32, 32

    x = jax.random.normal(kx, (N, D_in), dtype=jnp.float32)
    w1 = jax.random.normal(kw1, (D_in, HIDDEN), dtype=jnp.float32) / jnp.sqrt(
        jnp.float32(D_in))
    b1 = jax.random.normal(kb1, (HIDDEN,), dtype=jnp.float32) * 0.01
    w2 = jax.random.normal(kw2, (HIDDEN, D_out), dtype=jnp.float32) / jnp.sqrt(
        jnp.float32(HIDDEN))
    b2 = jax.random.normal(kb2, (D_out,), dtype=jnp.float32) * 0.01

    w1_p, b1_p, w2_p, b2_p = prepare_params(w1, b1, w2, b2)   # one-time prep

    out = sem_align(x, w1_p, b1_p, w2_p, b2_p, d_out=D_out)
    out = jax.block_until_ready(out)

    ref = _reference(x, w1, b1, w2, b2)
    assert out.shape == (N, D_out)
    # bf16 operands / f32 accumulation vs. the f32 reference: loose tolerance.
    assert jnp.allclose(out, ref, atol=5e-2, rtol=5e-2), (
        f"output mismatch, max abs err {jnp.max(jnp.abs(out - ref))}")

    print("KERNEL_OK")
</pallas_src>

<mosaic_0001>
module attributes {stable_mosaic.version = 11 : i64} {
  func.func @_semalign_kernel(%arg0: i32, %arg1: i32, %arg2: i32, %arg3: memref<8x128xbf16, #tpu.memory_space<vmem>>, %arg4: memref<128x4096xbf16, #tpu.memory_space<vmem>>, %arg5: memref<1x4096xf32, #tpu.memory_space<vmem>>, %arg6: memref<4096x128xbf16, #tpu.memory_space<vmem>>, %arg7: memref<1x128xf32, #tpu.memory_space<vmem>>, %arg8: memref<8x128xf32, #tpu.memory_space<vmem>>, %arg9: memref<8x128xf32, #tpu.memory_space<vmem>>) attributes {dimension_semantics = [#tpu.dimension_semantics<parallel>, #tpu.dimension_semantics<parallel>, #tpu.dimension_semantics<arbitrary>], iteration_bounds = array<i64: 1, 1, 1>, scalar_prefetch = 0 : i64, scratch_operands = 1 : i64, tpu.core_type = #tpu.core_type<tc>, window_params = [{transform_indices = @transform_0, window_bounds = array<i64: 8, 128>}, {transform_indices = @transform_1, window_bounds = array<i64: 128, 4096>}, {transform_indices = @transform_2, window_bounds = array<i64: 1, 4096>}, {transform_indices = @transform_3, window_bounds = array<i64: 4096, 128>}, {transform_indices = @transform_4, window_bounds = array<i64: 1, 128>}, {transform_indices = @transform_5, window_bounds = array<i64: 8, 128>}]} {
    %c0_i32 = arith.constant 0 : i32
    %0 = arith.cmpi eq, %arg2, %c0_i32 : i32
    %1 = arith.extui %0 : i1 to i32
    %c0_i32_0 = arith.constant 0 : i32
    %2 = arith.cmpi ne, %1, %c0_i32_0 : i32
    scf.if %2 {
      %cst_17 = arith.constant 0.000000e+00 : f32
      %23 = vector.broadcast %cst_17 : f32 to vector<8x128xf32>
      %c0_18 = arith.constant 0 : index
      %c0_19 = arith.constant 0 : index
      %24 = vector.load %arg9[%c0_18, %c0_19] : memref<8x128xf32, #tpu.memory_space<vmem>>, vector<8x128xf32>
      tpu.vector_store %arg9[%c0_18, %c0_19], %23 {strides = array<i32>} : memref<8x128xf32, #tpu.memory_space<vmem>>, vector<8x128xf32>,
    } else {
    }
    %c0 = arith.constant 0 : index
    %c0_1 = arith.constant 0 : index
    %3 = vector.load %arg3[%c0, %c0_1] : memref<8x128xbf16, #tpu.memory_space<vmem>>, vector<8x128xbf16>
    %c0_2 = arith.constant 0 : index
    %c0_3 = arith.constant 0 : index
    %4 = vector.load %arg4[%c0_2, %c0_3] : memref<128x4096xbf16, #tpu.memory_space<vmem>>, vector<128x4096xbf16>
    %cst = arith.constant dense<0.000000e+00> : vector<8x4096xf32>
    %5 = tpu.matmul %3, %4, %cst {dimension_numbers = #tpu.dot_dimension_numbers<[1], [0], [0], [1], [0, 0, 1, 1], [], []>} : vector<8x128xbf16>, vector<128x4096xbf16>, vector<8x4096xf32> -> vector<8x4096xf32>
    %c0_4 = arith.constant 0 : index
    %c0_5 = arith.constant 0 : index
    %6 = vector.load %arg5[%c0_4, %c0_5] : memref<1x4096xf32, #tpu.memory_space<vmem>>, vector<1x4096xf32>
    %7 = vector.broadcast %6 : vector<1x4096xf32> to vector<8x4096xf32>
    %8 = arith.addf %5, %7 : vector<8x4096xf32>
    %cst_6 = arith.constant 0.000000e+00 : f32
    %9 = vector.broadcast %cst_6 : f32 to vector<8x4096xf32>
    %10 = arith.cmpf ogt, %8, %9 : vector<8x4096xf32>
    %cst_7 = arith.constant 2.000000e-01 : f32
    %11 = vector.broadcast %cst_7 : f32 to vector<8x4096xf32>
    %12 = arith.mulf %11, %8 : vector<8x4096xf32>
    %13 = arith.select %10, %8, %12 : vector<8x4096xi1>, vector<8x4096xf32>
    %c0_8 = arith.constant 0 : index
    %c0_9 = arith.constant 0 : index
    %14 = vector.load %arg9[%c0_8, %c0_9] : memref<8x128xf32, #tpu.memory_space<vmem>>, vector<8x128xf32>
    %15 = arith.truncf %13 : vector<8x4096xf32> to vector<8x4096xbf16>
    %c0_10 = arith.constant 0 : index
    %c0_11 = arith.constant 0 : index
    %16 = vector.load %arg6[%c0_10, %c0_11] : memref<4096x128xbf16, #tpu.memory_space<vmem>>, vector<4096x128xbf16>
    %cst_12 = arith.constant dense<0.000000e+00> : vector<8x128xf32>
    %17 = tpu.matmul %15, %16, %cst_12 {dimension_numbers = #tpu.dot_dimension_numbers<[1], [0], [0], [1], [0, 0, 1, 1], [], []>} : vector<8x4096xbf16>, vector<4096x128xbf16>, vector<8x128xf32> -> vector<8x128xf32>
    %18 = arith.addf %14, %17 : vector<8x128xf32>
    %c0_13 = arith.constant 0 : index
    %c0_14 = arith.constant 0 : index
    %19 = vector.load %arg9[%c0_13, %c0_14] : memref<8x128xf32, #tpu.memory_space<vmem>>, vector<8x128xf32>
    tpu.vector_store %arg9[%c0_13, %c0_14], %18 {strides = array<i32>} : memref<8x128xf32, #tpu.memory_space<vmem>>, vector<8x128xf32>,
    %c0_i32_15 = arith.constant 0 : i32
    %20 = arith.cmpi eq, %arg2, %c0_i32_15 : i32
    %21 = arith.extui %20 : i1 to i32
    %c0_i32_16 = arith.constant 0 : i32
    %22 = arith.cmpi ne, %21, %c0_i32_16 : i32
    scf.if %22 {
      %c0_17 = arith.constant 0 : index
      %c0_18 = arith.constant 0 : index
      %23 = vector.load %arg9[%c0_17, %c0_18] : memref<8x128xf32, #tpu.memory_space<vmem>>, vector<8x128xf32>
      %c0_19 = arith.constant 0 : index
      %c0_20 = arith.constant 0 : index
      %24 = vector.load %arg7[%c0_19, %c0_20] : memref<1x128xf32, #tpu.memory_space<vmem>>, vector<1x128xf32>
      %25 = vector.broadcast %24 : vector<1x128xf32> to vector<8x128xf32>
      %26 = arith.addf %23, %25 : vector<8x128xf32>
      %c0_21 = arith.constant 0 : index
      %c0_22 = arith.constant 0 : index
      %27 = vector.load %arg8[%c0_21, %c0_22] : memref<8x128xf32, #tpu.memory_space<vmem>>, vector<8x128xf32>
      tpu.vector_store %arg8[%c0_21, %c0_22], %26 {strides = array<i32>} : memref<8x128xf32, #tpu.memory_space<vmem>>, vector<8x128xf32>,
    } else {
    }
    return
  }
  func.func @transform_0(%arg0: i32, %arg1: i32, %arg2: i32) -> (i32, i32) {
    %c0_i32 = arith.constant 0 : i32
    %c0_i32_0 = arith.constant 0 : i32
    return %arg0, %c0_i32 : i32, i32
  }
  func.func @transform_1(%arg0: i32, %arg1: i32, %arg2: i32) -> (i32, i32) {
    %c0_i32 = arith.constant 0 : i32
    %c0_i32_0 = arith.constant 0 : i32
    return %c0_i32, %arg2 : i32, i32
  }
  func.func @transform_2(%arg0: i32, %arg1: i32, %arg2: i32) -> (i32, i32) {
    %c0_i32 = arith.constant 0 : i32
    %c0_i32_0 = arith.constant 0 : i32
    return %c0_i32, %arg2 : i32, i32
  }
  func.func @transform_3(%arg0: i32, %arg1: i32, %arg2: i32) -> (i32, i32) {
    %c0_i32 = arith.constant 0 : i32
    return %arg2, %arg1 : i32, i32
  }
  func.func @transform_4(%arg0: i32, %arg1: i32, %arg2: i32) -> (i32, i32) {
    %c0_i32 = arith.constant 0 : i32
    %c0_i32_0 = arith.constant 0 : i32
    return %c0_i32, %arg1 : i32, i32
  }
  func.func @transform_5(%arg0: i32, %arg1: i32, %arg2: i32) -> (i32, i32) {
    %c0_i32 = arith.constant 0 : i32
    return %arg0, %arg1 : i32, i32
  }
}

</mosaic_0001>

<llo_original>
// kernel: sem_align.1
$region0: #{sem_align.1}
  #allocation0 [shape = 'u32[]', space=smem, size = 0x4, offset = 0x4, fixed_abs, tag = 'smem constant byte address 0x4 - core index']
  #allocation1 [shape = 'u32[72,128]{1,0:T(1,128)}', space=vmem, size = 0x9000, scoped, tag = 'internal scratch']
  #allocation2 [shape = 'f32[8,128]{1,0:T(8,128)}', space=vmem, size = 0x1000, scoped, tag = 'scratch operand']
  %s0 = inlined_call_operand.vmem [shape: bf16[8,128], index: 0, kind: input, shape index: {}]
  %s1 = inlined_call_operand.hbm [shape: bf16[128,4096], index: 1, kind: input, shape index: {}]
  %s2 = inlined_call_operand.hbm [shape: f32[1,4096], index: 2, kind: input, shape index: {}]
  %s3 = inlined_call_operand.hbm [shape: bf16[4096,128], index: 3, kind: input, shape index: {}]
  %s4 = inlined_call_operand.vmem [shape: f32[1,128], index: 4, kind: input, shape index: {}]
  %s5 = inlined_call_operand.hbm [shape: f32[8,128], index: 5, kind: output, shape index: {}]
  %s6 = sld [smem:[#allocation0]]
  $region50: #{sem_align.1} parent=0
    _
  %s8 = ssub.s32 1, %s6
  %s9 = scalar_select 0, %s8, %s6
  $region1: #{sem_align.1} parent=0
    #allocation3 [shape = 'u8[1048576]{0}', space=vmem, size = 0x100000, scoped, tag = 'input window, operand 1, single buffered']
    #allocation4 [shape = 's32[1]{0}', space=sflag, size = 0x4, scoped, tag = 'scoped memory for sem_align.1']
    #allocation5 [shape = 's32[1]{0}', space=sflag, size = 0x4, scoped, tag = 'scoped memory for sem_align.1']
    #allocation6 [shape = 'u8[16384]{0}', space=vmem, size = 0x4000, scoped, tag = 'input window, operand 2, single buffered']
    #allocation7 [shape = 's32[1]{0}', space=sflag, size = 0x4, scoped, tag = 'scoped memory for sem_align.1']
    #allocation8 [shape = 'u8[1048576]{0}', space=vmem, size = 0x100000, scoped, tag = 'input window, operand 3, single buffered']
    #allocation9 [shape = 'u8[4096]{0}', space=vmem, size = 0x1000, scoped, tag = 'output window, operand 0, single buffered']
    %10 = vsyncpa [#allocation4], 0
    %11 = vsyncpa [#allocation7], 0
    %12 = vsyncpa [#allocation5], 0
    // Predicated region
    $region2: #{sem_align.1} parent=1 // pred_check
      _
    $region3: #{sem_align.1} parent=1 // pred_check_branch
      %14 = sbr.rel (0) target = $region5
    $region4: #{sem_align.1} parent=1 // pred_region
      _
    $region5: #{sem_align.1} parent=1 // pred_fallthru
      _
    // Predicated region
    $region6: #{sem_align.1} parent=1 // pred_check
      _
    $region7: #{sem_align.1} parent=1 // pred_check_branch
      %16 = sbr.rel (0) target = $region9
    $region8: #{sem_align.1} parent=1 // pred_region
      %18 = vsyncadd [#allocation4], 0
      %s19 = sshll.u32 %s1, 4
      %s20 = int_to_ptr.hbm [resolvable:$true] %s19
      %s21 = sshll.u32 [#allocation3], 4
      %s22 = int_to_ptr.vmem [resolvable:$true] %s21
      %27 = dma.hbm_to_vmem [thread:$0]  %s20, 32768, %s22, [#allocation4], 2048, 2048, 128
    $region9: #{sem_align.1} parent=1 // pred_fallthru
      _
    // Predicated region
    $region10: #{sem_align.1} parent=1 // pred_check
      _
    $region11: #{sem_align.1} parent=1 // pred_check_branch
      %29 = sbr.rel (0) target = $region13
    $region12: #{sem_align.1} parent=1 // pred_region
      %31 = vsyncadd [#allocation7], 0
      %s33 = sshll.u32 %s2, 4
      %s34 = int_to_ptr.hbm [resolvable:$true] %s33
      %s35 = sshll.u32 [#allocation6], 4
      %s36 = int_to_ptr.vmem [resolvable:$true] %s35
      %38 = dma.hbm_to_vmem [thread:$0]  %s34, 512, %s36, [#allocation7]
    $region13: #{sem_align.1} parent=1 // pred_fallthru
      _
    // Predicated region
    $region14: #{sem_align.1} parent=1 // pred_check
      _
    $region15: #{sem_align.1} parent=1 // pred_check_branch
      %40 = sbr.rel (0) target = $region17
    $region16: #{sem_align.1} parent=1 // pred_region
      %42 = vsyncadd [#allocation7], 0
      %s43 = sshll.u32 %s3, 4
      %s44 = int_to_ptr.hbm [resolvable:$true] %s43
      %s45 = sshll.u32 [#allocation8], 4
      %s46 = int_to_ptr.vmem [resolvable:$true] %s45
      %51 = dma.hbm_to_vmem [thread:$0]  %s44, 32768, %s46, [#allocation7], 64, 64, 4
    $region17: #{sem_align.1} parent=1 // pred_fallthru
      _
    // Predicated region
    $region18: #{sem_align.1} parent=1 // pred_check
      _
    $region19: #{sem_align.1} parent=1 // pred_check_branch
      %53 = sbr.rel (0) target = $region21
    $region20: #{sem_align.1} parent=1 // pred_region
      _
    $region21: #{sem_align.1} parent=1 // pred_fallthru
      _
    // Predicated region
    $region22: #{sem_align.1} parent=1 // pred_check
      _
    $region23: #{sem_align.1} parent=1 // pred_check_branch
      %55 = sbr.rel (0) target = $region25
    $region24: #{sem_align.1} parent=1 // pred_region
      %57 = dma.done [#allocation4], 32768
    $region25: #{sem_align.1} parent=1 // pred_fallthru
      _
    // Predicated region
    $region26: #{sem_align.1} parent=1 // pred_check
      _
    $region27: #{sem_align.1} parent=1 // pred_check_branch
      %59 = sbr.rel (0) target = $region29
    $region28: #{sem_align.1} parent=1 // pred_region
      %61 = dma.done [#allocation7], 512
    $region29: #{sem_align.1} parent=1 // pred_fallthru
      _
    // Predicated region
    $region30: #{sem_align.1} parent=1 // pred_check
      _
    $region31: #{sem_align.1} parent=1 // pred_check_branch
      %63 = sbr.rel (0) target = $region33
    $region32: #{sem_align.1} parent=1 // pred_region
      %65 = dma.done [#allocation7], 32768
    $region33: #{sem_align.1} parent=1 // pred_fallthru
      _
    %p66 = scmp.eq.s32.totalorder 0, 0
    // Predicated region
    $region34: #{sem_align.1} parent=1 // pred_check
      %p67 = pneg %p66
    $region35: #{sem_align.1} parent=1 // pred_check_branch
      %69 = sbr.rel (%p67) target = $region37
    $region36: #{sem_align.1} parent=1 // pred_region
      %70 = vst [vmem:[#allocation2] sm:$0xff] 0.0
    $region37: #{sem_align.1} parent=1 // pred_fallthru
      _
    %v71 = vld [vmem:[%s0] sm:$0xf]
    %v72 = vld [vmem:[#allocation3] sm:$0xff]
    %v73 = vld [vmem:[#allocation3 + $0x8] sm:$0xff]
    %v74 = vld [vmem:[#allocation3 + $0x10] sm:$0xff]
    %v75 = vld [vmem:[#allocation3 + $0x18] sm:$0xff]
    %v76 = vld [vmem:[#allocation3 + $0x20] sm:$0xff]
    %v77 = vld [vmem:[#allocation3 + $0x28] sm:$0xff]
    %v78 = vld [vmem:[#allocation3 + $0x30] sm:$0xff]
    %v79 = vld [vmem:[#allocation3 + $0x38] sm:$0xff]
    %v80 = vld [vmem:[#allocation3 + $0x40] sm:$0xff]
    %v81 = vld [vmem:[#allocation3 + $0x48] sm:$0xff]
    %v82 = vld [vmem:[#allocation3 + $0x50] sm:$0xff]
    %v83 = vld [vmem:[#allocation3 + $0x58] sm:$0xff]
    %v84 = vld [vmem:[#allocation3 + $0x60] sm:$0xff]
    %v85 = vld [vmem:[#allocation3 + $0x68] sm:$0xff]
    %v86 = vld [vmem:[#allocation3 + $0x70] sm:$0xff]
    %v87 = vld [vmem:[#allocation3 + $0x78] sm:$0xff]
    %v88 = vld [vmem:[#allocation3 + $0x80] sm:$0xff]
    %v89 = vld [vmem:[#allocation3 + $0x88] sm:$0xff]
    %v90 = vld [vmem:[#allocation3 + $0x90] sm:$0xff]
    %v91 = vld [vmem:[#allocation3 + $0x98] sm:$0xff]
    %v92 = vld [vmem:[#allocation3 + $0xa0] sm:$0xff]
    %v93 = vld [vmem:[#allocation3 + $0xa8] sm:$0xff]
    %v94 = vld [vmem:[#allocation3 + $0xb0] sm:$0xff]
    %v95 = vld [vmem:[#allocation3 + $0xb8] sm:$0xff]
    %v96 = vld [vmem:[#allocation3 + $0xc0] sm:$0xff]
    %v97 = vld [vmem:[#allocation3 + $0xc8] sm:$0xff]
    %v98 = vld [vmem:[#allocation3 + $0xd0] sm:$0xff]
    %v99 = vld [vmem:[#allocation3 + $0xd8] sm:$0xff]
    %v100 = vld [vmem:[#allocation3 + $0xe0] sm:$0xff]
    %v101 = vld [vmem:[#allocation3 + $0xe8] sm:$0xff]
    %v102 = vld [vmem:[#allocation3 + $0xf0] sm:$0xff]
    %v103 = vld [vmem:[#allocation3 + $0xf8] sm:$0xff]
    %v104 = vld [vmem:[#allocation3 + $0x100] sm:$0xff]
    %v105 = vld [vmem:[#allocation3 + $0x108] sm:$0xff]
    %v106 = vld [vmem:[#allocation3 + $0x110] sm:$0xff]
    %v107 = vld [vmem:[#allocation3 + $0x118] sm:$0xff]
    %v108 = vld [vmem:[#allocation3 + $0x120] sm:$0xff]
    %v109 = vld [vmem:[#allocation3 + $0x128] sm:$0xff]
    %v110 = vld [vmem:[#allocation3 + $0x130] sm:$0xff]
    %v111 = vld [vmem:[#allocation3 + $0x138] sm:$0xff]
    %v112 = vld [vmem:[#allocation3 + $0x140] sm:$0xff]
    %v113 = vld [vmem:[#allocation3 + $0x148] sm:$0xff]
    %v114 = vld [vmem:[#allocation3 + $0x150] sm:$0xff]
    %v115 = vld [vmem:[#allocation3 + $0x158] sm:$0xff]
    %v116 = vld [vmem:[#allocation3 + $0x160] sm:$0xff]
    %v117 = vld [vmem:[#allocation3 + $0x168] sm:$0xff]
    %v118 = vld [vmem:[#allocation3 + $0x170] sm:$0xff]
    %v119 = vld [vmem:[#allocation3 + $0x178] sm:$0xff]
    %v120 = vld [vmem:[#allocation3 + $0x180] sm:$0xff]
    %v121 = vld [vmem:[#allocation3 + $0x188] sm:$0xff]
    %v122 = vld [vmem:[#allocation3 + $0x190] sm:$0xff]
    %v123 = vld [vmem:[#allocation3 + $0x198] sm:$0xff]
    %v124 = vld [vmem:[#allocation3 + $0x1a0] sm:$0xff]
    %v125 = vld [vmem:[#allocation3 + $0x1a8] sm:$0xff]
    %v126 = vld [vmem:[#allocation3 + $0x1b0] sm:$0xff]
    %v127 = vld [vmem:[#allocation3 + $0x1b8] sm:$0xff]
    %v128 = vld [vmem:[#allocation3 + $0x1c0] sm:$0xff]
    %v129 = vld [vmem:[#allocation3 + $0x1c8] sm:$0xff]
    %v130 = vld [vmem:[#allocation3 + $0x1d0] sm:$0xff]
    %v131 = vld [vmem:[#allocation3 + $0x1d8] sm:$0xff]
    %v132 = vld [vmem:[#allocation3 + $0x1e0] sm:$0xff]
    %v133 = vld [vmem:[#allocation3 + $0x1e8] sm:$0xff]
    %v134 = vld [vmem:[#allocation3 + $0x1f0] sm:$0xff]
    %v135 = vld [vmem:[#allocation3 + $0x1f8] sm:$0xff]
    %v136 = vld [vmem:[#allocation3 + $0x200] sm:$0xff]
    %v137 = vld [vmem:[#allocation3 + $0x208] sm:$0xff]
    %v138 = vld [vmem:[#allocation3 + $0x210] sm:$0xff]
    %v139 = vld [vmem:[#allocation3 + $0x218] sm:$0xff]
    %v140 = vld [vmem:[#allocation3 + $0x220] sm:$0xff]
    %v141 = vld [vmem:[#allocation3 + $0x228] sm:$0xff]
    %v142 = vld [vmem:[#allocation3 + $0x230] sm:$0xff]
    %v143 = vld [vmem:[#allocation3 + $0x238] sm:$0xff]
    %v144 = vld [vmem:[#allocation3 + $0x240] sm:$0xff]
    %v145 = vld [vmem:[#allocation3 + $0x248] sm:$0xff]
    %v146 = vld [vmem:[#allocation3 + $0x250] sm:$0xff]
    %v147 = vld [vmem:[#allocation3 + $0x258] sm:$0xff]
    %v148 = vld [vmem:[#allocation3 + $0x260] sm:$0xff]
    %v149 = vld [vmem:[#allocation3 + $0x268] sm:$0xff]
    %v150 = vld [vmem:[#allocation3 + $0x270] sm:$0xff]
    %v151 = vld [vmem:[#allocation3 + $0x278] sm:$0xff]
    %v152 = vld [vmem:[#allocation3 + $0x280] sm:$0xff]
    %v153 = vld [vmem:[#allocation3 + $0x288] sm:$0xff]
    %v154 = vld [vmem:[#allocation3 + $0x290] sm:$0xff]
    %v155 = vld [vmem:[#allocation3 + $0x298] sm:$0xff]
    %v156 = vld [vmem:[#allocation3 + $0x2a0] sm:$0xff]
    %v157 = vld [vmem:[#allocation3 + $0x2a8] sm:$0xff]
    %v158 = vld [vmem:[#allocation3 + $0x2b0] sm:$0xff]
    %v159 = vld [vmem:[#allocation3 + $0x2b8] sm:$0xff]
    %v160 = vld [vmem:[#allocation3 + $0x2c0] sm:$0xff]
    %v161 = vld [vmem:[#allocation3 + $0x2c8] sm:$0xff]
    %v162 = vld [vmem:[#allocation3 + $0x2d0] sm:$0xff]
    %v163 = vld [vmem:[#allocation3 + $0x2d8] sm:$0xff]
    %v164 = vld [vmem:[#allocation3 + $0x2e0] sm:$0xff]
    %v165 = vld [vmem:[#allocation3 + $0x2e8] sm:$0xff]
    %v166 = vld [vmem:[#allocation3 + $0x2f0] sm:$0xff]
    %v167 = vld [vmem:[#allocation3 + $0x2f8] sm:$0xff]
    %v168 = vld [vmem:[#allocation3 + $0x300] sm:$0xff]
    %v169 = vld [vmem:[#allocation3 + $0x308] sm:$0xff]
    %v170 = vld [vmem:[#allocation3 + $0x310] sm:$0xff]
    %v171 = vld [vmem:[#allocation3 + $0x318] sm:$0xff]
    %v172 = vld [vmem:[#allocation3 + $0x320] sm:$0xff]
    %v173 = vld [vmem:[#allocation3 + $0x328] sm:$0xff]
    %v174 = vld [vmem:[#allocation3 + $0x330] sm:$0xff]
    %v175 = vld [vmem:[#allocation3 + $0x338] sm:$0xff]
    %v176 = vld [vmem:[#allocation3 + $0x340] sm:$0xff]
    %v177 = vld [vmem:[#allocation3 + $0x348] sm:$0xff]
    %v178 = vld [vmem:[#allocation3 + $0x350] sm:$0xff]
    %v179 = vld [vmem:[#allocation3 + $0x358] sm:$0xff]
    %v180 = vld [vmem:[#allocation3 + $0x360] sm:$0xff]
    %v181 = vld [vmem:[#allocation3 + $0x368] sm:$0xff]
    %v182 = vld [vmem:[#allocation3 + $0x370] sm:$0xff]
    %v183 = vld [vmem:[#allocation3 + $0x378] sm:$0xff]
    %v184 = vld [vmem:[#allocation3 + $0x380] sm:$0xff]
    %v185 = vld [vmem:[#allocation3 + $0x388] sm:$0xff]
    %v186 = vld [vmem:[#allocation3 + $0x390] sm:$0xff]
    %v187 = vld [vmem:[#allocation3 + $0x398] sm:$0xff]
    %v188 = vld [vmem:[#allocation3 + $0x3a0] sm:$0xff]
    %v189 = vld [vmem:[#allocation3 + $0x3a8] sm:$0xff]
    %v190 = vld [vmem:[#allocation3 + $0x3b0] sm:$0xff]
    %v191 = vld [vmem:[#allocation3 + $0x3b8] sm:$0xff]
    %v192 = vld [vmem:[#allocation3 + $0x3c0] sm:$0xff]
    %v193 = vld [vmem:[#allocation3 + $0x3c8] sm:$0xff]
    %v194 = vld [vmem:[#allocation3 + $0x3d0] sm:$0xff]
    %v195 = vld [vmem:[#allocation3 + $0x3d8] sm:$0xff]
    %v196 = vld [vmem:[#allocation3 + $0x3e0] sm:$0xff]
    %v197 = vld [vmem:[#allocation3 + $0x3e8] sm:$0xff]
    %v198 = vld [vmem:[#allocation3 + $0x3f0] sm:$0xff]
    %v199 = vld [vmem:[#allocation3 + $0x3f8] sm:$0xff]
    %v200 = vld [vmem:[#allocation3 + $0x400] sm:$0xff]
    %v201 = vld [vmem:[#allocation3 + $0x408] sm:$0xff]
    %v202 = vld [vmem:[#allocation3 + $0x410] sm:$0xff]
    %v203 = vld [vmem:[#allocation3 + $0x418] sm:$0xff]
    %v204 = vld [vmem:[#allocation3 + $0x420] sm:$0xff]
    %v205 = vld [vmem:[#allocation3 + $0x428] sm:$0xff]
    %v206 = vld [vmem:[#allocation3 + $0x430] sm:$0xff]
    %v207 = vld [vmem:[#allocation3 + $0x438] sm:$0xff]
    %v208 = vld [vmem:[#allocation3 + $0x440] sm:$0xff]
    %v209 = vld [vmem:[#allocation3 + $0x448] sm:$0xff]
    %v210 = vld [vmem:[#allocation3 + $0x450] sm:$0xff]
    %v211 = vld [vmem:[#allocation3 + $0x458] sm:$0xff]
    %v212 = vld [vmem:[#allocation3 + $0x460] sm:$0xff]
    %v213 = vld [vmem:[#allocation3 + $0x468] sm:$0xff]
    %v214 = vld [vmem:[#allocation3 + $0x470] sm:$0xff]
    %v215 = vld [vmem:[#allocation3 + $0x478] sm:$0xff]
    %v216 = vld [vmem:[#allocation3 + $0x480] sm:$0xff]
    %v217 = vld [vmem:[#allocation3 + $0x488] sm:$0xff]
    %v218 = vld [vmem:[#allocation3 + $0x490] sm:$0xff]
    %v219 = vld [vmem:[#allocation3 + $0x498] sm:$0xff]
    %v220 = vld [vmem:[#allocation3 + $0x4a0] sm:$0xff]
    %v221 = vld [vmem:[#allocation3 + $0x4a8] sm:$0xff]
    %v222 = vld [vmem:[#allocation3 + $0x4b0] sm:$0xff]
    %v223 = vld [vmem:[#allocation3 + $0x4b8] sm:$0xff]
    %v224 = vld [vmem:[#allocation3 + $0x4c0] sm:$0xff]
    %v225 = vld [vmem:[#allocation3 + $0x4c8] sm:$0xff]
    %v226 = vld [vmem:[#allocation3 + $0x4d0] sm:$0xff]
    %v227 = vld [vmem:[#allocation3 + $0x4d8] sm:$0xff]
    %v228 = vld [vmem:[#allocation3 + $0x4e0] sm:$0xff]
    %v229 = vld [vmem:[#allocation3 + $0x4e8] sm:$0xff]
    %v230 = vld [vmem:[#allocation3 + $0x4f0] sm:$0xff]
    %v231 = vld [vmem:[#allocation3 + $0x4f8] sm:$0xff]
    %v232 = vld [vmem:[#allocation3 + $0x500] sm:$0xff]
    %v233 = vld [vmem:[#allocation3 + $0x508] sm:$0xff]
    %v234 = vld [vmem:[#allocation3 + $0x510] sm:$0xff]
    %v235 = vld [vmem:[#allocation3 + $0x518] sm:$0xff]
    %v236 = vld [vmem:[#allocation3 + $0x520] sm:$0xff]
    %v237 = vld [vmem:[#allocation3 + $0x528] sm:$0xff]
    %v238 = vld [vmem:[#allocation3 + $0x530] sm:$0xff]
    %v239 = vld [vmem:[#allocation3 + $0x538] sm:$0xff]
    %v240 = vld [vmem:[#allocation3 + $0x540] sm:$0xff]
    %v241 = vld [vmem:[#allocation3 + $0x548] sm:$0xff]
    %v242 = vld [vmem:[#allocation3 + $0x550] sm:$0xff]
    %v243 = vld [vmem:[#allocation3 + $0x558] sm:$0xff]
    %v244 = vld [vmem:[#allocation3 + $0x560] sm:$0xff]
    %v245 = vld [vmem:[#allocation3 + $0x568] sm:$0xff]
    %v246 = vld [vmem:[#allocation3 + $0x570] sm:$0xff]
    %v247 = vld [vmem:[#allocation3 + $0x578] sm:$0xff]
    %v248 = vld [vmem:[#allocation3 + $0x580] sm:$0xff]
    %v249 = vld [vmem:[#allocation3 + $0x588] sm:$0xff]
    %v250 = vld [vmem:[#allocation3 + $0x590] sm:$0xff]
    %v251 = vld [vmem:[#allocation3 + $0x598] sm:$0xff]
    %v252 = vld [vmem:[#allocation3 + $0x5a0] sm:$0xff]
    %v253 = vld [vmem:[#allocation3 + $0x5a8] sm:$0xff]
    %v254 = vld [vmem:[#allocation3 + $0x5b0] sm:$0xff]
    %v255 = vld [vmem:[#allocation3 + $0x5b8] sm:$0xff]
    %v256 = vld [vmem:[#allocation3 + $0x5c0] sm:$0xff]
    %v257 = vld [vmem:[#allocation3 + $0x5c8] sm:$0xff]
    %v258 = vld [vmem:[#allocation3 + $0x5d0] sm:$0xff]
    %v259 = vld [vmem:[#allocation3 + $0x5d8] sm:$0xff]
    %v260 = vld [vmem:[#allocation3 + $0x5e0] sm:$0xff]
    %v261 = vld [vmem:[#allocation3 + $0x5e8] sm:$0xff]
    %v262 = vld [vmem:[#allocation3 + $0x5f0] sm:$0xff]
    %v263 = vld [vmem:[#allocation3 + $0x5f8] sm:$0xff]
    %v264 = vld [vmem:[#allocation3 + $0x600] sm:$0xff]
    %v265 = vld [vmem:[#allocation3 + $0x608] sm:$0xff]
    %v266 = vld [vmem:[#allocation3 + $0x610] sm:$0xff]
    %v267 = vld [vmem:[#allocation3 + $0x618] sm:$0xff]
    %v268 = vld [vmem:[#allocation3 + $0x620] sm:$0xff]
    %v269 = vld [vmem:[#allocation3 + $0x628] sm:$0xff]
    %v270 = vld [vmem:[#allocation3 + $0x630] sm:$0xff]
    %v271 = vld [vmem:[#allocation3 + $0x638] sm:$0xff]
    %v272 = vld [vmem:[#allocation3 + $0x640] sm:$0xff]
    %v273 = vld [vmem:[#allocation3 + $0x648] sm:$0xff]
    %v274 = vld [vmem:[#allocation3 + $0x650] sm:$0xff]
    %v275 = vld [vmem:[#allocation3 + $0x658] sm:$0xff]
    %v276 = vld [vmem:[#allocation3 + $0x660] sm:$0xff]
    %v277 = vld [vmem:[#allocation3 + $0x668] sm:$0xff]
    %v278 = vld [vmem:[#allocation3 + $0x670] sm:$0xff]
    %v279 = vld [vmem:[#allocation3 + $0x678] sm:$0xff]
    %v280 = vld [vmem:[#allocation3 + $0x680] sm:$0xff]
    %v281 = vld [vmem:[#allocation3 + $0x688] sm:$0xff]
    %v282 = vld [vmem:[#allocation3 + $0x690] sm:$0xff]
    %v283 = vld [vmem:[#allocation3 + $0x698] sm:$0xff]
    %v284 = vld [vmem:[#allocation3 + $0x6a0] sm:$0xff]
    %v285 = vld [vmem:[#allocation3 + $0x6a8] sm:$0xff]
    %v286 = vld [vmem:[#allocation3 + $0x6b0] sm:$0xff]
    %v287 = vld [vmem:[#allocation3 + $0x6b8] sm:$0xff]
    %v288 = vld [vmem:[#allocation3 + $0x6c0] sm:$0xff]
    %v289 = vld [vmem:[#allocation3 + $0x6c8] sm:$0xff]
    %v290 = vld [vmem:[#allocation3 + $0x6d0] sm:$0xff]
    %v291 = vld [vmem:[#allocation3 + $0x6d8] sm:$0xff]
    %v292 = vld [vmem:[#allocation3 + $0x6e0] sm:$0xff]
    %v293 = vld [vmem:[#allocation3 + $0x6e8] sm:$0xff]
    %v294 = vld [vmem:[#allocation3 + $0x6f0] sm:$0xff]
    %v295 = vld [vmem:[#allocation3 + $0x6f8] sm:$0xff]
    %v296 = vld [vmem:[#allocation3 + $0x700] sm:$0xff]
    %v297 = vld [vmem:[#allocation3 + $0x708] sm:$0xff]
    %v298 = vld [vmem:[#allocation3 + $0x710] sm:$0xff]
    %v299 = vld [vmem:[#allocation3 + $0x718] sm:$0xff]
    %v300 = vld [vmem:[#allocation3 + $0x720] sm:$0xff]
    %v301 = vld [vmem:[#allocation3 + $0x728] sm:$0xff]
    %v302 = vld [vmem:[#allocation3 + $0x730] sm:$0xff]
    %v303 = vld [vmem:[#allocation3 + $0x738] sm:$0xff]
    %v304 = vld [vmem:[#allocation3 + $0x740] sm:$0xff]
    %v305 = vld [vmem:[#allocation3 + $0x748] sm:$0xff]
    %v306 = vld [vmem:[#allocation3 + $0x750] sm:$0xff]
    %v307 = vld [vmem:[#allocation3 + $0x758] sm:$0xff]
    %v308 = vld [vmem:[#allocation3 + $0x760] sm:$0xff]
    %v309 = vld [vmem:[#allocation3 + $0x768] sm:$0xff]
    %v310 = vld [vmem:[#allocation3 + $0x770] sm:$0xff]
    %v311 = vld [vmem:[#allocation3 + $0x778] sm:$0xff]
    %v312 = vld [vmem:[#allocation3 + $0x780] sm:$0xff]
    %v313 = vld [vmem:[#allocation3 + $0x788] sm:$0xff]
    %v314 = vld [vmem:[#allocation3 + $0x790] sm:$0xff]
    %v315 = vld [vmem:[#allocation3 + $0x798] sm:$0xff]
    %v316 = vld [vmem:[#allocation3 + $0x7a0] sm:$0xff]
    %v317 = vld [vmem:[#allocation3 + $0x7a8] sm:$0xff]
    %v318 = vld [vmem:[#allocation3 + $0x7b0] sm:$0xff]
    %v319 = vld [vmem:[#allocation3 + $0x7b8] sm:$0xff]
    %v320 = vld [vmem:[#allocation3 + $0x7c0] sm:$0xff]
    %v321 = vld [vmem:[#allocation3 + $0x7c8] sm:$0xff]
    %v322 = vld [vmem:[#allocation3 + $0x7d0] sm:$0xff]
    %v323 = vld [vmem:[#allocation3 + $0x7d8] sm:$0xff]
    %v324 = vld [vmem:[#allocation3 + $0x7e0] sm:$0xff]
    %v325 = vld [vmem:[#allocation3 + $0x7e8] sm:$0xff]
    %v326 = vld [vmem:[#allocation3 + $0x7f0] sm:$0xff]
    %v327 = vld [vmem:[#allocation3 + $0x7f8] sm:$0xff]
    %v328 = vld [vmem:[#allocation6] sm:$0xff]
    %v329 = vld [vmem:[#allocation6 + $0x8] sm:$0xff]
    %v330 = vld [vmem:[#allocation6 + $0x10] sm:$0xff]
    %v331 = vld [vmem:[#allocation6 + $0x18] sm:$0xff]
    %v336 = vperm.slane %v328, 0
    %v337 = vperm.slane %v328, 1
    %v338 = vperm.slane %v328, 2
    %v339 = vperm.slane %v328, 3
    %v340 = vperm.slane %v328, 4
    %v341 = vperm.slane %v328, 5
    %v342 = vperm.slane %v328, 6
    %v343 = vperm.slane %v328, 7
    %v344 = vperm.slane %v329, 0
    %v345 = vperm.slane %v329, 1
    %v346 = vperm.slane %v329, 2
    %v347 = vperm.slane %v329, 3
    %v348 = vperm.slane %v329, 4
    %v349 = vperm.slane %v329, 5
    %v350 = vperm.slane %v329, 6
    %v351 = vperm.slane %v329, 7
    %v352 = vperm.slane %v330, 0
    %v353 = vperm.slane %v330, 1
    %v354 = vperm.slane %v330, 2
    %v355 = vperm.slane %v330, 3
    %v356 = vperm.slane %v330, 4
    %v357 = vperm.slane %v330, 5
    %v358 = vperm.slane %v330, 6
    %v359 = vperm.slane %v330, 7
    %v360 = vperm.slane %v331, 0
    %v361 = vperm.slane %v331, 1
    %v362 = vperm.slane %v331, 2
    %v363 = vperm.slane %v331, 3
    %v364 = vperm.slane %v331, 4
    %v365 = vperm.slane %v331, 5
    %v366 = vperm.slane %v331, 6
    %v367 = vperm.slane %v331, 7
    %v656 = vunpack.c.l.b16 %v72
    %v657 = vunpack.c.h.b16 %v72
    %v658 = vunpack.c.l.b16 %v73
    %v659 = vunpack.c.h.b16 %v73
    %v660 = vunpack.c.l.b16 %v74
    %v661 = vunpack.c.h.b16 %v74
    %v662 = vunpack.c.l.b16 %v75
    %v663 = vunpack.c.h.b16 %v75
    %v664 = vunpack.c.l.b16 %v76
    %v665 = vunpack.c.h.b16 %v76
    %v666 = vunpack.c.l.b16 %v77
    %v667 = vunpack.c.h.b16 %v77
    %v668 = vunpack.c.l.b16 %v78
    %v669 = vunpack.c.h.b16 %v78
    %v670 = vunpack.c.l.b16 %v79
    %v671 = vunpack.c.h.b16 %v79
    %v672 = vunpack.c.l.b16 %v80
    %v673 = vunpack.c.h.b16 %v80
    %v674 = vunpack.c.l.b16 %v81
    %v675 = vunpack.c.h.b16 %v81
    %v676 = vunpack.c.l.b16 %v82
    %v677 = vunpack.c.h.b16 %v82
    %v678 = vunpack.c.l.b16 %v83
    %v679 = vunpack.c.h.b16 %v83
    %v680 = vunpack.c.l.b16 %v84
    %v681 = vunpack.c.h.b16 %v84
    %v682 = vunpack.c.l.b16 %v85
    %v683 = vunpack.c.h.b16 %v85
    %v684 = vunpack.c.l.b16 %v86
    %v685 = vunpack.c.h.b16 %v86
    %v686 = vunpack.c.l.b16 %v87
    %v687 = vunpack.c.h.b16 %v87
    %v688 = vunpack.c.l.b16 %v88
    %v689 = vunpack.c.h.b16 %v88
    %v690 = vunpack.c.l.b16 %v89
    %v691 = vunpack.c.h.b16 %v89
    %v692 = vunpack.c.l.b16 %v90
    %v693 = vunpack.c.h.b16 %v90
    %v694 = vunpack.c.l.b16 %v91
    %v695 = vunpack.c.h.b16 %v91
    %v696 = vunpack.c.l.b16 %v92
    %v697 = vunpack.c.h.b16 %v92
    %v698 = vunpack.c.l.b16 %v93
    %v699 = vunpack.c.h.b16 %v93
    %v700 = vunpack.c.l.b16 %v94
    %v701 = vunpack.c.h.b16 %v94
    %v702 = vunpack.c.l.b16 %v95
    %v703 = vunpack.c.h.b16 %v95
    %v704 = vunpack.c.l.b16 %v96
    %v705 = vunpack.c.h.b16 %v96
    %v706 = vunpack.c.l.b16 %v97
    %v707 = vunpack.c.h.b16 %v97
    %v708 = vunpack.c.l.b16 %v98
    %v709 = vunpack.c.h.b16 %v98
    %v710 = vunpack.c.l.b16 %v99
    %v711 = vunpack.c.h.b16 %v99
    %v712 = vunpack.c.l.b16 %v100
    %v713 = vunpack.c.h.b16 %v100
    %v714 = vunpack.c.l.b16 %v101
    %v715 = vunpack.c.h.b16 %v101
    %v716 = vunpack.c.l.b16 %v102
    %v717 = vunpack.c.h.b16 %v102
    %v718 = vunpack.c.l.b16 %v103
    %v719 = vunpack.c.h.b16 %v103
    %v720 = vunpack.c.l.b16 %v104
    %v721 = vunpack.c.h.b16 %v104
    %v722 = vunpack.c.l.b16 %v105
    %v723 = vunpack.c.h.b16 %v105
    %v724 = vunpack.c.l.b16 %v106
    %v725 = vunpack.c.h.b16 %v106
    %v726 = vunpack.c.l.b16 %v107
    %v727 = vunpack.c.h.b16 %v107
    %v728 = vunpack.c.l.b16 %v108
    %v729 = vunpack.c.h.b16 %v108
    %v730 = vunpack.c.l.b16 %v109
    %v731 = vunpack.c.h.b16 %v109
    %v732 = vunpack.c.l.b16 %v110
    %v733 = vunpack.c.h.b16 %v110
    %v734 = vunpack.c.l.b16 %v111
    %v735 = vunpack.c.h.b16 %v111
    %v736 = vunpack.c.l.b16 %v112
    %v737 = vunpack.c.h.b16 %v112
    %v738 = vunpack.c.l.b16 %v113
    %v739 = vunpack.c.h.b16 %v113
    %v740 = vunpack.c.l.b16 %v114
    %v741 = vunpack.c.h.b16 %v114
    %v742 = vunpack.c.l.b16 %v115
    %v743 = vunpack.c.h.b16 %v115
    %v744 = vunpack.c.l.b16 %v116
    %v745 = vunpack.c.h.b16 %v116
    %v746 = vunpack.c.l.b16 %v117
    %v747 = vunpack.c.h.b16 %v117
    %v748 = vunpack.c.l.b16 %v118
    %v749 = vunpack.c.h.b16 %v118
    %v750 = vunpack.c.l.b16 %v119
    %v751 = vunpack.c.h.b16 %v119
    %v752 = vunpack.c.l.b16 %v120
    %v753 = vunpack.c.h.b16 %v120
    %v754 = vunpack.c.l.b16 %v121
    %v755 = vunpack.c.h.b16 %v121
    %v756 = vunpack.c.l.b16 %v122
    %v757 = vunpack.c.h.b16 %v122
    %v758 = vunpack.c.l.b16 %v123
    %v759 = vunpack.c.h.b16 %v123
    %v760 = vunpack.c.l.b16 %v124
    %v761 = vunpack.c.h.b16 %v124
    %v762 = vunpack.c.l.b16 %v125
    %v763 = vunpack.c.h.b16 %v125
    %v764 = vunpack.c.l.b16 %v126
    %v765 = vunpack.c.h.b16 %v126
    %v766 = vunpack.c.l.b16 %v127
    %v767 = vunpack.c.h.b16 %v127
    %v768 = vunpack.c.l.b16 %v128
    %v769 = vunpack.c.h.b16 %v128
    %v770 = vunpack.c.l.b16 %v129
    %v771 = vunpack.c.h.b16 %v129
    %v772 = vunpack.c.l.b16 %v130
    %v773 = vunpack.c.h.b16 %v130
    %v774 = vunpack.c.l.b16 %v131
    %v775 = vunpack.c.h.b16 %v131
    %v776 = vunpack.c.l.b16 %v132
    %v777 = vunpack.c.h.b16 %v132
    %v778 = vunpack.c.l.b16 %v133
    %v779 = vunpack.c.h.b16 %v133
    %v780 = vunpack.c.l.b16 %v134
    %v781 = vunpack.c.h.b16 %v134
    %v782 = vunpack.c.l.b16 %v135
    %v783 = vunpack.c.h.b16 %v135
    %v784 = vunpack.c.l.b16 %v136
    %v785 = vunpack.c.h.b16 %v136
    %v786 = vunpack.c.l.b16 %v137
    %v787 = vunpack.c.h.b16 %v137
    %v788 = vunpack.c.l.b16 %v138
    %v789 = vunpack.c.h.b16 %v138
    %v790 = vunpack.c.l.b16 %v139
    %v791 = vunpack.c.h.b16 %v139
    %v792 = vunpack.c.l.b16 %v140
    %v793 = vunpack.c.h.b16 %v140
    %v794 = vunpack.c.l.b16 %v141
    %v795 = vunpack.c.h.b16 %v141
    %v796 = vunpack.c.l.b16 %v142
    %v797 = vunpack.c.h.b16 %v142
    %v798 = vunpack.c.l.b16 %v143
    %v799 = vunpack.c.h.b16 %v143
    %v800 = vunpack.c.l.b16 %v144
    %v801 = vunpack.c.h.b16 %v144
    %v802 = vunpack.c.l.b16 %v145
    %v803 = vunpack.c.h.b16 %v145
    %v804 = vunpack.c.l.b16 %v146
    %v805 = vunpack.c.h.b16 %v146
    %v806 = vunpack.c.l.b16 %v147
    %v807 = vunpack.c.h.b16 %v147
    %v808 = vunpack.c.l.b16 %v148
    %v809 = vunpack.c.h.b16 %v148
    %v810 = vunpack.c.l.b16 %v149
    %v811 = vunpack.c.h.b16 %v149
    %v812 = vunpack.c.l.b16 %v150
    %v813 = vunpack.c.h.b16 %v150
    %v814 = vunpack.c.l.b16 %v151
    %v815 = vunpack.c.h.b16 %v151
    %v816 = vunpack.c.l.b16 %v152
    %v817 = vunpack.c.h.b16 %v152
    %v818 = vunpack.c.l.b16 %v153
    %v819 = vunpack.c.h.b16 %v153
    %v820 = vunpack.c.l.b16 %v154
    %v821 = vunpack.c.h.b16 %v154
    %v822 = vunpack.c.l.b16 %v155
    %v823 = vunpack.c.h.b16 %v155
    %v824 = vunpack.c.l.b16 %v156
    %v825 = vunpack.c.h.b16 %v156
    %v826 = vunpack.c.l.b16 %v157
    %v827 = vunpack.c.h.b16 %v157
    %v828 = vunpack.c.l.b16 %v158
    %v829 = vunpack.c.h.b16 %v158
    %v830 = vunpack.c.l.b16 %v159
    %v831 = vunpack.c.h.b16 %v159
    %v832 = vunpack.c.l.b16 %v160
    %v833 = vunpack.c.h.b16 %v160
    %v834 = vunpack.c.l.b16 %v161
    %v835 = vunpack.c.h.b16 %v161
    %v836 = vunpack.c.l.b16 %v162
    %v837 = vunpack.c.h.b16 %v162
    %v838 = vunpack.c.l.b16 %v163
    %v839 = vunpack.c.h.b16 %v163
    %v840 = vunpack.c.l.b16 %v164
    %v841 = vunpack.c.h.b16 %v164
    %v842 = vunpack.c.l.b16 %v165
    %v843 = vunpack.c.h.b16 %v165
    %v844 = vunpack.c.l.b16 %v166
    %v845 = vunpack.c.h.b16 %v166
    %v846 = vunpack.c.l.b16 %v167
    %v847 = vunpack.c.h.b16 %v167
    %v848 = vunpack.c.l.b16 %v168
    %v849 = vunpack.c.h.b16 %v168
    %v850 = vunpack.c.l.b16 %v169
    %v851 = vunpack.c.h.b16 %v169
    %v852 = vunpack.c.l.b16 %v170
    %v853 = vunpack.c.h.b16 %v170
    %v854 = vunpack.c.l.b16 %v171
    %v855 = vunpack.c.h.b16 %v171
    %v856 = vunpack.c.l.b16 %v172
    %v857 = vunpack.c.h.b16 %v172
    %v858 = vunpack.c.l.b16 %v173
    %v859 = vunpack.c.h.b16 %v173
    %v860 = vunpack.c.l.b16 %v174
    %v861 = vunpack.c.h.b16 %v174
    %v862 = vunpack.c.l.b16 %v175
    %v863 = vunpack.c.h.b16 %v175
    %v864 = vunpack.c.l.b16 %v176
    %v865 = vunpack.c.h.b16 %v176
    %v866 = vunpack.c.l.b16 %v177
    %v867 = vunpack.c.h.b16 %v177
    %v868 = vunpack.c.l.b16 %v178
    %v869 = vunpack.c.h.b16 %v178
    %v870 = vunpack.c.l.b16 %v179
    %v871 = vunpack.c.h.b16 %v179
    %v872 = vunpack.c.l.b16 %v180
    %v873 = vunpack.c.h.b16 %v180
    %v874 = vunpack.c.l.b16 %v181
    %v875 = vunpack.c.h.b16 %v181
    %v876 = vunpack.c.l.b16 %v182
    %v877 = vunpack.c.h.b16 %v182
    %v878 = vunpack.c.l.b16 %v183
    %v879 = vunpack.c.h.b16 %v183
    %v880 = vunpack.c.l.b16 %v184
    %v881 = vunpack.c.h.b16 %v184
    %v882 = vunpack.c.l.b16 %v185
    %v883 = vunpack.c.h.b16 %v185
    %v884 = vunpack.c.l.b16 %v186
    %v885 = vunpack.c.h.b16 %v186
    %v886 = vunpack.c.l.b16 %v187
    %v887 = vunpack.c.h.b16 %v187
    %v888 = vunpack.c.l.b16 %v188
    %v889 = vunpack.c.h.b16 %v188
    %v890 = vunpack.c.l.b16 %v189
    %v891 = vunpack.c.h.b16 %v189
    %v892 = vunpack.c.l.b16 %v190
    %v893 = vunpack.c.h.b16 %v190
    %v894 = vunpack.c.l.b16 %v191
    %v895 = vunpack.c.h.b16 %v191
    %v896 = vunpack.c.l.b16 %v192
    %v897 = vunpack.c.h.b16 %v192
    %v898 = vunpack.c.l.b16 %v193
    %v899 = vunpack.c.h.b16 %v193
    %v900 = vunpack.c.l.b16 %v194
    %v901 = vunpack.c.h.b16 %v194
    %v902 = vunpack.c.l.b16 %v195
    %v903 = vunpack.c.h.b16 %v195
    %v904 = vunpack.c.l.b16 %v196
    %v905 = vunpack.c.h.b16 %v196
    %v906 = vunpack.c.l.b16 %v197
    %v907 = vunpack.c.h.b16 %v197
    %v908 = vunpack.c.l.b16 %v198
    %v909 = vunpack.c.h.b16 %v198
    %v910 = vunpack.c.l.b16 %v199
    %v911 = vunpack.c.h.b16 %v199
    %v912 = vunpack.c.l.b16 %v200
    %v913 = vunpack.c.h.b16 %v200
    %v914 = vunpack.c.l.b16 %v201
    %v915 = vunpack.c.h.b16 %v201
    %v916 = vunpack.c.l.b16 %v202
    %v917 = vunpack.c.h.b16 %v202
    %v918 = vunpack.c.l.b16 %v203
    %v919 = vunpack.c.h.b16 %v203
    %v920 = vunpack.c.l.b16 %v204
    %v921 = vunpack.c.h.b16 %v204
    %v922 = vunpack.c.l.b16 %v205
    %v923 = vunpack.c.h.b16 %v205
    %v924 = vunpack.c.l.b16 %v206
    %v925 = vunpack.c.h.b16 %v206
    %v926 = vunpack.c.l.b16 %v207
    %v927 = vunpack.c.h.b16 %v207
    %v928 = vunpack.c.l.b16 %v208
    %v929 = vunpack.c.h.b16 %v208
    %v930 = vunpack.c.l.b16 %v209
    %v931 = vunpack.c.h.b16 %v209
    %v932 = vunpack.c.l.b16 %v210
    %v933 = vunpack.c.h.b16 %v210
    %v934 = vunpack.c.l.b16 %v211
    %v935 = vunpack.c.h.b16 %v211
    %v936 = vunpack.c.l.b16 %v212
    %v937 = vunpack.c.h.b16 %v212
    %v938 = vunpack.c.l.b16 %v213
    %v939 = vunpack.c.h.b16 %v213
    %v940 = vunpack.c.l.b16 %v214
    %v941 = vunpack.c.h.b16 %v214
    %v942 = vunpack.c.l.b16 %v215
    %v943 = vunpack.c.h.b16 %v215
    %v944 = vunpack.c.l.b16 %v216
    %v945 = vunpack.c.h.b16 %v216
    %v946 = vunpack.c.l.b16 %v217
    %v947 = vunpack.c.h.b16 %v217
    %v948 = vunpack.c.l.b16 %v218
    %v949 = vunpack.c.h.b16 %v218
    %v950 = vunpack.c.l.b16 %v219
    %v951 = vunpack.c.h.b16 %v219
    %v952 = vunpack.c.l.b16 %v220
    %v953 = vunpack.c.h.b16 %v220
    %v954 = vunpack.c.l.b16 %v221
    %v955 = vunpack.c.h.b16 %v221
    %v956 = vunpack.c.l.b16 %v222
    %v957 = vunpack.c.h.b16 %v222
    %v958 = vunpack.c.l.b16 %v223
    %v959 = vunpack.c.h.b16 %v223
    %v960 = vunpack.c.l.b16 %v224
    %v961 = vunpack.c.h.b16 %v224
    %v962 = vunpack.c.l.b16 %v225
    %v963 = vunpack.c.h.b16 %v225
    %v964 = vunpack.c.l.b16 %v226
    %v965 = vunpack.c.h.b16 %v226
    %v966 = vunpack.c.l.b16 %v227
    %v967 = vunpack.c.h.b16 %v227
    %v968 = vunpack.c.l.b16 %v228
    %v969 = vunpack.c.h.b16 %v228
    %v970 = vunpack.c.l.b16 %v229
    %v971 = vunpack.c.h.b16 %v229
    %v972 = vunpack.c.l.b16 %v230
    %v973 = vunpack.c.h.b16 %v230
    %v974 = vunpack.c.l.b16 %v231
    %v975 = vunpack.c.h.b16 %v231
    %v976 = vunpack.c.l.b16 %v232
    %v977 = vunpack.c.h.b16 %v232
    %v978 = vunpack.c.l.b16 %v233
    %v979 = vunpack.c.h.b16 %v233
    %v980 = vunpack.c.l.b16 %v234
    %v981 = vunpack.c.h.b16 %v234
    %v982 = vunpack.c.l.b16 %v235
    %v983 = vunpack.c.h.b16 %v235
    %v984 = vunpack.c.l.b16 %v236
    %v985 = vunpack.c.h.b16 %v236
    %v986 = vunpack.c.l.b16 %v237
    %v987 = vunpack.c.h.b16 %v237
    %v988 = vunpack.c.l.b16 %v238
    %v989 = vunpack.c.h.b16 %v238
    %v990 = vunpack.c.l.b16 %v239
    %v991 = vunpack.c.h.b16 %v239
    %v992 = vunpack.c.l.b16 %v240
    %v993 = vunpack.c.h.b16 %v240
    %v994 = vunpack.c.l.b16 %v241
    %v995 = vunpack.c.h.b16 %v241
    %v996 = vunpack.c.l.b16 %v242
    %v997 = vunpack.c.h.b16 %v242
    %v998 = vunpack.c.l.b16 %v243
    %v999 = vunpack.c.h.b16 %v243
    %v1000 = vunpack.c.l.b16 %v244
    %v1001 = vunpack.c.h.b16 %v244
    %v1002 = vunpack.c.l.b16 %v245
    %v1003 = vunpack.c.h.b16 %v245
    %v1004 = vunpack.c.l.b16 %v246
    %v1005 = vunpack.c.h.b16 %v246
    %v1006 = vunpack.c.l.b16 %v247
    %v1007 = vunpack.c.h.b16 %v247
    %v1008 = vunpack.c.l.b16 %v248
    %v1009 = vunpack.c.h.b16 %v248
    %v1010 = vunpack.c.l.b16 %v249
    %v1011 = vunpack.c.h.b16 %v249
    %v1012 = vunpack.c.l.b16 %v250
    %v1013 = vunpack.c.h.b16 %v250
    %v1014 = vunpack.c.l.b16 %v251
    %v1015 = vunpack.c.h.b16 %v251
    %v1016 = vunpack.c.l.b16 %v252
    %v1017 = vunpack.c.h.b16 %v252
    %v1018 = vunpack.c.l.b16 %v253
    %v1019 = vunpack.c.h.b16 %v253
    %v1020 = vunpack.c.l.b16 %v254
    %v1021 = vunpack.c.h.b16 %v254
    %v1022 = vunpack.c.l.b16 %v255
    %v1023 = vunpack.c.h.b16 %v255
    %v1024 = vunpack.c.l.b16 %v256
    %v1025 = vunpack.c.h.b16 %v256
    %v1026 = vunpack.c.l.b16 %v257
    %v1027 = vunpack.c.h.b16 %v257
    %v1028 = vunpack.c.l.b16 %v258
    %v1029 = vunpack.c.h.b16 %v258
    %v1030 = vunpack.c.l.b16 %v259
    %v1031 = vunpack.c.h.b16 %v259
    %v1032 = vunpack.c.l.b16 %v260
    %v1033 = vunpack.c.h.b16 %v260
    %v1034 = vunpack.c.l.b16 %v261
    %v1035 = vunpack.c.h.b16 %v261
    %v1036 = vunpack.c.l.b16 %v262
    %v1037 = vunpack.c.h.b16 %v262
    %v1038 = vunpack.c.l.b16 %v263
    %v1039 = vunpack.c.h.b16 %v263
    %v1040 = vunpack.c.l.b16 %v264
    %v1041 = vunpack.c.h.b16 %v264
    %v1042 = vunpack.c.l.b16 %v265
    %v1043 = vunpack.c.h.b16 %v265
    %v1044 = vunpack.c.l.b16 %v266
    %v1045 = vunpack.c.h.b16 %v266
    %v1046 = vunpack.c.l.b16 %v267
    %v1047 = vunpack.c.h.b16 %v267
    %v1048 = vunpack.c.l.b16 %v268
    %v1049 = vunpack.c.h.b16 %v268
    %v1050 = vunpack.c.l.b16 %v269
    %v1051 = vunpack.c.h.b16 %v269
    %v1052 = vunpack.c.l.b16 %v270
    %v1053 = vunpack.c.h.b16 %v270
    %v1054 = vunpack.c.l.b16 %v271
    %v1055 = vunpack.c.h.b16 %v271
    %v1056 = vunpack.c.l.b16 %v272
    %v1057 = vunpack.c.h.b16 %v272
    %v1058 = vunpack.c.l.b16 %v273
    %v1059 = vunpack.c.h.b16 %v273
    %v1060 = vunpack.c.l.b16 %v274
    %v1061 = vunpack.c.h.b16 %v274
    %v1062 = vunpack.c.l.b16 %v275
    %v1063 = vunpack.c.h.b16 %v275
    %v1064 = vunpack.c.l.b16 %v276
    %v1065 = vunpack.c.h.b16 %v276
    %v1066 = vunpack.c.l.b16 %v277
    %v1067 = vunpack.c.h.b16 %v277
    %v1068 = vunpack.c.l.b16 %v278
    %v1069 = vunpack.c.h.b16 %v278
    %v1070 = vunpack.c.l.b16 %v279
    %v1071 = vunpack.c.h.b16 %v279
    %v1072 = vunpack.c.l.b16 %v280
    %v1073 = vunpack.c.h.b16 %v280
    %v1074 = vunpack.c.l.b16 %v281
    %v1075 = vunpack.c.h.b16 %v281
    %v1076 = vunpack.c.l.b16 %v282
    %v1077 = vunpack.c.h.b16 %v282
    %v1078 = vunpack.c.l.b16 %v283
    %v1079 = vunpack.c.h.b16 %v283
    %v1080 = vunpack.c.l.b16 %v284
    %v1081 = vunpack.c.h.b16 %v284
    %v1082 = vunpack.c.l.b16 %v285
    %v1083 = vunpack.c.h.b16 %v285
    %v1084 = vunpack.c.l.b16 %v286
    %v1085 = vunpack.c.h.b16 %v286
    %v1086 = vunpack.c.l.b16 %v287
    %v1087 = vunpack.c.h.b16 %v287
    %v1088 = vunpack.c.l.b16 %v288
    %v1089 = vunpack.c.h.b16 %v288
    %v1090 = vunpack.c.l.b16 %v289
    %v1091 = vunpack.c.h.b16 %v289
    %v1092 = vunpack.c.l.b16 %v290
    %v1093 = vunpack.c.h.b16 %v290
    %v1094 = vunpack.c.l.b16 %v291
    %v1095 = vunpack.c.h.b16 %v291
    %v1096 = vunpack.c.l.b16 %v292
    %v1097 = vunpack.c.h.b16 %v292
    %v1098 = vunpack.c.l.b16 %v293
    %v1099 = vunpack.c.h.b16 %v293
    %v1100 = vunpack.c.l.b16 %v294
    %v1101 = vunpack.c.h.b16 %v294
    %v1102 = vunpack.c.l.b16 %v295
    %v1103 = vunpack.c.h.b16 %v295
    %v1104 = vunpack.c.l.b16 %v296
    %v1105 = vunpack.c.h.b16 %v296
    %v1106 = vunpack.c.l.b16 %v297
    %v1107 = vunpack.c.h.b16 %v297
    %v1108 = vunpack.c.l.b16 %v298
    %v1109 = vunpack.c.h.b16 %v298
    %v1110 = vunpack.c.l.b16 %v299
    %v1111 = vunpack.c.h.b16 %v299
    %v1112 = vunpack.c.l.b16 %v300
    %v1113 = vunpack.c.h.b16 %v300
    %v1114 = vunpack.c.l.b16 %v301
    %v1115 = vunpack.c.h.b16 %v301
    %v1116 = vunpack.c.l.b16 %v302
    %v1117 = vunpack.c.h.b16 %v302
    %v1118 = vunpack.c.l.b16 %v303
    %v1119 = vunpack.c.h.b16 %v303
    %v1120 = vunpack.c.l.b16 %v304
    %v1121 = vunpack.c.h.b16 %v304
    %v1122 = vunpack.c.l.b16 %v305
    %v1123 = vunpack.c.h.b16 %v305
    %v1124 = vunpack.c.l.b16 %v306
    %v1125 = vunpack.c.h.b16 %v306
    %v1126 = vunpack.c.l.b16 %v307
    %v1127 = vunpack.c.h.b16 %v307
    %v1128 = vunpack.c.l.b16 %v308
    %v1129 = vunpack.c.h.b16 %v308
    %v1130 = vunpack.c.l.b16 %v309
    %v1131 = vunpack.c.h.b16 %v309
    %v1132 = vunpack.c.l.b16 %v310
    %v1133 = vunpack.c.h.b16 %v310
    %v1134 = vunpack.c.l.b16 %v311
    %v1135 = vunpack.c.h.b16 %v311
    %v1136 = vunpack.c.l.b16 %v312
    %v1137 = vunpack.c.h.b16 %v312
    %v1138 = vunpack.c.l.b16 %v313
    %v1139 = vunpack.c.h.b16 %v313
    %v1140 = vunpack.c.l.b16 %v314
    %v1141 = vunpack.c.h.b16 %v314
    %v1142 = vunpack.c.l.b16 %v315
    %v1143 = vunpack.c.h.b16 %v315
    %v1144 = vunpack.c.l.b16 %v316
    %v1145 = vunpack.c.h.b16 %v316
    %v1146 = vunpack.c.l.b16 %v317
    %v1147 = vunpack.c.h.b16 %v317
    %v1148 = vunpack.c.l.b16 %v318
    %v1149 = vunpack.c.h.b16 %v318
    %v1150 = vunpack.c.l.b16 %v319
    %v1151 = vunpack.c.h.b16 %v319
    %v1152 = vunpack.c.l.b16 %v320
    %v1153 = vunpack.c.h.b16 %v320
    %v1154 = vunpack.c.l.b16 %v321
    %v1155 = vunpack.c.h.b16 %v321
    %v1156 = vunpack.c.l.b16 %v322
    %v1157 = vunpack.c.h.b16 %v322
    %v1158 = vunpack.c.l.b16 %v323
    %v1159 = vunpack.c.h.b16 %v323
    %v1160 = vunpack.c.l.b16 %v324
    %v1161 = vunpack.c.h.b16 %v324
    %v1162 = vunpack.c.l.b16 %v325
    %v1163 = vunpack.c.h.b16 %v325
    %v1164 = vunpack.c.l.b16 %v326
    %v1165 = vunpack.c.h.b16 %v326
    %v1166 = vunpack.c.l.b16 %v327
    %v1167 = vunpack.c.h.b16 %v327
    %v1168 = vpack.c.b16 %v688, %v656
    %v1169 = vpack.c.b16 %v689, %v657
    %v1170 = vpack.c.b16 %v690, %v658
    %v1171 = vpack.c.b16 %v691, %v659
    %v1172 = vpack.c.b16 %v692, %v660
    %v1173 = vpack.c.b16 %v693, %v661
    %v1174 = vpack.c.b16 %v694, %v662
    %v1175 = vpack.c.b16 %v695, %v663
    %v1176 = vpack.c.b16 %v696, %v664
    %v1177 = vpack.c.b16 %v697, %v665
    %v1178 = vpack.c.b16 %v698, %v666
    %v1179 = vpack.c.b16 %v699, %v667
    %v1180 = vpack.c.b16 %v700, %v668
    %v1181 = vpack.c.b16 %v701, %v669
    %v1182 = vpack.c.b16 %v702, %v670
    %v1183 = vpack.c.b16 %v703, %v671
    %v1184 = vpack.c.b16 %v704, %v672
    %v1185 = vpack.c.b16 %v705, %v673
    %v1186 = vpack.c.b16 %v706, %v674
    %v1187 = vpack.c.b16 %v707, %v675
    %v1188 = vpack.c.b16 %v708, %v676
    %v1189 = vpack.c.b16 %v709, %v677
    %v1190 = vpack.c.b16 %v710, %v678
    %v1191 = vpack.c.b16 %v711, %v679
    %v1192 = vpack.c.b16 %v712, %v680
    %v1193 = vpack.c.b16 %v713, %v681
    %v1194 = vpack.c.b16 %v714, %v682
    %v1195 = vpack.c.b16 %v715, %v683
    %v1196 = vpack.c.b16 %v716, %v684
    %v1197 = vpack.c.b16 %v717, %v685
    %v1198 = vpack.c.b16 %v718, %v686
    %v1199 = vpack.c.b16 %v719, %v687
    %v1200 = vpack.c.b16 %v752, %v720
    %v1201 = vpack.c.b16 %v753, %v721
    %v1202 = vpack.c.b16 %v754, %v722
    %v1203 = vpack.c.b16 %v755, %v723
    %v1204 = vpack.c.b16 %v756, %v724
    %v1205 = vpack.c.b16 %v757, %v725
    %v1206 = vpack.c.b16 %v758, %v726
    %v1207 = vpack.c.b16 %v759, %v727
    %v1208 = vpack.c.b16 %v760, %v728
    %v1209 = vpack.c.b16 %v761, %v729
    %v1210 = vpack.c.b16 %v762, %v730
    %v1211 = vpack.c.b16 %v763, %v731
    %v1212 = vpack.c.b16 %v764, %v732
    %v1213 = vpack.c.b16 %v765, %v733
    %v1214 = vpack.c.b16 %v766, %v734
    %v1215 = vpack.c.b16 %v767, %v735
    %v1216 = vpack.c.b16 %v768, %v736
    %v1217 = vpack.c.b16 %v769, %v737
    %v1218 = vpack.c.b16 %v770, %v738
    %v1219 = vpack.c.b16 %v771, %v739
    %v1220 = vpack.c.b16 %v772, %v740
    %v1221 = vpack.c.b16 %v773, %v741
    %v1222 = vpack.c.b16 %v774, %v742
    %v1223 = vpack.c.b16 %v775, %v743
    %v1224 = vpack.c.b16 %v776, %v744
    %v1225 = vpack.c.b16 %v777, %v745
    %v1226 = vpack.c.b16 %v778, %v746
    %v1227 = vpack.c.b16 %v779, %v747
    %v1228 = vpack.c.b16 %v780, %v748
    %v1229 = vpack.c.b16 %v781, %v749
    %v1230 = vpack.c.b16 %v782, %v750
    %v1231 = vpack.c.b16 %v783, %v751
    %v1232 = vpack.c.b16 %v816, %v784
    %v1233 = vpack.c.b16 %v817, %v785
    %v1234 = vpack.c.b16 %v818, %v786
    %v1235 = vpack.c.b16 %v819, %v787
    %v1236 = vpack.c.b16 %v820, %v788
    %v1237 = vpack.c.b16 %v821, %v789
    %v1238 = vpack.c.b16 %v822, %v790
    %v1239 = vpack.c.b16 %v823, %v791
    %v1240 = vpack.c.b16 %v824, %v792
    %v1241 = vpack.c.b16 %v825, %v793
    %v1242 = vpack.c.b16 %v826, %v794
    %v1243 = vpack.c.b16 %v827, %v795
    %v1244 = vpack.c.b16 %v828, %v796
    %v1245 = vpack.c.b16 %v829, %v797
    %v1246 = vpack.c.b16 %v830, %v798
    %v1247 = vpack.c.b16 %v831, %v799
    %v1248 = vpack.c.b16 %v832, %v800
    %v1249 = vpack.c.b16 %v833, %v801
    %v1250 = vpack.c.b16 %v834, %v802
    %v1251 = vpack.c.b16 %v835, %v803
    %v1252 = vpack.c.b16 %v836, %v804
    %v1253 = vpack.c.b16 %v837, %v805
    %v1254 = vpack.c.b16 %v838, %v806
    %v1255 = vpack.c.b16 %v839, %v807
    %v1256 = vpack.c.b16 %v840, %v808
    %v1257 = vpack.c.b16 %v841, %v809
    %v1258 = vpack.c.b16 %v842, %v810
    %v1259 = vpack.c.b16 %v843, %v811
    %v1260 = vpack.c.b16 %v844, %v812
    %v1261 = vpack.c.b16 %v845, %v813
    %v1262 = vpack.c.b16 %v846, %v814
    %v1263 = vpack.c.b16 %v847, %v815
    %v1264 = vpack.c.b16 %v880, %v848
    %v1265 = vpack.c.b16 %v881, %v849
    %v1266 = vpack.c.b16 %v882, %v850
    %v1267 = vpack.c.b16 %v883, %v851
    %v1268 = vpack.c.b16 %v884, %v852
    %v1269 = vpack.c.b16 %v885, %v853
    %v1270 = vpack.c.b16 %v886, %v854
    %v1271 = vpack.c.b16 %v887, %v855
    %v1272 = vpack.c.b16 %v888, %v856
    %v1273 = vpack.c.b16 %v889, %v857
    %v1274 = vpack.c.b16 %v890, %v858
    %v1275 = vpack.c.b16 %v891, %v859
    %v1276 = vpack.c.b16 %v892, %v860
    %v1277 = vpack.c.b16 %v893, %v861
    %v1278 = vpack.c.b16 %v894, %v862
    %v1279 = vpack.c.b16 %v895, %v863
    %v1280 = vpack.c.b16 %v896, %v864
    %v1281 = vpack.c.b16 %v897, %v865
    %v1282 = vpack.c.b16 %v898, %v866
    %v1283 = vpack.c.b16 %v899, %v867
    %v1284 = vpack.c.b16 %v900, %v868
    %v1285 = vpack.c.b16 %v901, %v869
    %v1286 = vpack.c.b16 %v902, %v870
    %v1287 = vpack.c.b16 %v903, %v871
    %v1288 = vpack.c.b16 %v904, %v872
    %v1289 = vpack.c.b16 %v905, %v873
    %v1290 = vpack.c.b16 %v906, %v874
    %v1291 = vpack.c.b16 %v907, %v875
    %v1292 = vpack.c.b16 %v908, %v876
    %v1293 = vpack.c.b16 %v909, %v877
    %v1294 = vpack.c.b16 %v910, %v878
    %v1295 = vpack.c.b16 %v911, %v879
    %v1296 = vpack.c.b16 %v944, %v912
    %v1297 = vpack.c.b16 %v945, %v913
    %v1298 = vpack.c.b16 %v946, %v914
    %v1299 = vpack.c.b16 %v947, %v915
    %v1300 = vpack.c.b16 %v948, %v916
    %v1301 = vpack.c.b16 %v949, %v917
    %v1302 = vpack.c.b16 %v950, %v918
    %v1303 = vpack.c.b16 %v951, %v919
    %v1304 = vpack.c.b16 %v952, %v920
    %v1305 = vpack.c.b16 %v953, %v921
    %v1306 = vpack.c.b16 %v954, %v922
    %v1307 = vpack.c.b16 %v955, %v923
    %v1308 = vpack.c.b16 %v956, %v924
    %v1309 = vpack.c.b16 %v957, %v925
    %v1310 = vpack.c.b16 %v958, %v926
    %v1311 = vpack.c.b16 %v959, %v927
    %v1312 = vpack.c.b16 %v960, %v928
    %v1313 = vpack.c.b16 %v961, %v929
    %v1314 = vpack.c.b16 %v962, %v930
    %v1315 = vpack.c.b16 %v963, %v931
    %v1316 = vpack.c.b16 %v964, %v932
    %v1317 = vpack.c.b16 %v965, %v933
    %v1318 = vpack.c.b16 %v966, %v934
    %v1319 = vpack.c.b16 %v967, %v935
    %v1320 = vpack.c.b16 %v968, %v936
    %v1321 = vpack.c.b16 %v969, %v937
    %v1322 = vpack.c.b16 %v970, %v938
    %v1323 = vpack.c.b16 %v971, %v939
    %v1324 = vpack.c.b16 %v972, %v940
    %v1325 = vpack.c.b16 %v973, %v941
    %v1326 = vpack.c.b16 %v974, %v942
    %v1327 = vpack.c.b16 %v975, %v943
    %v1328 = vpack.c.b16 %v1008, %v976
    %v1329 = vpack.c.b16 %v1009, %v977
    %v1330 = vpack.c.b16 %v1010, %v978
    %v1331 = vpack.c.b16 %v1011, %v979
    %v1332 = vpack.c.b16 %v1012, %v980
    %v1333 = vpack.c.b16 %v1013, %v981
    %v1334 = vpack.c.b16 %v1014, %v982
    %v1335 = vpack.c.b16 %v1015, %v983
    %v1336 = vpack.c.b16 %v1016, %v984
    %v1337 = vpack.c.b16 %v1017, %v985
    %v1338 = vpack.c.b16 %v1018, %v986
    %v1339 = vpack.c.b16 %v1019, %v987
    %v1340 = vpack.c.b16 %v1020, %v988
    %v1341 = vpack.c.b16 %v1021, %v989
    %v1342 = vpack.c.b16 %v1022, %v990
    %v1343 = vpack.c.b16 %v1023, %v991
    %v1344 = vpack.c.b16 %v1024, %v992
    %v1345 = vpack.c.b16 %v1025, %v993
    %v1346 = vpack.c.b16 %v1026, %v994
    %v1347 = vpack.c.b16 %v1027, %v995
    %v1348 = vpack.c.b16 %v1028, %v996
    %v1349 = vpack.c.b16 %v1029, %v997
    %v1350 = vpack.c.b16 %v1030, %v998
    %v1351 = vpack.c.b16 %v1031, %v999
    %v1352 = vpack.c.b16 %v1032, %v1000
    %v1353 = vpack.c.b16 %v1033, %v1001
    %v1354 = vpack.c.b16 %v1034, %v1002
    %v1355 = vpack.c.b16 %v1035, %v1003
    %v1356 = vpack.c.b16 %v1036, %v1004
    %v1357 = vpack.c.b16 %v1037, %v1005
    %v1358 = vpack.c.b16 %v1038, %v1006
    %v1359 = vpack.c.b16 %v1039, %v1007
    %v1360 = vpack.c.b16 %v1072, %v1040
    %v1361 = vpack.c.b16 %v1073, %v1041
    %v1362 = vpack.c.b16 %v1074, %v1042
    %v1363 = vpack.c.b16 %v1075, %v1043
    %v1364 = vpack.c.b16 %v1076, %v1044
    %v1365 = vpack.c.b16 %v1077, %v1045
    %v1366 = vpack.c.b16 %v1078, %v1046
    %v1367 = vpack.c.b16 %v1079, %v1047
    %v1368 = vpack.c.b16 %v1080, %v1048
    %v1369 = vpack.c.b16 %v1081, %v1049
    %v1370 = vpack.c.b16 %v1082, %v1050
    %v1371 = vpack.c.b16 %v1083, %v1051
    %v1372 = vpack.c.b16 %v1084, %v1052
    %v1373 = vpack.c.b16 %v1085, %v1053
    %v1374 = vpack.c.b16 %v1086, %v1054
    %v1375 = vpack.c.b16 %v1087, %v1055
    %v1376 = vpack.c.b16 %v1088, %v1056
    %v1377 = vpack.c.b16 %v1089, %v1057
    %v1378 = vpack.c.b16 %v1090, %v1058
    %v1379 = vpack.c.b16 %v1091, %v1059
    %v1380 = vpack.c.b16 %v1092, %v1060
    %v1381 = vpack.c.b16 %v1093, %v1061
    %v1382 = vpack.c.b16 %v1094, %v1062
    %v1383 = vpack.c.b16 %v1095, %v1063
    %v1384 = vpack.c.b16 %v1096, %v1064
    %v1385 = vpack.c.b16 %v1097, %v1065
    %v1386 = vpack.c.b16 %v1098, %v1066
    %v1387 = vpack.c.b16 %v1099, %v1067
    %v1388 = vpack.c.b16 %v1100, %v1068
    %v1389 = vpack.c.b16 %v1101, %v1069
    %v1390 = vpack.c.b16 %v1102, %v1070
    %v1391 = vpack.c.b16 %v1103, %v1071
    %v1392 = vpack.c.b16 %v1136, %v1104
    %v1393 = vpack.c.b16 %v1137, %v1105
    %v1394 = vpack.c.b16 %v1138, %v1106
    %v1395 = vpack.c.b16 %v1139, %v1107
    %v1396 = vpack.c.b16 %v1140, %v1108
    %v1397 = vpack.c.b16 %v1141, %v1109
    %v1398 = vpack.c.b16 %v1142, %v1110
    %v1399 = vpack.c.b16 %v1143, %v1111
    %v1400 = vpack.c.b16 %v1144, %v1112
    %v1401 = vpack.c.b16 %v1145, %v1113
    %v1402 = vpack.c.b16 %v1146, %v1114
    %v1403 = vpack.c.b16 %v1147, %v1115
    %v1404 = vpack.c.b16 %v1148, %v1116
    %v1405 = vpack.c.b16 %v1149, %v1117
    %v1406 = vpack.c.b16 %v1150, %v1118
    %v1407 = vpack.c.b16 %v1151, %v1119
    %v1408 = vpack.c.b16 %v1152, %v1120
    %v1409 = vpack.c.b16 %v1153, %v1121
    %v1410 = vpack.c.b16 %v1154, %v1122
    %v1411 = vpack.c.b16 %v1155, %v1123
    %v1412 = vpack.c.b16 %v1156, %v1124
    %v1413 = vpack.c.b16 %v1157, %v1125
    %v1414 = vpack.c.b16 %v1158, %v1126
    %v1415 = vpack.c.b16 %v1159, %v1127
    %v1416 = vpack.c.b16 %v1160, %v1128
    %v1417 = vpack.c.b16 %v1161, %v1129
    %v1418 = vpack.c.b16 %v1162, %v1130
    %v1419 = vpack.c.b16 %v1163, %v1131
    %v1420 = vpack.c.b16 %v1164, %v1132
    %v1421 = vpack.c.b16 %v1165, %v1133
    %v1422 = vpack.c.b16 %v1166, %v1134
    %v1423 = vpack.c.b16 %v1167, %v1135
    %1680 = vmatpush.bf16.msra.mxu0 %v1392
    %1681 = vmatpush.bf16.msra.mxu0 %v1360
    %1682 = vmatpush.bf16.msra.mxu0 %v1328
    %1683 = vmatpush.bf16.msra.mxu0 %v1296
    %1684 = vmatpush.bf16.msra.mxu0 %v1264
    %1685 = vmatpush.bf16.msra.mxu0 %v1232
    %1686 = vmatpush.bf16.msra.mxu0 %v1200
    %1687 = vmatpush.bf16.msra.mxu0 %v1168
    %1688 = vmatmul.bf16.gmra.mxu0 %v71
    %v1689 = vpop.f32.mrf.mxu0
    %v1690 = vadd.f32 %v336, %v1689
    %v1691 = vpop.f32.mrf.mxu0
    %1692 = vdwg.mxu0
    %1693 = vmatpush.bf16.msra.mxu0 %v1393
    %1694 = vmatpush.bf16.msra.mxu0 %v1361
    %1695 = vmatpush.bf16.msra.mxu0 %v1329
    %1696 = vmatpush.bf16.msra.mxu0 %v1297
    %1697 = vmatpush.bf16.msra.mxu0 %v1265
    %1698 = vmatpush.bf16.msra.mxu0 %v1233
    %1699 = vmatpush.bf16.msra.mxu0 %v1201
    %1700 = vmatpush.bf16.msra.mxu0 %v1169
    %1701 = vmatmul.bf16.gmra.mxu0 %v71
    %v1702 = vpop.f32.mrf.mxu0
    %v1703 = vadd.f32 %v337, %v1702
    %v1704 = vpop.f32.mrf.mxu0
    %1705 = vdwg.mxu0
    %1706 = vmatpush.bf16.msra.mxu0 %v1394
    %1707 = vmatpush.bf16.msra.mxu0 %v1362
    %1708 = vmatpush.bf16.msra.mxu0 %v1330
    %1709 = vmatpush.bf16.msra.mxu0 %v1298
    %1710 = vmatpush.bf16.msra.mxu0 %v1266
    %1711 = vmatpush.bf16.msra.mxu0 %v1234
    %1712 = vmatpush.bf16.msra.mxu0 %v1202
    %1713 = vmatpush.bf16.msra.mxu0 %v1170
    %1714 = vmatmul.bf16.gmra.mxu0 %v71
    %v1715 = vpop.f32.mrf.mxu0
    %v1716 = vadd.f32 %v338, %v1715
    %v1717 = vpop.f32.mrf.mxu0
    %1718 = vdwg.mxu0
    %1719 = vmatpush.bf16.msra.mxu0 %v1395
    %1720 = vmatpush.bf16.msra.mxu0 %v1363
    %1721 = vmatpush.bf16.msra.mxu0 %v1331
    %1722 = vmatpush.bf16.msra.mxu0 %v1299
    %1723 = vmatpush.bf16.msra.mxu0 %v1267
    %1724 = vmatpush.bf16.msra.mxu0 %v1235
    %1725 = vmatpush.bf16.msra.mxu0 %v1203
    %1726 = vmatpush.bf16.msra.mxu0 %v1171
    %1727 = vmatmul.bf16.gmra.mxu0 %v71
    %v1728 = vpop.f32.mrf.mxu0
    %v1729 = vadd.f32 %v339, %v1728
    %v1730 = vpop.f32.mrf.mxu0
    %1731 = vdwg.mxu0
    %1732 = vmatpush.bf16.msra.mxu0 %v1396
    %1733 = vmatpush.bf16.msra.mxu0 %v1364
    %1734 = vmatpush.bf16.msra.mxu0 %v1332
    %1735 = vmatpush.bf16.msra.mxu0 %v1300
    %1736 = vmatpush.bf16.msra.mxu0 %v1268
    %1737 = vmatpush.bf16.msra.mxu0 %v1236
    %1738 = vmatpush.bf16.msra.mxu0 %v1204
    %1739 = vmatpush.bf16.msra.mxu0 %v1172
    %1740 = vmatmul.bf16.gmra.mxu0 %v71
    %v1741 = vpop.f32.mrf.mxu0
    %v1742 = vadd.f32 %v340, %v1741
    %v1743 = vpop.f32.mrf.mxu0
    %1744 = vdwg.mxu0
    %1745 = vmatpush.bf16.msra.mxu0 %v1397
    %1746 = vmatpush.bf16.msra.mxu0 %v1365
    %1747 = vmatpush.bf16.msra.mxu0 %v1333
    %1748 = vmatpush.bf16.msra.mxu0 %v1301
    %1749 = vmatpush.bf16.msra.mxu0 %v1269
    %1750 = vmatpush.bf16.msra.mxu0 %v1237
    %1751 = vmatpush.bf16.msra.mxu0 %v1205
    %1752 = vmatpush.bf16.msra.mxu0 %v1173
    %1753 = vmatmul.bf16.gmra.mxu0 %v71
    %v1754 = vpop.f32.mrf.mxu0
    %v1755 = vadd.f32 %v341, %v1754
    %v1756 = vpop.f32.mrf.mxu0
    %1757 = vdwg.mxu0
    %1758 = vmatpush.bf16.msra.mxu0 %v1398
    %1759 = vmatpush.bf16.msra.mxu0 %v1366
    %1760 = vmatpush.bf16.msra.mxu0 %v1334
    %1761 = vmatpush.bf16.msra.mxu0 %v1302
    %1762 = vmatpush.bf16.msra.mxu0 %v1270
    %1763 = vmatpush.bf16.msra.mxu0 %v1238
    %1764 = vmatpush.bf16.msra.mxu0 %v1206
    %1765 = vmatpush.bf16.msra.mxu0 %v1174
    %1766 = vmatmul.bf16.gmra.mxu0 %v71
    %v1767 = vpop.f32.mrf.mxu0
    %v1768 = vadd.f32 %v342, %v1767
    %v1769 = vpop.f32.mrf.mxu0
    %1770 = vdwg.mxu0
    %1771 = vmatpush.bf16.msra.mxu0 %v1399
    %1772 = vmatpush.bf16.msra.mxu0 %v1367
    %1773 = vmatpush.bf16.msra.mxu0 %v1335
    %1774 = vmatpush.bf16.msra.mxu0 %v1303
    %1775 = vmatpush.bf16.msra.mxu0 %v1271
    %1776 = vmatpush.bf16.msra.mxu0 %v1239
    %1777 = vmatpush.bf16.msra.mxu0 %v1207
    %1778 = vmatpush.bf16.msra.mxu0 %v1175
    %1779 = vmatmul.bf16.gmra.mxu0 %v71
    %v1780 = vpop.f32.mrf.mxu0
    %v1781 = vadd.f32 %v343, %v1780
    %v1782 = vpop.f32.mrf.mxu0
    %1783 = vdwg.mxu0
    %1784 = vmatpush.bf16.msra.mxu0 %v1400
    %1785 = vmatpush.bf16.msra.mxu0 %v1368
    %1786 = vmatpush.bf16.msra.mxu0 %v1336
    %1787 = vmatpush.bf16.msra.mxu0 %v1304
    %1788 = vmatpush.bf16.msra.mxu0 %v1272
    %1789 = vmatpush.bf16.msra.mxu0 %v1240
    %1790 = vmatpush.bf16.msra.mxu0 %v1208
    %1791 = vmatpush.bf16.msra.mxu0 %v1176
    %1792 = vmatmul.bf16.gmra.mxu0 %v71
    %v1793 = vpop.f32.mrf.mxu0
    %v1794 = vadd.f32 %v344, %v1793
    %v1795 = vpop.f32.mrf.mxu0
    %1796 = vdwg.mxu0
    %1797 = vmatpush.bf16.msra.mxu0 %v1401
    %1798 = vmatpush.bf16.msra.mxu0 %v1369
    %1799 = vmatpush.bf16.msra.mxu0 %v1337
    %1800 = vmatpush.bf16.msra.mxu0 %v1305
    %1801 = vmatpush.bf16.msra.mxu0 %v1273
    %1802 = vmatpush.bf16.msra.mxu0 %v1241
    %1803 = vmatpush.bf16.msra.mxu0 %v1209
    %1804 = vmatpush.bf16.msra.mxu0 %v1177
    %1805 = vmatmul.bf16.gmra.mxu0 %v71
    %v1806 = vpop.f32.mrf.mxu0
    %v1807 = vadd.f32 %v345, %v1806
    %v1808 = vpop.f32.mrf.mxu0
    %1809 = vdwg.mxu0
    %1810 = vmatpush.bf16.msra.mxu0 %v1402
    %1811 = vmatpush.bf16.msra.mxu0 %v1370
    %1812 = vmatpush.bf16.msra.mxu0 %v1338
    %1813 = vmatpush.bf16.msra.mxu0 %v1306
    %1814 = vmatpush.bf16.msra.mxu0 %v1274
    %1815 = vmatpush.bf16.msra.mxu0 %v1242
    %1816 = vmatpush.bf16.msra.mxu0 %v1210
    %1817 = vmatpush.bf16.msra.mxu0 %v1178
    %1818 = vmatmul.bf16.gmra.mxu0 %v71
    %v1819 = vpop.f32.mrf.mxu0
    %v1820 = vadd.f32 %v346, %v1819
    %v1821 = vpop.f32.mrf.mxu0
    %1822 = vdwg.mxu0
    %1823 = vmatpush.bf16.msra.mxu0 %v1403
    %1824 = vmatpush.bf16.msra.mxu0 %v1371
    %1825 = vmatpush.bf16.msra.mxu0 %v1339
    %1826 = vmatpush.bf16.msra.mxu0 %v1307
    %1827 = vmatpush.bf16.msra.mxu0 %v1275
    %1828 = vmatpush.bf16.msra.mxu0 %v1243
    %1829 = vmatpush.bf16.msra.mxu0 %v1211
    %1830 = vmatpush.bf16.msra.mxu0 %v1179
    %1831 = vmatmul.bf16.gmra.mxu0 %v71
    %v1832 = vpop.f32.mrf.mxu0
    %v1833 = vadd.f32 %v347, %v1832
    %v1834 = vpop.f32.mrf.mxu0
    %1835 = vdwg.mxu0
    %1836 = vmatpush.bf16.msra.mxu0 %v1404
    %1837 = vmatpush.bf16.msra.mxu0 %v1372
    %1838 = vmatpush.bf16.msra.mxu0 %v1340
    %1839 = vmatpush.bf16.msra.mxu0 %v1308
    %1840 = vmatpush.bf16.msra.mxu0 %v1276
    %1841 = vmatpush.bf16.msra.mxu0 %v1244
    %1842 = vmatpush.bf16.msra.mxu0 %v1212
    %1843 = vmatpush.bf16.msra.mxu0 %v1180
    %1844 = vmatmul.bf16.gmra.mxu0 %v71
    %v1845 = vpop.f32.mrf.mxu0
    %v1846 = vadd.f32 %v348, %v1845
    %v1847 = vpop.f32.mrf.mxu0
    %1848 = vdwg.mxu0
    %1849 = vmatpush.bf16.msra.mxu0 %v1405
    %1850 = vmatpush.bf16.msra.mxu0 %v1373
    %1851 = vmatpush.bf16.msra.mxu0 %v1341
    %1852 = vmatpush.bf16.msra.mxu0 %v1309
    %1853 = vmatpush.bf16.msra.mxu0 %v1277
    %1854 = vmatpush.bf16.msra.mxu0 %v1245
    %1855 = vmatpush.bf16.msra.mxu0 %v1213
    %1856 = vmatpush.bf16.msra.mxu0 %v1181
    %1857 = vmatmul.bf16.gmra.mxu0 %v71
    %v1858 = vpop.f32.mrf.mxu0
    %v1859 = vadd.f32 %v349, %v1858
    %v1860 = vpop.f32.mrf.mxu0
    %1861 = vdwg.mxu0
    %1862 = vmatpush.bf16.msra.mxu0 %v1406
    %1863 = vmatpush.bf16.msra.mxu0 %v1374
    %1864 = vmatpush.bf16.msra.mxu0 %v1342
    %1865 = vmatpush.bf16.msra.mxu0 %v1310
    %1866 = vmatpush.bf16.msra.mxu0 %v1278
    %1867 = vmatpush.bf16.msra.mxu0 %v1246
    %1868 = vmatpush.bf16.msra.mxu0 %v1214
    %1869 = vmatpush.bf16.msra.mxu0 %v1182
    %1870 = vmatmul.bf16.gmra.mxu0 %v71
    %v1871 = vpop.f32.mrf.mxu0
    %v1872 = vadd.f32 %v350, %v1871
    %v1873 = vpop.f32.mrf.mxu0
    %1874 = vdwg.mxu0
    %1875 = vmatpush.bf16.msra.mxu0 %v1407
    %1876 = vmatpush.bf16.msra.mxu0 %v1375
    %1877 = vmatpush.bf16.msra.mxu0 %v1343
    %1878 = vmatpush.bf16.msra.mxu0 %v1311
    %1879 = vmatpush.bf16.msra.mxu0 %v1279
    %1880 = vmatpush.bf16.msra.mxu0 %v1247
    %1881 = vmatpush.bf16.msra.mxu0 %v1215
    %1882 = vmatpush.bf16.msra.mxu0 %v1183
    %1883 = vmatmul.bf16.gmra.mxu0 %v71
    %v1884 = vpop.f32.mrf.mxu0
    %v1885 = vadd.f32 %v351, %v1884
    %v1886 = vpop.f32.mrf.mxu0
    %1887 = vdwg.mxu0
    %1888 = vmatpush.bf16.msra.mxu0 %v1408
    %1889 = vmatpush.bf16.msra.mxu0 %v1376
    %1890 = vmatpush.bf16.msra.mxu0 %v1344
    %1891 = vmatpush.bf16.msra.mxu0 %v1312
    %1892 = vmatpush.bf16.msra.mxu0 %v1280
    %1893 = vmatpush.bf16.msra.mxu0 %v1248
    %1894 = vmatpush.bf16.msra.mxu0 %v1216
    %1895 = vmatpush.bf16.msra.mxu0 %v1184
    %1896 = vmatmul.bf16.gmra.mxu0 %v71
    %v1897 = vpop.f32.mrf.mxu0
    %v1898 = vadd.f32 %v352, %v1897
    %v1899 = vpop.f32.mrf.mxu0
    %1900 = vdwg.mxu0
    %1901 = vmatpush.bf16.msra.mxu0 %v1409
    %1902 = vmatpush.bf16.msra.mxu0 %v1377
    %1903 = vmatpush.bf16.msra.mxu0 %v1345
    %1904 = vmatpush.bf16.msra.mxu0 %v1313
    %1905 = vmatpush.bf16.msra.mxu0 %v1281
    %1906 = vmatpush.bf16.msra.mxu0 %v1249
    %1907 = vmatpush.bf16.msra.mxu0 %v1217
    %1908 = vmatpush.bf16.msra.mxu0 %v1185
    %1909 = vmatmul.bf16.gmra.mxu0 %v71
    %v1910 = vpop.f32.mrf.mxu0
    %v1911 = vadd.f32 %v353, %v1910
    %v1912 = vpop.f32.mrf.mxu0
    %1913 = vdwg.mxu0
    %1914 = vmatpush.bf16.msra.mxu0 %v1410
    %1915 = vmatpush.bf16.msra.mxu0 %v1378
    %1916 = vmatpush.bf16.msra.mxu0 %v1346
    %1917 = vmatpush.bf16.msra.mxu0 %v1314
    %1918 = vmatpush.bf16.msra.mxu0 %v1282
    %1919 = vmatpush.bf16.msra.mxu0 %v1250
    %1920 = vmatpush.bf16.msra.mxu0 %v1218
    %1921 = vmatpush.bf16.msra.mxu0 %v1186
    %1922 = vmatmul.bf16.gmra.mxu0 %v71
    %v1923 = vpop.f32.mrf.mxu0
    %v1924 = vadd.f32 %v354, %v1923
    %v1925 = vpop.f32.mrf.mxu0
    %1926 = vdwg.mxu0
    %1927 = vmatpush.bf16.msra.mxu0 %v1411
    %1928 = vmatpush.bf16.msra.mxu0 %v1379
    %1929 = vmatpush.bf16.msra.mxu0 %v1347
    %1930 = vmatpush.bf16.msra.mxu0 %v1315
    %1931 = vmatpush.bf16.msra.mxu0 %v1283
    %1932 = vmatpush.bf16.msra.mxu0 %v1251
    %1933 = vmatpush.bf16.msra.mxu0 %v1219
    %1934 = vmatpush.bf16.msra.mxu0 %v1187
    %1935 = vmatmul.bf16.gmra.mxu0 %v71
    %v1936 = vpop.f32.mrf.mxu0
    %v1937 = vadd.f32 %v355, %v1936
    %v1938 = vpop.f32.mrf.mxu0
    %1939 = vdwg.mxu0
    %1940 = vmatpush.bf16.msra.mxu0 %v1412
    %1941 = vmatpush.bf16.msra.mxu0 %v1380
    %1942 = vmatpush.bf16.msra.mxu0 %v1348
    %1943 = vmatpush.bf16.msra.mxu0 %v1316
    %1944 = vmatpush.bf16.msra.mxu0 %v1284
    %1945 = vmatpush.bf16.msra.mxu0 %v1252
    %1946 = vmatpush.bf16.msra.mxu0 %v1220
    %1947 = vmatpush.bf16.msra.mxu0 %v1188
    %1948 = vmatmul.bf16.gmra.mxu0 %v71
    %v1949 = vpop.f32.mrf.mxu0
    %v1950 = vadd.f32 %v356, %v1949
    %v1951 = vpop.f32.mrf.mxu0
    %1952 = vdwg.mxu0
    %1953 = vmatpush.bf16.msra.mxu0 %v1413
    %1954 = vmatpush.bf16.msra.mxu0 %v1381
    %1955 = vmatpush.bf16.msra.mxu0 %v1349
    %1956 = vmatpush.bf16.msra.mxu0 %v1317
    %1957 = vmatpush.bf16.msra.mxu0 %v1285
    %1958 = vmatpush.bf16.msra.mxu0 %v1253
    %1959 = vmatpush.bf16.msra.mxu0 %v1221
    %1960 = vmatpush.bf16.msra.mxu0 %v1189
    %1961 = vmatmul.bf16.gmra.mxu0 %v71
    %v1962 = vpop.f32.mrf.mxu0
    %v1963 = vadd.f32 %v357, %v1962
    %v1964 = vpop.f32.mrf.mxu0
    %1965 = vdwg.mxu0
    %1966 = vmatpush.bf16.msra.mxu0 %v1414
    %1967 = vmatpush.bf16.msra.mxu0 %v1382
    %1968 = vmatpush.bf16.msra.mxu0 %v1350
    %1969 = vmatpush.bf16.msra.mxu0 %v1318
    %1970 = vmatpush.bf16.msra.mxu0 %v1286
    %1971 = vmatpush.bf16.msra.mxu0 %v1254
    %1972 = vmatpush.bf16.msra.mxu0 %v1222
    %1973 = vmatpush.bf16.msra.mxu0 %v1190
    %1974 = vmatmul.bf16.gmra.mxu0 %v71
    %v1975 = vpop.f32.mrf.mxu0
    %v1976 = vadd.f32 %v358, %v1975
    %v1977 = vpop.f32.mrf.mxu0
    %1978 = vdwg.mxu0
    %1979 = vmatpush.bf16.msra.mxu0 %v1415
    %1980 = vmatpush.bf16.msra.mxu0 %v1383
    %1981 = vmatpush.bf16.msra.mxu0 %v1351
    %1982 = vmatpush.bf16.msra.mxu0 %v1319
    %1983 = vmatpush.bf16.msra.mxu0 %v1287
    %1984 = vmatpush.bf16.msra.mxu0 %v1255
    %1985 = vmatpush.bf16.msra.mxu0 %v1223
    %1986 = vmatpush.bf16.msra.mxu0 %v1191
    %1987 = vmatmul.bf16.gmra.mxu0 %v71
    %v1988 = vpop.f32.mrf.mxu0
    %v1989 = vadd.f32 %v359, %v1988
    %v1990 = vpop.f32.mrf.mxu0
    %1991 = vdwg.mxu0
    %1992 = vmatpush.bf16.msra.mxu0 %v1416
    %1993 = vmatpush.bf16.msra.mxu0 %v1384
    %1994 = vmatpush.bf16.msra.mxu0 %v1352
    %1995 = vmatpush.bf16.msra.mxu0 %v1320
    %1996 = vmatpush.bf16.msra.mxu0 %v1288
    %1997 = vmatpush.bf16.msra.mxu0 %v1256
    %1998 = vmatpush.bf16.msra.mxu0 %v1224
    %1999 = vmatpush.bf16.msra.mxu0 %v1192
    %2000 = vmatmul.bf16.gmra.mxu0 %v71
    %v2001 = vpop.f32.mrf.mxu0
    %v2002 = vadd.f32 %v360, %v2001
    %v2003 = vpop.f32.mrf.mxu0
    %2004 = vdwg.mxu0
    %2005 = vmatpush.bf16.msra.mxu0 %v1417
    %2006 = vmatpush.bf16.msra.mxu0 %v1385
    %2007 = vmatpush.bf16.msra.mxu0 %v1353
    %2008 = vmatpush.bf16.msra.mxu0 %v1321
    %2009 = vmatpush.bf16.msra.mxu0 %v1289
    %2010 = vmatpush.bf16.msra.mxu0 %v1257
    %2011 = vmatpush.bf16.msra.mxu0 %v1225
    %2012 = vmatpush.bf16.msra.mxu0 %v1193
    %2013 = vmatmul.bf16.gmra.mxu0 %v71
    %v2014 = vpop.f32.mrf.mxu0
    %v2015 = vadd.f32 %v361, %v2014
    %v2016 = vpop.f32.mrf.mxu0
    %2017 = vdwg.mxu0
    %2018 = vmatpush.bf16.msra.mxu0 %v1418
    %2019 = vmatpush.bf16.msra.mxu0 %v1386
    %2020 = vmatpush.bf16.msra.mxu0 %v1354
    %2021 = vmatpush.bf16.msra.mxu0 %v1322
    %2022 = vmatpush.bf16.msra.mxu0 %v1290
    %2023 = vmatpush.bf16.msra.mxu0 %v1258
    %2024 = vmatpush.bf16.msra.mxu0 %v1226
    %2025 = vmatpush.bf16.msra.mxu0 %v1194
    %2026 = vmatmul.bf16.gmra.mxu0 %v71
    %v2027 = vpop.f32.mrf.mxu0
    %v2028 = vadd.f32 %v362, %v2027
    %v2029 = vpop.f32.mrf.mxu0
    %2030 = vdwg.mxu0
    %2031 = vmatpush.bf16.msra.mxu0 %v1419
    %2032 = vmatpush.bf16.msra.mxu0 %v1387
    %2033 = vmatpush.bf16.msra.mxu0 %v1355
    %2034 = vmatpush.bf16.msra.mxu0 %v1323
    %2035 = vmatpush.bf16.msra.mxu0 %v1291
    %2036 = vmatpush.bf16.msra.mxu0 %v1259
    %2037 = vmatpush.bf16.msra.mxu0 %v1227
    %2038 = vmatpush.bf16.msra.mxu0 %v1195
    %2039 = vmatmul.bf16.gmra.mxu0 %v71
    %v2040 = vpop.f32.mrf.mxu0
    %v2041 = vadd.f32 %v363, %v2040
    %v2042 = vpop.f32.mrf.mxu0
    %2043 = vdwg.mxu0
    %2044 = vmatpush.bf16.msra.mxu0 %v1420
    %2045 = vmatpush.bf16.msra.mxu0 %v1388
    %2046 = vmatpush.bf16.msra.mxu0 %v1356
    %2047 = vmatpush.bf16.msra.mxu0 %v1324
    %2048 = vmatpush.bf16.msra.mxu0 %v1292
    %2049 = vmatpush.bf16.msra.mxu0 %v1260
    %2050 = vmatpush.bf16.msra.mxu0 %v1228
    %2051 = vmatpush.bf16.msra.mxu0 %v1196
    %2052 = vmatmul.bf16.gmra.mxu0 %v71
    %v2053 = vpop.f32.mrf.mxu0
    %v2054 = vadd.f32 %v364, %v2053
    %v2055 = vpop.f32.mrf.mxu0
    %2056 = vdwg.mxu0
    %2057 = vmatpush.bf16.msra.mxu0 %v1421
    %2058 = vmatpush.bf16.msra.mxu0 %v1389
    %2059 = vmatpush.bf16.msra.mxu0 %v1357
    %2060 = vmatpush.bf16.msra.mxu0 %v1325
    %2061 = vmatpush.bf16.msra.mxu0 %v1293
    %2062 = vmatpush.bf16.msra.mxu0 %v1261
    %2063 = vmatpush.bf16.msra.mxu0 %v1229
    %2064 = vmatpush.bf16.msra.mxu0 %v1197
    %2065 = vmatmul.bf16.gmra.mxu0 %v71
    %v2066 = vpop.f32.mrf.mxu0
    %v2067 = vadd.f32 %v365, %v2066
    %v2068 = vpop.f32.mrf.mxu0
    %2069 = vdwg.mxu0
    %2070 = vmatpush.bf16.msra.mxu0 %v1422
    %2071 = vmatpush.bf16.msra.mxu0 %v1390
    %2072 = vmatpush.bf16.msra.mxu0 %v1358
    %2073 = vmatpush.bf16.msra.mxu0 %v1326
    %2074 = vmatpush.bf16.msra.mxu0 %v1294
    %2075 = vmatpush.bf16.msra.mxu0 %v1262
    %2076 = vmatpush.bf16.msra.mxu0 %v1230
    %2077 = vmatpush.bf16.msra.mxu0 %v1198
    %2078 = vmatmul.bf16.gmra.mxu0 %v71
    %v2079 = vpop.f32.mrf.mxu0
    %v2080 = vadd.f32 %v366, %v2079
    %v2081 = vpop.f32.mrf.mxu0
    %2082 = vdwg.mxu0
    %2083 = vmatpush.bf16.msra.mxu0 %v1423
    %2084 = vmatpush.bf16.msra.mxu0 %v1391
    %2085 = vmatpush.bf16.msra.mxu0 %v1359
    %2086 = vmatpush.bf16.msra.mxu0 %v1327
    %2087 = vmatpush.bf16.msra.mxu0 %v1295
    %2088 = vmatpush.bf16.msra.mxu0 %v1263
    %2089 = vmatpush.bf16.msra.mxu0 %v1231
    %2090 = vmatpush.bf16.msra.mxu0 %v1199
    %2091 = vmatmul.bf16.gmra.mxu0 %v71
    %v2092 = vpop.f32.mrf.mxu0
    %v2093 = vadd.f32 %v367, %v2092
    %v2094 = vpop.f32.mrf.mxu0
    %2095 = vdwg.mxu0
    %vm2096 = vcmp.gt.f32.partialorder %v1690, 0.0
    %vm2097 = vcmp.gt.f32.partialorder %v1703, 0.0
    %vm2098 = vcmp.gt.f32.partialorder %v1716, 0.0
    %vm2099 = vcmp.gt.f32.partialorder %v1729, 0.0
    %vm2100 = vcmp.gt.f32.partialorder %v1742, 0.0
    %vm2101 = vcmp.gt.f32.partialorder %v1755, 0.0
    %vm2102 = vcmp.gt.f32.partialorder %v1768, 0.0
    %vm2103 = vcmp.gt.f32.partialorder %v1781, 0.0
    %vm2104 = vcmp.gt.f32.partialorder %v1794, 0.0
    %vm2105 = vcmp.gt.f32.partialorder %v1807, 0.0
    %vm2106 = vcmp.gt.f32.partialorder %v1820, 0.0
    %vm2107 = vcmp.gt.f32.partialorder %v1833, 0.0
    %vm2108 = vcmp.gt.f32.partialorder %v1846, 0.0
    %vm2109 = vcmp.gt.f32.partialorder %v1859, 0.0
    %vm2110 = vcmp.gt.f32.partialorder %v1872, 0.0
    %vm2111 = vcmp.gt.f32.partialorder %v1885, 0.0
    %vm2112 = vcmp.gt.f32.partialorder %v1898, 0.0
    %vm2113 = vcmp.gt.f32.partialorder %v1911, 0.0
    %vm2114 = vcmp.gt.f32.partialorder %v1924, 0.0
    %vm2115 = vcmp.gt.f32.partialorder %v1937, 0.0
    %vm2116 = vcmp.gt.f32.partialorder %v1950, 0.0
    %vm2117 = vcmp.gt.f32.partialorder %v1963, 0.0
    %vm2118 = vcmp.gt.f32.partialorder %v1976, 0.0
    %vm2119 = vcmp.gt.f32.partialorder %v1989, 0.0
    %vm2120 = vcmp.gt.f32.partialorder %v2002, 0.0
    %vm2121 = vcmp.gt.f32.partialorder %v2015, 0.0
    %vm2122 = vcmp.gt.f32.partialorder %v2028, 0.0
    %vm2123 = vcmp.gt.f32.partialorder %v2041, 0.0
    %vm2124 = vcmp.gt.f32.partialorder %v2054, 0.0
    %vm2125 = vcmp.gt.f32.partialorder %v2067, 0.0
    %vm2126 = vcmp.gt.f32.partialorder %v2080, 0.0
    %vm2127 = vcmp.gt.f32.partialorder %v2093, 0.0
    %v2128 = vmul.f32 %v1690, 0.2
    %v2129 = vmul.f32 %v1703, 0.2
    %v2130 = vmul.f32 %v1716, 0.2
    %v2131 = vmul.f32 %v1729, 0.2
    %v2132 = vmul.f32 %v1742, 0.2
    %v2133 = vmul.f32 %v1755, 0.2
    %v2134 = vmul.f32 %v1768, 0.2
    %v2135 = vmul.f32 %v1781, 0.2
    %v2136 = vmul.f32 %v1794, 0.2
    %v2137 = vmul.f32 %v1807, 0.2
    %v2138 = vmul.f32 %v1820, 0.2
    %v2139 = vmul.f32 %v1833, 0.2
    %v2140 = vmul.f32 %v1846, 0.2
    %v2141 = vmul.f32 %v1859, 0.2
    %v2142 = vmul.f32 %v1872, 0.2
    %v2143 = vmul.f32 %v1885, 0.2
    %v2144 = vmul.f32 %v1898, 0.2
    %v2145 = vmul.f32 %v1911, 0.2
    %v2146 = vmul.f32 %v1924, 0.2
    %v2147 = vmul.f32 %v1937, 0.2
    %v2148 = vmul.f32 %v1950, 0.2
    %v2149 = vmul.f32 %v1963, 0.2
    %v2150 = vmul.f32 %v1976, 0.2
    %v2151 = vmul.f32 %v1989, 0.2
    %v2152 = vmul.f32 %v2002, 0.2
    %v2153 = vmul.f32 %v2015, 0.2
    %v2154 = vmul.f32 %v2028, 0.2
    %v2155 = vmul.f32 %v2041, 0.2
    %v2156 = vmul.f32 %v2054, 0.2
    %v2157 = vmul.f32 %v2067, 0.2
    %v2158 = vmul.f32 %v2080, 0.2
    %v2159 = vmul.f32 %v2093, 0.2
    %v2160 = vsel %vm2096, %v1690, %v2128
    %v2161 = vsel %vm2097, %v1703, %v2129
    %v2162 = vsel %vm2098, %v1716, %v2130
    %v2163 = vsel %vm2099, %v1729, %v2131
    %v2164 = vsel %vm2100, %v1742, %v2132
    %v2165 = vsel %vm2101, %v1755, %v2133
    %v2166 = vsel %vm2102, %v1768, %v2134
    %v2167 = vsel %vm2103, %v1781, %v2135
    %v2168 = vsel %vm2104, %v1794, %v2136
    %v2169 = vsel %vm2105, %v1807, %v2137
    %v2170 = vsel %vm2106, %v1820, %v2138
    %v2171 = vsel %vm2107, %v1833, %v2139
    %v2172 = vsel %vm2108, %v1846, %v2140
    %v2173 = vsel %vm2109, %v1859, %v2141
    %v2174 = vsel %vm2110, %v1872, %v2142
    %v2175 = vsel %vm2111, %v1885, %v2143
    %v2176 = vsel %vm2112, %v1898, %v2144
    %v2177 = vsel %vm2113, %v1911, %v2145
    %v2178 = vsel %vm2114, %v1924, %v2146
    %v2179 = vsel %vm2115, %v1937, %v2147
    %v2180 = vsel %vm2116, %v1950, %v2148
    %v2181 = vsel %vm2117, %v1963, %v2149
    %v2182 = vsel %vm2118, %v1976, %v2150
    %v2183 = vsel %vm2119, %v1989, %v2151
    %v2184 = vsel %vm2120, %v2002, %v2152
    %v2185 = vsel %vm2121, %v2015, %v2153
    %v2186 = vsel %vm2122, %v2028, %v2154
    %v2187 = vsel %vm2123, %v2041, %v2155
    %v2188 = vsel %vm2124, %v2054, %v2156
    %v2189 = vsel %vm2125, %v2067, %v2157
    %v2190 = vsel %vm2126, %v2080, %v2158
    %v2191 = vsel %vm2127, %v2093, %v2159
    %v2192 = vld [vmem:[#allocation2] sm:$0xff]
    %v2193 = vpack.c.bf16 %v2160, %v2160
    %v2194 = vpack.c.bf16 %v2161, %v2161
    %v2195 = vpack.c.bf16 %v2162, %v2162
    %v2196 = vpack.c.bf16 %v2163, %v2163
    %v2197 = vpack.c.bf16 %v2164, %v2164
    %v2198 = vpack.c.bf16 %v2165, %v2165
    %v2199 = vpack.c.bf16 %v2166, %v2166
    %v2200 = vpack.c.bf16 %v2167, %v2167
    %v2201 = vpack.c.bf16 %v2168, %v2168
    %v2202 = vpack.c.bf16 %v2169, %v2169
    %v2203 = vpack.c.bf16 %v2170, %v2170
    %v2204 = vpack.c.bf16 %v2171, %v2171
    %v2205 = vpack.c.bf16 %v2172, %v2172
    %v2206 = vpack.c.bf16 %v2173, %v2173
    %v2207 = vpack.c.bf16 %v2174, %v2174
    %v2208 = vpack.c.bf16 %v2175, %v2175
    %v2209 = vpack.c.bf16 %v2176, %v2176
    %v2210 = vpack.c.bf16 %v2177, %v2177
    %v2211 = vpack.c.bf16 %v2178, %v2178
    %v2212 = vpack.c.bf16 %v2179, %v2179
    %v2213 = vpack.c.bf16 %v2180, %v2180
    %v2214 = vpack.c.bf16 %v2181, %v2181
    %v2215 = vpack.c.bf16 %v2182, %v2182
    %v2216 = vpack.c.bf16 %v2183, %v2183
    %v2217 = vpack.c.bf16 %v2184, %v2184
    %v2218 = vpack.c.bf16 %v2185, %v2185
    %v2219 = vpack.c.bf16 %v2186, %v2186
    %v2220 = vpack.c.bf16 %v2187, %v2187
    %v2221 = vpack.c.bf16 %v2188, %v2188
    %v2222 = vpack.c.bf16 %v2189, %v2189
    %v2223 = vpack.c.bf16 %v2190, %v2190
    %v2224 = vpack.c.bf16 %v2191, %v2191
    %v2225 = vld [vmem:[#allocation8] sm:$0xf]
    %v2226 = vld [vmem:[#allocation8 + $0x4] sm:$0xf]
    %v2227 = vld [vmem:[#allocation8 + $0x8] sm:$0xf]
    %v2228 = vld [vmem:[#allocation8 + $0xc] sm:$0xf]
    %v2229 = vld [vmem:[#allocation8 + $0x10] sm:$0xf]
    %v2230 = vld [vmem:[#allocation8 + $0x14] sm:$0xf]
    %v2231 = vld [vmem:[#allocation8 + $0x18] sm:$0xf]
    %v2232 = vld [vmem:[#allocation8 + $0x1c] sm:$0xf]
    %v2233 = vld [vmem:[#allocation8 + $0x20] sm:$0xf]
    %v2234 = vld [vmem:[#allocation8 + $0x24] sm:$0xf]
    %v2235 = vld [vmem:[#allocation8 + $0x28] sm:$0xf]
    %v2236 = vld [vmem:[#allocation8 + $0x2c] sm:$0xf]
    %v2237 = vld [vmem:[#allocation8 + $0x30] sm:$0xf]
    %v2238 = vld [vmem:[#allocation8 + $0x34] sm:$0xf]
    %v2239 = vld [vmem:[#allocation8 + $0x38] sm:$0xf]
    %v2240 = vld [vmem:[#allocation8 + $0x3c] sm:$0xf]
    %v2241 = vld [vmem:[#allocation8 + $0x40] sm:$0xf]
    %v2242 = vld [vmem:[#allocation8 + $0x44] sm:$0xf]
    %v2243 = vld [vmem:[#allocation8 + $0x48] sm:$0xf]
    %v2244 = vld [vmem:[#allocation8 + $0x4c] sm:$0xf]
    %v2245 = vld [vmem:[#allocation8 + $0x50] sm:$0xf]
    %v2246 = vld [vmem:[#allocation8 + $0x54] sm:$0xf]
    %v2247 = vld [vmem:[#allocation8 + $0x58] sm:$0xf]
    %v2248 = vld [vmem:[#allocation8 + $0x5c] sm:$0xf]
    %v2249 = vld [vmem:[#allocation8 + $0x60] sm:$0xf]
    %v2250 = vld [vmem:[#allocation8 + $0x64] sm:$0xf]
    %v2251 = vld [vmem:[#allocation8 + $0x68] sm:$0xf]
    %v2252 = vld [vmem:[#allocation8 + $0x6c] sm:$0xf]
    %v2253 = vld [vmem:[#allocation8 + $0x70] sm:$0xf]
    %v2254 = vld [vmem:[#allocation8 + $0x74] sm:$0xf]
    %v2255 = vld [vmem:[#allocation8 + $0x78] sm:$0xf]
    %v2256 = vld [vmem:[#allocation8 + $0x7c] sm:$0xf]
    %v2257 = vld [vmem:[#allocation8 + $0x80] sm:$0xf]
    %v2258 = vld [vmem:[#allocation8 + $0x84] sm:$0xf]
    %v2259 = vld [vmem:[#allocation8 + $0x88] sm:$0xf]
    %v2260 = vld [vmem:[#allocation8 + $0x8c] sm:$0xf]
    %v2261 = vld [vmem:[#allocation8 + $0x90] sm:$0xf]
    %v2262 = vld [vmem:[#allocation8 + $0x94] sm:$0xf]
    %v2263 = vld [vmem:[#allocation8 + $0x98] sm:$0xf]
    %v2264 = vld [vmem:[#allocation8 + $0x9c] sm:$0xf]
    %v2265 = vld [vmem:[#allocation8 + $0xa0] sm:$0xf]
    %v2266 = vld [vmem:[#allocation8 + $0xa4] sm:$0xf]
    %v2267 = vld [vmem:[#allocation8 + $0xa8] sm:$0xf]
    %v2268 = vld [vmem:[#allocation8 + $0xac] sm:$0xf]
    %v2269 = vld [vmem:[#allocation8 + $0xb0] sm:$0xf]
    %v2270 = vld [vmem:[#allocation8 + $0xb4] sm:$0xf]
    %v2271 = vld [vmem:[#allocation8 + $0xb8] sm:$0xf]
    %v2272 = vld [vmem:[#allocation8 + $0xbc] sm:$0xf]
    %v2273 = vld [vmem:[#allocation8 + $0xc0] sm:$0xf]
    %v2274 = vld [vmem:[#allocation8 + $0xc4] sm:$0xf]
    %v2275 = vld [vmem:[#allocation8 + $0xc8] sm:$0xf]
    %v2276 = vld [vmem:[#allocation8 + $0xcc] sm:$0xf]
    %v2277 = vld [vmem:[#allocation8 + $0xd0] sm:$0xf]
    %v2278 = vld [vmem:[#allocation8 + $0xd4] sm:$0xf]
    %v2279 = vld [vmem:[#allocation8 + $0xd8] sm:$0xf]
    %v2280 = vld [vmem:[#allocation8 + $0xdc] sm:$0xf]
    %v2281 = vld [vmem:[#allocation8 + $0xe0] sm:$0xf]
    %v2282 = vld [vmem:[#allocation8 + $0xe4] sm:$0xf]
    %v2283 = vld [vmem:[#allocation8 + $0xe8] sm:$0xf]
    %v2284 = vld [vmem:[#allocation8 + $0xec] sm:$0xf]
    %v2285 = vld [vmem:[#allocation8 + $0xf0] sm:$0xf]
    %v2286 = vld [vmem:[#allocation8 + $0xf4] sm:$0xf]
    %v2287 = vld [vmem:[#allocation8 + $0xf8] sm:$0xf]
    %v2288 = vld [vmem:[#allocation8 + $0xfc] sm:$0xf]
    %v2289 = vld [vmem:[#allocation8 + $0x100] sm:$0xf]
    %v2290 = vld [vmem:[#allocation8 + $0x104] sm:$0xf]
    %v2291 = vld [vmem:[#allocation8 + $0x108] sm:$0xf]
    %v2292 = vld [vmem:[#allocation8 + $0x10c] sm:$0xf]
    %v2293 = vld [vmem:[#allocation8 + $0x110] sm:$0xf]
    %v2294 = vld [vmem:[#allocation8 + $0x114] sm:$0xf]
    %v2295 = vld [vmem:[#allocation8 + $0x118] sm:$0xf]
    %v2296 = vld [vmem:[#allocation8 + $0x11c] sm:$0xf]
    %v2297 = vld [vmem:[#allocation8 + $0x120] sm:$0xf]
    %v2298 = vld [vmem:[#allocation8 + $0x124] sm:$0xf]
    %v2299 = vld [vmem:[#allocation8 + $0x128] sm:$0xf]
    %v2300 = vld [vmem:[#allocation8 + $0x12c] sm:$0xf]
    %v2301 = vld [vmem:[#allocation8 + $0x130] sm:$0xf]
    %v2302 = vld [vmem:[#allocation8 + $0x134] sm:$0xf]
    %v2303 = vld [vmem:[#allocation8 + $0x138] sm:$0xf]
    %v2304 = vld [vmem:[#allocation8 + $0x13c] sm:$0xf]
    %v2305 = vld [vmem:[#allocation8 + $0x140] sm:$0xf]
    %v2306 = vld [vmem:[#allocation8 + $0x144] sm:$0xf]
    %v2307 = vld [vmem:[#allocation8 + $0x148] sm:$0xf]
    %v2308 = vld [vmem:[#allocation8 + $0x14c] sm:$0xf]
    %v2309 = vld [vmem:[#allocation8 + $0x150] sm:$0xf]
    %v2310 = vld [vmem:[#allocation8 + $0x154] sm:$0xf]
    %v2311 = vld [vmem:[#allocation8 + $0x158] sm:$0xf]
    %v2312 = vld [vmem:[#allocation8 + $0x15c] sm:$0xf]
    %v2313 = vld [vmem:[#allocation8 + $0x160] sm:$0xf]
    %v2314 = vld [vmem:[#allocation8 + $0x164] sm:$0xf]
    %v2315 = vld [vmem:[#allocation8 + $0x168] sm:$0xf]
    %v2316 = vld [vmem:[#allocation8 + $0x16c] sm:$0xf]
    %v2317 = vld [vmem:[#allocation8 + $0x170] sm:$0xf]
    %v2318 = vld [vmem:[#allocation8 + $0x174] sm:$0xf]
    %v2319 = vld [vmem:[#allocation8 + $0x178] sm:$0xf]
    %v2320 = vld [vmem:[#allocation8 + $0x17c] sm:$0xf]
    %v2321 = vld [vmem:[#allocation8 + $0x180] sm:$0xf]
    %v2322 = vld [vmem:[#allocation8 + $0x184] sm:$0xf]
    %v2323 = vld [vmem:[#allocation8 + $0x188] sm:$0xf]
    %v2324 = vld [vmem:[#allocation8 + $0x18c] sm:$0xf]
    %v2325 = vld [vmem:[#allocation8 + $0x190] sm:$0xf]
    %v2326 = vld [vmem:[#allocation8 + $0x194] sm:$0xf]
    %v2327 = vld [vmem:[#allocation8 + $0x198] sm:$0xf]
    %v2328 = vld [vmem:[#allocation8 + $0x19c] sm:$0xf]
    %v2329 = vld [vmem:[#allocation8 + $0x1a0] sm:$0xf]
    %v2330 = vld [vmem:[#allocation8 + $0x1a4] sm:$0xf]
    %v2331 = vld [vmem:[#allocation8 + $0x1a8] sm:$0xf]
    %v2332 = vld [vmem:[#allocation8 + $0x1ac] sm:$0xf]
    %v2333 = vld [vmem:[#allocation8 + $0x1b0] sm:$0xf]
    %v2334 = vld [vmem:[#allocation8 + $0x1b4] sm:$0xf]
    %v2335 = vld [vmem:[#allocation8 + $0x1b8] sm:$0xf]
    %v2336 = vld [vmem:[#allocation8 + $0x1bc] sm:$0xf]
    %v2337 = vld [vmem:[#allocation8 + $0x1c0] sm:$0xf]
    %v2338 = vld [vmem:[#allocation8 + $0x1c4] sm:$0xf]
    %v2339 = vld [vmem:[#allocation8 + $0x1c8] sm:$0xf]
    %v2340 = vld [vmem:[#allocation8 + $0x1cc] sm:$0xf]
    %v2341 = vld [vmem:[#allocation8 + $0x1d0] sm:$0xf]
    %v2342 = vld [vmem:[#allocation8 + $0x1d4] sm:$0xf]
    %v2343 = vld [vmem:[#allocation8 + $0x1d8] sm:$0xf]
    %v2344 = vld [vmem:[#allocation8 + $0x1dc] sm:$0xf]
    %v2345 = vld [vmem:[#allocation8 + $0x1e0] sm:$0xf]
    %v2346 = vld [vmem:[#allocation8 + $0x1e4] sm:$0xf]
    %v2347 = vld [vmem:[#allocation8 + $0x1e8] sm:$0xf]
    %v2348 = vld [vmem:[#allocation8 + $0x1ec] sm:$0xf]
    %v2349 = vld [vmem:[#allocation8 + $0x1f0] sm:$0xf]
    %v2350 = vld [vmem:[#allocation8 + $0x1f4] sm:$0xf]
    %v2351 = vld [vmem:[#allocation8 + $0x1f8] sm:$0xf]
    %v2352 = vld [vmem:[#allocation8 + $0x1fc] sm:$0xf]
    %v2353 = vld [vmem:[#allocation8 + $0x200] sm:$0xf]
    %v2354 = vld [vmem:[#allocation8 + $0x204] sm:$0xf]
    %v2355 = vld [vmem:[#allocation8 + $0x208] sm:$0xf]
    %v2356 = vld [vmem:[#allocation8 + $0x20c] sm:$0xf]
    %v2357 = vld [vmem:[#allocation8 + $0x210] sm:$0xf]
    %v2358 = vld [vmem:[#allocation8 + $0x214] sm:$0xf]
    %v2359 = vld [vmem:[#allocation8 + $0x218] sm:$0xf]
    %v2360 = vld [vmem:[#allocation8 + $0x21c] sm:$0xf]
    %v2361 = vld [vmem:[#allocation8 + $0x220] sm:$0xf]
    %v2362 = vld [vmem:[#allocation8 + $0x224] sm:$0xf]
    %v2363 = vld [vmem:[#allocation8 + $0x228] sm:$0xf]
    %v2364 = vld [vmem:[#allocation8 + $0x22c] sm:$0xf]
    %v2365 = vld [vmem:[#allocation8 + $0x230] sm:$0xf]
    %v2366 = vld [vmem:[#allocation8 + $0x234] sm:$0xf]
    %v2367 = vld [vmem:[#allocation8 + $0x238] sm:$0xf]
    %v2368 = vld [vmem:[#allocation8 + $0x23c] sm:$0xf]
    %v2369 = vld [vmem:[#allocation8 + $0x240] sm:$0xf]
    %v2370 = vld [vmem:[#allocation8 + $0x244] sm:$0xf]
    %v2371 = vld [vmem:[#allocation8 + $0x248] sm:$0xf]
    %v2372 = vld [vmem:[#allocation8 + $0x24c] sm:$0xf]
    %v2373 = vld [vmem:[#allocation8 + $0x250] sm:$0xf]
    %v2374 = vld [vmem:[#allocation8 + $0x254] sm:$0xf]
    %v2375 = vld [vmem:[#allocation8 + $0x258] sm:$0xf]
    %v2376 = vld [vmem:[#allocation8 + $0x25c] sm:$0xf]
    %v2377 = vld [vmem:[#allocation8 + $0x260] sm:$0xf]
    %v2378 = vld [vmem:[#allocation8 + $0x264] sm:$0xf]
    %v2379 = vld [vmem:[#allocation8 + $0x268] sm:$0xf]
    %v2380 = vld [vmem:[#allocation8 + $0x26c] sm:$0xf]
    %v2381 = vld [vmem:[#allocation8 + $0x270] sm:$0xf]
    %v2382 = vld [vmem:[#allocation8 + $0x274] sm:$0xf]
    %v2383 = vld [vmem:[#allocation8 + $0x278] sm:$0xf]
    %v2384 = vld [vmem:[#allocation8 + $0x27c] sm:$0xf]
    %v2385 = vld [vmem:[#allocation8 + $0x280] sm:$0xf]
    %v2386 = vld [vmem:[#allocation8 + $0x284] sm:$0xf]
    %v2387 = vld [vmem:[#allocation8 + $0x288] sm:$0xf]
    %v2388 = vld [vmem:[#allocation8 + $0x28c] sm:$0xf]
    %v2389 = vld [vmem:[#allocation8 + $0x290] sm:$0xf]
    %v2390 = vld [vmem:[#allocation8 + $0x294] sm:$0xf]
    %v2391 = vld [vmem:[#allocation8 + $0x298] sm:$0xf]
    %v2392 = vld [vmem:[#allocation8 + $0x29c] sm:$0xf]
    %v2393 = vld [vmem:[#allocation8 + $0x2a0] sm:$0xf]
    %v2394 = vld [vmem:[#allocation8 + $0x2a4] sm:$0xf]
    %v2395 = vld [vmem:[#allocation8 + $0x2a8] sm:$0xf]
    %v2396 = vld [vmem:[#allocation8 + $0x2ac] sm:$0xf]
    %v2397 = vld [vmem:[#allocation8 + $0x2b0] sm:$0xf]
    %v2398 = vld [vmem:[#allocation8 + $0x2b4] sm:$0xf]
    %v2399 = vld [vmem:[#allocation8 + $0x2b8] sm:$0xf]
    %v2400 = vld [vmem:[#allocation8 + $0x2bc] sm:$0xf]
    %v2401 = vld [vmem:[#allocation8 + $0x2c0] sm:$0xf]
    %v2402 = vld [vmem:[#allocation8 + $0x2c4] sm:$0xf]
    %v2403 = vld [vmem:[#allocation8 + $0x2c8] sm:$0xf]
    %v2404 = vld [vmem:[#allocation8 + $0x2cc] sm:$0xf]
    %v2405 = vld [vmem:[#allocation8 + $0x2d0] sm:$0xf]
    %v2406 = vld [vmem:[#allocation8 + $0x2d4] sm:$0xf]
    %v2407 = vld [vmem:[#allocation8 + $0x2d8] sm:$0xf]
    %v2408 = vld [vmem:[#allocation8 + $0x2dc] sm:$0xf]
    %v2409 = vld [vmem:[#allocation8 + $0x2e0] sm:$0xf]
    %v2410 = vld [vmem:[#allocation8 + $0x2e4] sm:$0xf]
    %v2411 = vld [vmem:[#allocation8 + $0x2e8] sm:$0xf]
    %v2412 = vld [vmem:[#allocation8 + $0x2ec] sm:$0xf]
    %v2413 = vld [vmem:[#allocation8 + $0x2f0] sm:$0xf]
    %v2414 = vld [vmem:[#allocation8 + $0x2f4] sm:$0xf]
    %v2415 = vld [vmem:[#allocation8 + $0x2f8] sm:$0xf]
    %v2416 = vld [vmem:[#allocation8 + $0x2fc] sm:$0xf]
    %v2417 = vld [vmem:[#allocation8 + $0x300] sm:$0xf]
    %v2418 = vld [vmem:[#allocation8 + $0x304] sm:$0xf]
    %v2419 = vld [vmem:[#allocation8 + $0x308] sm:$0xf]
    %v2420 = vld [vmem:[#allocation8 + $0x30c] sm:$0xf]
    %v2421 = vld [vmem:[#allocation8 + $0x310] sm:$0xf]
    %v2422 = vld [vmem:[#allocation8 + $0x314] sm:$0xf]
    %v2423 = vld [vmem:[#allocation8 + $0x318] sm:$0xf]
    %v2424 = vld [vmem:[#allocation8 + $0x31c] sm:$0xf]
    %v2425 = vld [vmem:[#allocation8 + $0x320] sm:$0xf]
    %v2426 = vld [vmem:[#allocation8 + $0x324] sm:$0xf]
    %v2427 = vld [vmem:[#allocation8 + $0x328] sm:$0xf]
    %v2428 = vld [vmem:[#allocation8 + $0x32c] sm:$0xf]
    %v2429 = vld [vmem:[#allocation8 + $0x330] sm:$0xf]
    %v2430 = vld [vmem:[#allocation8 + $0x334] sm:$0xf]
    %v2431 = vld [vmem:[#allocation8 + $0x338] sm:$0xf]
    %v2432 = vld [vmem:[#allocation8 + $0x33c] sm:$0xf]
    %v2433 = vld [vmem:[#allocation8 + $0x340] sm:$0xf]
    %v2434 = vld [vmem:[#allocation8 + $0x344] sm:$0xf]
    %v2435 = vld [vmem:[#allocation8 + $0x348] sm:$0xf]
    %v2436 = vld [vmem:[#allocation8 + $0x34c] sm:$0xf]
    %v2437 = vld [vmem:[#allocation8 + $0x350] sm:$0xf]
    %v2438 = vld [vmem:[#allocation8 + $0x354] sm:$0xf]
    %v2439 = vld [vmem:[#allocation8 + $0x358] sm:$0xf]
    %v2440 = vld [vmem:[#allocation8 + $0x35c] sm:$0xf]
    %v2441 = vld [vmem:[#allocation8 + $0x360] sm:$0xf]
    %v2442 = vld [vmem:[#allocation8 + $0x364] sm:$0xf]
    %v2443 = vld [vmem:[#allocation8 + $0x368] sm:$0xf]
    %v2444 = vld [vmem:[#allocation8 + $0x36c] sm:$0xf]
    %v2445 = vld [vmem:[#allocation8 + $0x370] sm:$0xf]
    %v2446 = vld [vmem:[#allocation8 + $0x374] sm:$0xf]
    %v2447 = vld [vmem:[#allocation8 + $0x378] sm:$0xf]
    %v2448 = vld [vmem:[#allocation8 + $0x37c] sm:$0xf]
    %v2449 = vld [vmem:[#allocation8 + $0x380] sm:$0xf]
    %v2450 = vld [vmem:[#allocation8 + $0x384] sm:$0xf]
    %v2451 = vld [vmem:[#allocation8 + $0x388] sm:$0xf]
    %v2452 = vld [vmem:[#allocation8 + $0x38c] sm:$0xf]
    %v2453 = vld [vmem:[#allocation8 + $0x390] sm:$0xf]
    %v2454 = vld [vmem:[#allocation8 + $0x394] sm:$0xf]
    %v2455 = vld [vmem:[#allocation8 + $0x398] sm:$0xf]
    %v2456 = vld [vmem:[#allocation8 + $0x39c] sm:$0xf]
    %v2457 = vld [vmem:[#allocation8 + $0x3a0] sm:$0xf]
    %v2458 = vld [vmem:[#allocation8 + $0x3a4] sm:$0xf]
    %v2459 = vld [vmem:[#allocation8 + $0x3a8] sm:$0xf]
    %v2460 = vld [vmem:[#allocation8 + $0x3ac] sm:$0xf]
    %v2461 = vld [vmem:[#allocation8 + $0x3b0] sm:$0xf]
    %v2462 = vld [vmem:[#allocation8 + $0x3b4] sm:$0xf]
    %v2463 = vld [vmem:[#allocation8 + $0x3b8] sm:$0xf]
    %v2464 = vld [vmem:[#allocation8 + $0x3bc] sm:$0xf]
    %v2465 = vld [vmem:[#allocation8 + $0x3c0] sm:$0xf]
    %v2466 = vld [vmem:[#allocation8 + $0x3c4] sm:$0xf]
    %v2467 = vld [vmem:[#allocation8 + $0x3c8] sm:$0xf]
    %v2468 = vld [vmem:[#allocation8 + $0x3cc] sm:$0xf]
    %v2469 = vld [vmem:[#allocation8 + $0x3d0] sm:$0xf]
    %v2470 = vld [vmem:[#allocation8 + $0x3d4] sm:$0xf]
    %v2471 = vld [vmem:[#allocation8 + $0x3d8] sm:$0xf]
    %v2472 = vld [vmem:[#allocation8 + $0x3dc] sm:$0xf]
    %v2473 = vld [vmem:[#allocation8 + $0x3e0] sm:$0xf]
    %v2474 = vld [vmem:[#allocation8 + $0x3e4] sm:$0xf]
    %v2475 = vld [vmem:[#allocation8 + $0x3e8] sm:$0xf]
    %v2476 = vld [vmem:[#allocation8 + $0x3ec] sm:$0xf]
    %v2477 = vld [vmem:[#allocation8 + $0x3f0] sm:$0xf]
    %v2478 = vld [vmem:[#allocation8 + $0x3f4] sm:$0xf]
    %v2479 = vld [vmem:[#allocation8 + $0x3f8] sm:$0xf]
    %v2480 = vld [vmem:[#allocation8 + $0x3fc] sm:$0xf]
    %v2481 = vld [vmem:[#allocation8 + $0x400] sm:$0xf]
    %v2482 = vld [vmem:[#allocation8 + $0x404] sm:$0xf]
    %v2483 = vld [vmem:[#allocation8 + $0x408] sm:$0xf]
    %v2484 = vld [vmem:[#allocation8 + $0x40c] sm:$0xf]
    %v2485 = vld [vmem:[#allocation8 + $0x410] sm:$0xf]
    %v2486 = vld [vmem:[#allocation8 + $0x414] sm:$0xf]
    %v2487 = vld [vmem:[#allocation8 + $0x418] sm:$0xf]
    %v2488 = vld [vmem:[#allocation8 + $0x41c] sm:$0xf]
    %v2489 = vld [vmem:[#allocation8 + $0x420] sm:$0xf]
    %v2490 = vld [vmem:[#allocation8 + $0x424] sm:$0xf]
    %v2491 = vld [vmem:[#allocation8 + $0x428] sm:$0xf]
    %v2492 = vld [vmem:[#allocation8 + $0x42c] sm:$0xf]
    %v2493 = vld [vmem:[#allocation8 + $0x430] sm:$0xf]
    %v2494 = vld [vmem:[#allocation8 + $0x434] sm:$0xf]
    %v2495 = vld [vmem:[#allocation8 + $0x438] sm:$0xf]
    %v2496 = vld [vmem:[#allocation8 + $0x43c] sm:$0xf]
    %v2497 = vld [vmem:[#allocation8 + $0x440] sm:$0xf]
    %v2498 = vld [vmem:[#allocation8 + $0x444] sm:$0xf]
    %v2499 = vld [vmem:[#allocation8 + $0x448] sm:$0xf]
    %v2500 = vld [vmem:[#allocation8 + $0x44c] sm:$0xf]
    %v2501 = vld [vmem:[#allocation8 + $0x450] sm:$0xf]
    %v2502 = vld [vmem:[#allocation8 + $0x454] sm:$0xf]
    %v2503 = vld [vmem:[#allocation8 + $0x458] sm:$0xf]
    %v2504 = vld [vmem:[#allocation8 + $0x45c] sm:$0xf]
    %v2505 = vld [vmem:[#allocation8 + $0x460] sm:$0xf]
    %v2506 = vld [vmem:[#allocation8 + $0x464] sm:$0xf]
    %v2507 = vld [vmem:[#allocation8 + $0x468] sm:$0xf]
    %v2508 = vld [vmem:[#allocation8 + $0x46c] sm:$0xf]
    %v2509 = vld [vmem:[#allocation8 + $0x470] sm:$0xf]
    %v2510 = vld [vmem:[#allocation8 + $0x474] sm:$0xf]
    %v2511 = vld [vmem:[#allocation8 + $0x478] sm:$0xf]
    %v2512 = vld [vmem:[#allocation8 + $0x47c] sm:$0xf]
    %v2513 = vld [vmem:[#allocation8 + $0x480] sm:$0xf]
    %v2514 = vld [vmem:[#allocation8 + $0x484] sm:$0xf]
    %v2515 = vld [vmem:[#allocation8 + $0x488] sm:$0xf]
    %v2516 = vld [vmem:[#allocation8 + $0x48c] sm:$0xf]
    %v2517 = vld [vmem:[#allocation8 + $0x490] sm:$0xf]
    %v2518 = vld [vmem:[#allocation8 + $0x494] sm:$0xf]
    %v2519 = vld [vmem:[#allocation8 + $0x498] sm:$0xf]
    %v2520 = vld [vmem:[#allocation8 + $0x49c] sm:$0xf]
    %v2521 = vld [vmem:[#allocation8 + $0x4a0] sm:$0xf]
    %v2522 = vld [vmem:[#allocation8 + $0x4a4] sm:$0xf]
    %v2523 = vld [vmem:[#allocation8 + $0x4a8] sm:$0xf]
    %v2524 = vld [vmem:[#allocation8 + $0x4ac] sm:$0xf]
    %v2525 = vld [vmem:[#allocation8 + $0x4b0] sm:$0xf]
    %v2526 = vld [vmem:[#allocation8 + $0x4b4] sm:$0xf]
    %v2527 = vld [vmem:[#allocation8 + $0x4b8] sm:$0xf]
    %v2528 = vld [vmem:[#allocation8 + $0x4bc] sm:$0xf]
    %v2529 = vld [vmem:[#allocation8 + $0x4c0] sm:$0xf]
    %v2530 = vld [vmem:[#allocation8 + $0x4c4] sm:$0xf]
    %v2531 = vld [vmem:[#allocation8 + $0x4c8] sm:$0xf]
    %v2532 = vld [vmem:[#allocation8 + $0x4cc] sm:$0xf]
    %v2533 = vld [vmem:[#allocation8 + $0x4d0] sm:$0xf]
    %v2534 = vld [vmem:[#allocation8 + $0x4d4] sm:$0xf]
    %v2535 = vld [vmem:[#allocation8 + $0x4d8] sm:$0xf]
    %v2536 = vld [vmem:[#allocation8 + $0x4dc] sm:$0xf]
    %v2537 = vld [vmem:[#allocation8 + $0x4e0] sm:$0xf]
    %v2538 = vld [vmem:[#allocation8 + $0x4e4] sm:$0xf]
    %v2539 = vld [vmem:[#allocation8 + $0x4e8] sm:$0xf]
    %v2540 = vld [vmem:[#allocation8 + $0x4ec] sm:$0xf]
    %v2541 = vld [vmem:[#allocation8 + $0x4f0] sm:$0xf]
    %v2542 = vld [vmem:[#allocation8 + $0x4f4] sm:$0xf]
    %v2543 = vld [vmem:[#allocation8 + $0x4f8] sm:$0xf]
    %v2544 = vld [vmem:[#allocation8 + $0x4fc] sm:$0xf]
    %v2545 = vld [vmem:[#allocation8 + $0x500] sm:$0xf]
    %v2546 = vld [vmem:[#allocation8 + $0x504] sm:$0xf]
    %v2547 = vld [vmem:[#allocation8 + $0x508] sm:$0xf]
    %v2548 = vld [vmem:[#allocation8 + $0x50c] sm:$0xf]
    %v2549 = vld [vmem:[#allocation8 + $0x510] sm:$0xf]
    %v2550 = vld [vmem:[#allocation8 + $0x514] sm:$0xf]
    %v2551 = vld [vmem:[#allocation8 + $0x518] sm:$0xf]
    %v2552 = vld [vmem:[#allocation8 + $0x51c] sm:$0xf]
    %v2553 = vld [vmem:[#allocation8 + $0x520] sm:$0xf]
    %v2554 = vld [vmem:[#allocation8 + $0x524] sm:$0xf]
    %v2555 = vld [vmem:[#allocation8 + $0x528] sm:$0xf]
    %v2556 = vld [vmem:[#allocation8 + $0x52c] sm:$0xf]
    %v2557 = vld [vmem:[#allocation8 + $0x530] sm:$0xf]
    %v2558 = vld [vmem:[#allocation8 + $0x534] sm:$0xf]
    %v2559 = vld [vmem:[#allocation8 + $0x538] sm:$0xf]
    %v2560 = vld [vmem:[#allocation8 + $0x53c] sm:$0xf]
    %v2561 = vld [vmem:[#allocation8 + $0x540] sm:$0xf]
    %v2562 = vld [vmem:[#allocation8 + $0x544] sm:$0xf]
    %v2563 = vld [vmem:[#allocation8 + $0x548] sm:$0xf]
    %v2564 = vld [vmem:[#allocation8 + $0x54c] sm:$0xf]
    %v2565 = vld [vmem:[#allocation8 + $0x550] sm:$0xf]
    %v2566 = vld [vmem:[#allocation8 + $0x554] sm:$0xf]
    %v2567 = vld [vmem:[#allocation8 + $0x558] sm:$0xf]
    %v2568 = vld [vmem:[#allocation8 + $0x55c] sm:$0xf]
    %v2569 = vld [vmem:[#allocation8 + $0x560] sm:$0xf]
    %v2570 = vld [vmem:[#allocation8 + $0x564] sm:$0xf]
    %v2571 = vld [vmem:[#allocation8 + $0x568] sm:$0xf]
    %v2572 = vld [vmem:[#allocation8 + $0x56c] sm:$0xf]
    %v2573 = vld [vmem:[#allocation8 + $0x570] sm:$0xf]
    %v2574 = vld [vmem:[#allocation8 + $0x574] sm:$0xf]
    %v2575 = vld [vmem:[#allocation8 + $0x578] sm:$0xf]
    %v2576 = vld [vmem:[#allocation8 + $0x57c] sm:$0xf]
    %v2577 = vld [vmem:[#allocation8 + $0x580] sm:$0xf]
    %v2578 = vld [vmem:[#allocation8 + $0x584] sm:$0xf]
    %v2579 = vld [vmem:[#allocation8 + $0x588] sm:$0xf]
    %v2580 = vld [vmem:[#allocation8 + $0x58c] sm:$0xf]
    %v2581 = vld [vmem:[#allocation8 + $0x590] sm:$0xf]
    %v2582 = vld [vmem:[#allocation8 + $0x594] sm:$0xf]
    %v2583 = vld [vmem:[#allocation8 + $0x598] sm:$0xf]
    %v2584 = vld [vmem:[#allocation8 + $0x59c] sm:$0xf]
    %v2585 = vld [vmem:[#allocation8 + $0x5a0] sm:$0xf]
    %v2586 = vld [vmem:[#allocation8 + $0x5a4] sm:$0xf]
    %v2587 = vld [vmem:[#allocation8 + $0x5a8] sm:$0xf]
    %v2588 = vld [vmem:[#allocation8 + $0x5ac] sm:$0xf]
    %v2589 = vld [vmem:[#allocation8 + $0x5b0] sm:$0xf]
    %v2590 = vld [vmem:[#allocation8 + $0x5b4] sm:$0xf]
    %v2591 = vld [vmem:[#allocation8 + $0x5b8] sm:$0xf]
    %v2592 = vld [vmem:[#allocation8 + $0x5bc] sm:$0xf]
    %v2593 = vld [vmem:[#allocation8 + $0x5c0] sm:$0xf]
    %v2594 = vld [vmem:[#allocation8 + $0x5c4] sm:$0xf]
    %v2595 = vld [vmem:[#allocation8 + $0x5c8] sm:$0xf]
    %v2596 = vld [vmem:[#allocation8 + $0x5cc] sm:$0xf]
    %v2597 = vld [vmem:[#allocation8 + $0x5d0] sm:$0xf]
    %v2598 = vld [vmem:[#allocation8 + $0x5d4] sm:$0xf]
    %v2599 = vld [vmem:[#allocation8 + $0x5d8] sm:$0xf]
    %v2600 = vld [vmem:[#allocation8 + $0x5dc] sm:$0xf]
    %v2601 = vld [vmem:[#allocation8 + $0x5e0] sm:$0xf]
    %v2602 = vld [vmem:[#allocation8 + $0x5e4] sm:$0xf]
    %v2603 = vld [vmem:[#allocation8 + $0x5e8] sm:$0xf]
    %v2604 = vld [vmem:[#allocation8 + $0x5ec] sm:$0xf]
    %v2605 = vld [vmem:[#allocation8 + $0x5f0] sm:$0xf]
    %v2606 = vld [vmem:[#allocation8 + $0x5f4] sm:$0xf]
    %v2607 = vld [vmem:[#allocation8 + $0x5f8] sm:$0xf]
    %v2608 = vld [vmem:[#allocation8 + $0x5fc] sm:$0xf]
    %v2609 = vld [vmem:[#allocation8 + $0x600] sm:$0xf]
    %v2610 = vld [vmem:[#allocation8 + $0x604] sm:$0xf]
    %v2611 = vld [vmem:[#allocation8 + $0x608] sm:$0xf]
    %v2612 = vld [vmem:[#allocation8 + $0x60c] sm:$0xf]
    %v2613 = vld [vmem:[#allocation8 + $0x610] sm:$0xf]
    %v2614 = vld [vmem:[#allocation8 + $0x614] sm:$0xf]
    %v2615 = vld [vmem:[#allocation8 + $0x618] sm:$0xf]
    %v2616 = vld [vmem:[#allocation8 + $0x61c] sm:$0xf]
    %v2617 = vld [vmem:[#allocation8 + $0x620] sm:$0xf]
    %v2618 = vld [vmem:[#allocation8 + $0x624] sm:$0xf]
    %v2619 = vld [vmem:[#allocation8 + $0x628] sm:$0xf]
    %v2620 = vld [vmem:[#allocation8 + $0x62c] sm:$0xf]
    %v2621 = vld [vmem:[#allocation8 + $0x630] sm:$0xf]
    %v2622 = vld [vmem:[#allocation8 + $0x634] sm:$0xf]
    %v2623 = vld [vmem:[#allocation8 + $0x638] sm:$0xf]
    %v2624 = vld [vmem:[#allocation8 + $0x63c] sm:$0xf]
    %v2625 = vld [vmem:[#allocation8 + $0x640] sm:$0xf]
    %v2626 = vld [vmem:[#allocation8 + $0x644] sm:$0xf]
    %v2627 = vld [vmem:[#allocation8 + $0x648] sm:$0xf]
    %v2628 = vld [vmem:[#allocation8 + $0x64c] sm:$0xf]
    %v2629 = vld [vmem:[#allocation8 + $0x650] sm:$0xf]
    %v2630 = vld [vmem:[#allocation8 + $0x654] sm:$0xf]
    %v2631 = vld [vmem:[#allocation8 + $0x658] sm:$0xf]
    %v2632 = vld [vmem:[#allocation8 + $0x65c] sm:$0xf]
    %v2633 = vld [vmem:[#allocation8 + $0x660] sm:$0xf]
    %v2634 = vld [vmem:[#allocation8 + $0x664] sm:$0xf]
    %v2635 = vld [vmem:[#allocation8 + $0x668] sm:$0xf]
    %v2636 = vld [vmem:[#allocation8 + $0x66c] sm:$0xf]
    %v2637 = vld [vmem:[#allocation8 + $0x670] sm:$0xf]
    %v2638 = vld [vmem:[#allocation8 + $0x674] sm:$0xf]
    %v2639 = vld [vmem:[#allocation8 + $0x678] sm:$0xf]
    %v2640 = vld [vmem:[#allocation8 + $0x67c] sm:$0xf]
    %v2641 = vld [vmem:[#allocation8 + $0x680] sm:$0xf]
    %v2642 = vld [vmem:[#allocation8 + $0x684] sm:$0xf]
    %v2643 = vld [vmem:[#allocation8 + $0x688] sm:$0xf]
    %v2644 = vld [vmem:[#allocation8 + $0x68c] sm:$0xf]
    %v2645 = vld [vmem:[#allocation8 + $0x690] sm:$0xf]
    %v2646 = vld [vmem:[#allocation8 + $0x694] sm:$0xf]
    %v2647 = vld [vmem:[#allocation8 + $0x698] sm:$0xf]
    %v2648 = vld [vmem:[#allocation8 + $0x69c] sm:$0xf]
    %v2649 = vld [vmem:[#allocation8 + $0x6a0] sm:$0xf]
    %v2650 = vld [vmem:[#allocation8 + $0x6a4] sm:$0xf]
    %v2651 = vld [vmem:[#allocation8 + $0x6a8] sm:$0xf]
    %v2652 = vld [vmem:[#allocation8 + $0x6ac] sm:$0xf]
    %v2653 = vld [vmem:[#allocation8 + $0x6b0] sm:$0xf]
    %v2654 = vld [vmem:[#allocation8 + $0x6b4] sm:$0xf]
    %v2655 = vld [vmem:[#allocation8 + $0x6b8] sm:$0xf]
    %v2656 = vld [vmem:[#allocation8 + $0x6bc] sm:$0xf]
    %v2657 = vld [vmem:[#allocation8 + $0x6c0] sm:$0xf]
    %v2658 = vld [vmem:[#allocation8 + $0x6c4] sm:$0xf]
    %v2659 = vld [vmem:[#allocation8 + $0x6c8] sm:$0xf]
    %v2660 = vld [vmem:[#allocation8 + $0x6cc] sm:$0xf]
    %v2661 = vld [vmem:[#allocation8 + $0x6d0] sm:$0xf]
    %v2662 = vld [vmem:[#allocation8 + $0x6d4] sm:$0xf]
    %v2663 = vld [vmem:[#allocation8 + $0x6d8] sm:$0xf]
    %v2664 = vld [vmem:[#allocation8 + $0x6dc] sm:$0xf]
    %v2665 = vld [vmem:[#allocation8 + $0x6e0] sm:$0xf]
    %v2666 = vld [vmem:[#allocation8 + $0x6e4] sm:$0xf]
    %v2667 = vld [vmem:[#allocation8 + $0x6e8] sm:$0xf]
    %v2668 = vld [vmem:[#allocation8 + $0x6ec] sm:$0xf]
    %v2669 = vld [vmem:[#allocation8 + $0x6f0] sm:$0xf]
    %v2670 = vld [vmem:[#allocation8 + $0x6f4] sm:$0xf]
    %v2671 = vld [vmem:[#allocation8 + $0x6f8] sm:$0xf]
    %v2672 = vld [vmem:[#allocation8 + $0x6fc] sm:$0xf]
    %v2673 = vld [vmem:[#allocation8 + $0x700] sm:$0xf]
    %v2674 = vld [vmem:[#allocation8 + $0x704] sm:$0xf]
    %v2675 = vld [vmem:[#allocation8 + $0x708] sm:$0xf]
    %v2676 = vld [vmem:[#allocation8 + $0x70c] sm:$0xf]
    %v2677 = vld [vmem:[#allocation8 + $0x710] sm:$0xf]
    %v2678 = vld [vmem:[#allocation8 + $0x714] sm:$0xf]
    %v2679 = vld [vmem:[#allocation8 + $0x718] sm:$0xf]
    %v2680 = vld [vmem:[#allocation8 + $0x71c] sm:$0xf]
    %v2681 = vld [vmem:[#allocation8 + $0x720] sm:$0xf]
    %v2682 = vld [vmem:[#allocation8 + $0x724] sm:$0xf]
    %v2683 = vld [vmem:[#allocation8 + $0x728] sm:$0xf]
    %v2684 = vld [vmem:[#allocation8 + $0x72c] sm:$0xf]
    %v2685 = vld [vmem:[#allocation8 + $0x730] sm:$0xf]
    %v2686 = vld [vmem:[#allocation8 + $0x734] sm:$0xf]
    %v2687 = vld [vmem:[#allocation8 + $0x738] sm:$0xf]
    %v2688 = vld [vmem:[#allocation8 + $0x73c] sm:$0xf]
    %v2689 = vld [vmem:[#allocation8 + $0x740] sm:$0xf]
    %v2690 = vld [vmem:[#allocation8 + $0x744] sm:$0xf]
    %v2691 = vld [vmem:[#allocation8 + $0x748] sm:$0xf]
    %v2692 = vld [vmem:[#allocation8 + $0x74c] sm:$0xf]
    %v2693 = vld [vmem:[#allocation8 + $0x750] sm:$0xf]
    %v2694 = vld [vmem:[#allocation8 + $0x754] sm:$0xf]
    %v2695 = vld [vmem:[#allocation8 + $0x758] sm:$0xf]
    %v2696 = vld [vmem:[#allocation8 + $0x75c] sm:$0xf]
    %v2697 = vld [vmem:[#allocation8 + $0x760] sm:$0xf]
    %v2698 = vld [vmem:[#allocation8 + $0x764] sm:$0xf]
    %v2699 = vld [vmem:[#allocation8 + $0x768] sm:$0xf]
    %v2700 = vld [vmem:[#allocation8 + $0x76c] sm:$0xf]
    %v2701 = vld [vmem:[#allocation8 + $0x770] sm:$0xf]
    %v2702 = vld [vmem:[#allocation8 + $0x774] sm:$0xf]
    %v2703 = vld [vmem:[#allocation8 + $0x778] sm:$0xf]
    %v2704 = vld [vmem:[#allocation8 + $0x77c] sm:$0xf]
    %v2705 = vld [vmem:[#allocation8 + $0x780] sm:$0xf]
    %v2706 = vld [vmem:[#allocation8 + $0x784] sm:$0xf]
    %v2707 = vld [vmem:[#allocation8 + $0x788] sm:$0xf]
    %v2708 = vld [vmem:[#allocation8 + $0x78c] sm:$0xf]
    %v2709 = vld [vmem:[#allocation8 + $0x790] sm:$0xf]
    %v2710 = vld [vmem:[#allocation8 + $0x794] sm:$0xf]
    %v2711 = vld [vmem:[#allocation8 + $0x798] sm:$0xf]
    %v2712 = vld [vmem:[#allocation8 + $0x79c] sm:$0xf]
    %v2713 = vld [vmem:[#allocation8 + $0x7a0] sm:$0xf]
    %v2714 = vld [vmem:[#allocation8 + $0x7a4] sm:$0xf]
    %v2715 = vld [vmem:[#allocation8 + $0x7a8] sm:$0xf]
    %v2716 = vld [vmem:[#allocation8 + $0x7ac] sm:$0xf]
    %v2717 = vld [vmem:[#allocation8 + $0x7b0] sm:$0xf]
    %v2718 = vld [vmem:[#allocation8 + $0x7b4] sm:$0xf]
    %v2719 = vld [vmem:[#allocation8 + $0x7b8] sm:$0xf]
    %v2720 = vld [vmem:[#allocation8 + $0x7bc] sm:$0xf]
    %v2721 = vld [vmem:[#allocation8 + $0x7c0] sm:$0xf]
    %v2722 = vld [vmem:[#allocation8 + $0x7c4] sm:$0xf]
    %v2723 = vld [vmem:[#allocation8 + $0x7c8] sm:$0xf]
    %v2724 = vld [vmem:[#allocation8 + $0x7cc] sm:$0xf]
    %v2725 = vld [vmem:[#allocation8 + $0x7d0] sm:$0xf]
    %v2726 = vld [vmem:[#allocation8 + $0x7d4] sm:$0xf]
    %v2727 = vld [vmem:[#allocation8 + $0x7d8] sm:$0xf]
    %v2728 = vld [vmem:[#allocation8 + $0x7dc] sm:$0xf]
    %v2729 = vld [vmem:[#allocation8 + $0x7e0] sm:$0xf]
    %v2730 = vld [vmem:[#allocation8 + $0x7e4] sm:$0xf]
    %v2731 = vld [vmem:[#allocation8 + $0x7e8] sm:$0xf]
    %v2732 = vld [vmem:[#allocation8 + $0x7ec] sm:$0xf]
    %v2733 = vld [vmem:[#allocation8 + $0x7f0] sm:$0xf]
    %v2734 = vld [vmem:[#allocation8 + $0x7f4] sm:$0xf]
    %v2735 = vld [vmem:[#allocation8 + $0x7f8] sm:$0xf]
    %v2736 = vld [vmem:[#allocation8 + $0x7fc] sm:$0xf]
    %v3249 = vunpack.c.l.b16 %v2225
    %v3250 = vunpack.c.l.b16 %v2226
    %v3251 = vunpack.c.l.b16 %v2227
    %v3252 = vunpack.c.l.b16 %v2228
    %v3253 = vunpack.c.l.b16 %v2229
    %v3254 = vunpack.c.l.b16 %v2230
    %v3255 = vunpack.c.l.b16 %v2231
    %v3256 = vunpack.c.l.b16 %v2232
    %v3257 = vunpack.c.l.b16 %v2233
    %v3258 = vunpack.c.l.b16 %v2234
    %v3259 = vunpack.c.l.b16 %v2235
    %v3260 = vunpack.c.l.b16 %v2236
    %v3261 = vunpack.c.l.b16 %v2237
    %v3262 = vunpack.c.l.b16 %v2238
    %v3263 = vunpack.c.l.b16 %v2239
    %v3264 = vunpack.c.l.b16 %v2240
    %v3265 = vunpack.c.l.b16 %v2241
    %v3266 = vunpack.c.l.b16 %v2242
    %v3267 = vunpack.c.l.b16 %v2243
    %v3268 = vunpack.c.l.b16 %v2244
    %v3269 = vunpack.c.l.b16 %v2245
    %v3270 = vunpack.c.l.b16 %v2246
    %v3271 = vunpack.c.l.b16 %v2247
    %v3272 = vunpack.c.l.b16 %v2248
    %v3273 = vunpack.c.l.b16 %v2249
    %v3274 = vunpack.c.l.b16 %v2250
    %v3275 = vunpack.c.l.b16 %v2251
    %v3276 = vunpack.c.l.b16 %v2252
    %v3277 = vunpack.c.l.b16 %v2253
    %v3278 = vunpack.c.l.b16 %v2254
    %v3279 = vunpack.c.l.b16 %v2255
    %v3280 = vunpack.c.l.b16 %v2256
    %v3281 = vunpack.c.l.b16 %v2257
    %v3282 = vunpack.c.l.b16 %v2258
    %v3283 = vunpack.c.l.b16 %v2259
    %v3284 = vunpack.c.l.b16 %v2260
    %v3285 = vunpack.c.l.b16 %v2261
    %v3286 = vunpack.c.l.b16 %v2262
    %v3287 = vunpack.c.l.b16 %v2263
    %v3288 = vunpack.c.l.b16 %v2264
    %v3289 = vunpack.c.l.b16 %v2265
    %v3290 = vunpack.c.l.b16 %v2266
    %v3291 = vunpack.c.l.b16 %v2267
    %v3292 = vunpack.c.l.b16 %v2268
    %v3293 = vunpack.c.l.b16 %v2269
    %v3294 = vunpack.c.l.b16 %v2270
    %v3295 = vunpack.c.l.b16 %v2271
    %v3296 = vunpack.c.l.b16 %v2272
    %v3297 = vunpack.c.l.b16 %v2273
    %v3298 = vunpack.c.l.b16 %v2274
    %v3299 = vunpack.c.l.b16 %v2275
    %v3300 = vunpack.c.l.b16 %v2276
    %v3301 = vunpack.c.l.b16 %v2277
    %v3302 = vunpack.c.l.b16 %v2278
    %v3303 = vunpack.c.l.b16 %v2279
    %v3304 = vunpack.c.l.b16 %v2280
    %v3305 = vunpack.c.l.b16 %v2281
    %v3306 = vunpack.c.l.b16 %v2282
    %v3307 = vunpack.c.l.b16 %v2283
    %v3308 = vunpack.c.l.b16 %v2284
    %v3309 = vunpack.c.l.b16 %v2285
    %v3310 = vunpack.c.l.b16 %v2286
    %v3311 = vunpack.c.l.b16 %v2287
    %v3312 = vunpack.c.l.b16 %v2288
    %v3313 = vunpack.c.l.b16 %v2289
    %v3314 = vunpack.c.l.b16 %v2290
    %v3315 = vunpack.c.l.b16 %v2291
    %v3316 = vunpack.c.l.b16 %v2292
    %v3317 = vunpack.c.l.b16 %v2293
    %v3318 = vunpack.c.l.b16 %v2294
    %v3319 = vunpack.c.l.b16 %v2295
    %v3320 = vunpack.c.l.b16 %v2296
    %v3321 = vunpack.c.l.b16 %v2297
    %v3322 = vunpack.c.l.b16 %v2298
    %v3323 = vunpack.c.l.b16 %v2299
    %v3324 = vunpack.c.l.b16 %v2300
    %v3325 = vunpack.c.l.b16 %v2301
    %v3326 = vunpack.c.l.b16 %v2302
    %v3327 = vunpack.c.l.b16 %v2303
    %v3328 = vunpack.c.l.b16 %v2304
    %v3329 = vunpack.c.l.b16 %v2305
    %v3330 = vunpack.c.l.b16 %v2306
    %v3331 = vunpack.c.l.b16 %v2307
    %v3332 = vunpack.c.l.b16 %v2308
    %v3333 = vunpack.c.l.b16 %v2309
    %v3334 = vunpack.c.l.b16 %v2310
    %v3335 = vunpack.c.l.b16 %v2311
    %v3336 = vunpack.c.l.b16 %v2312
    %v3337 = vunpack.c.l.b16 %v2313
    %v3338 = vunpack.c.l.b16 %v2314
    %v3339 = vunpack.c.l.b16 %v2315
    %v3340 = vunpack.c.l.b16 %v2316
    %v3341 = vunpack.c.l.b16 %v2317
    %v3342 = vunpack.c.l.b16 %v2318
    %v3343 = vunpack.c.l.b16 %v2319
    %v3344 = vunpack.c.l.b16 %v2320
    %v3345 = vunpack.c.l.b16 %v2321
    %v3346 = vunpack.c.l.b16 %v2322
    %v3347 = vunpack.c.l.b16 %v2323
    %v3348 = vunpack.c.l.b16 %v2324
    %v3349 = vunpack.c.l.b16 %v2325
    %v3350 = vunpack.c.l.b16 %v2326
    %v3351 = vunpack.c.l.b16 %v2327
    %v3352 = vunpack.c.l.b16 %v2328
    %v3353 = vunpack.c.l.b16 %v2329
    %v3354 = vunpack.c.l.b16 %v2330
    %v3355 = vunpack.c.l.b16 %v2331
    %v3356 = vunpack.c.l.b16 %v2332
    %v3357 = vunpack.c.l.b16 %v2333
    %v3358 = vunpack.c.l.b16 %v2334
    %v3359 = vunpack.c.l.b16 %v2335
    %v3360 = vunpack.c.l.b16 %v2336
    %v3361 = vunpack.c.l.b16 %v2337
    %v3362 = vunpack.c.l.b16 %v2338
    %v3363 = vunpack.c.l.b16 %v2339
    %v3364 = vunpack.c.l.b16 %v2340
    %v3365 = vunpack.c.l.b16 %v2341
    %v3366 = vunpack.c.l.b16 %v2342
    %v3367 = vunpack.c.l.b16 %v2343
    %v3368 = vunpack.c.l.b16 %v2344
    %v3369 = vunpack.c.l.b16 %v2345
    %v3370 = vunpack.c.l.b16 %v2346
    %v3371 = vunpack.c.l.b16 %v2347
    %v3372 = vunpack.c.l.b16 %v2348
    %v3373 = vunpack.c.l.b16 %v2349
    %v3374 = vunpack.c.l.b16 %v2350
    %v3375 = vunpack.c.l.b16 %v2351
    %v3376 = vunpack.c.l.b16 %v2352
    %v3377 = vunpack.c.l.b16 %v2353
    %v3378 = vunpack.c.l.b16 %v2354
    %v3379 = vunpack.c.l.b16 %v2355
    %v3380 = vunpack.c.l.b16 %v2356
    %v3381 = vunpack.c.l.b16 %v2357
    %v3382 = vunpack.c.l.b16 %v2358
    %v3383 = vunpack.c.l.b16 %v2359
    %v3384 = vunpack.c.l.b16 %v2360
    %v3385 = vunpack.c.l.b16 %v2361
    %v3386 = vunpack.c.l.b16 %v2362
    %v3387 = vunpack.c.l.b16 %v2363
    %v3388 = vunpack.c.l.b16 %v2364
    %v3389 = vunpack.c.l.b16 %v2365
    %v3390 = vunpack.c.l.b16 %v2366
    %v3391 = vunpack.c.l.b16 %v2367
    %v3392 = vunpack.c.l.b16 %v2368
    %v3393 = vunpack.c.l.b16 %v2369
    %v3394 = vunpack.c.l.b16 %v2370
    %v3395 = vunpack.c.l.b16 %v2371
    %v3396 = vunpack.c.l.b16 %v2372
    %v3397 = vunpack.c.l.b16 %v2373
    %v3398 = vunpack.c.l.b16 %v2374
    %v3399 = vunpack.c.l.b16 %v2375
    %v3400 = vunpack.c.l.b16 %v2376
    %v3401 = vunpack.c.l.b16 %v2377
    %v3402 = vunpack.c.l.b16 %v2378
    %v3403 = vunpack.c.l.b16 %v2379
    %v3404 = vunpack.c.l.b16 %v2380
    %v3405 = vunpack.c.l.b16 %v2381
    %v3406 = vunpack.c.l.b16 %v2382
    %v3407 = vunpack.c.l.b16 %v2383
    %v3408 = vunpack.c.l.b16 %v2384
    %v3409 = vunpack.c.l.b16 %v2385
    %v3410 = vunpack.c.l.b16 %v2386
    %v3411 = vunpack.c.l.b16 %v2387
    %v3412 = vunpack.c.l.b16 %v2388
    %v3413 = vunpack.c.l.b16 %v2389
    %v3414 = vunpack.c.l.b16 %v2390
    %v3415 = vunpack.c.l.b16 %v2391
    %v3416 = vunpack.c.l.b16 %v2392
    %v3417 = vunpack.c.l.b16 %v2393
    %v3418 = vunpack.c.l.b16 %v2394
    %v3419 = vunpack.c.l.b16 %v2395
    %v3420 = vunpack.c.l.b16 %v2396
    %v3421 = vunpack.c.l.b16 %v2397
    %v3422 = vunpack.c.l.b16 %v2398
    %v3423 = vunpack.c.l.b16 %v2399
    %v3424 = vunpack.c.l.b16 %v2400
    %v3425 = vunpack.c.l.b16 %v2401
    %v3426 = vunpack.c.l.b16 %v2402
    %v3427 = vunpack.c.l.b16 %v2403
    %v3428 = vunpack.c.l.b16 %v2404
    %v3429 = vunpack.c.l.b16 %v2405
    %v3430 = vunpack.c.l.b16 %v2406
    %v3431 = vunpack.c.l.b16 %v2407
    %v3432 = vunpack.c.l.b16 %v2408
    %v3433 = vunpack.c.l.b16 %v2409
    %v3434 = vunpack.c.l.b16 %v2410
    %v3435 = vunpack.c.l.b16 %v2411
    %v3436 = vunpack.c.l.b16 %v2412
    %v3437 = vunpack.c.l.b16 %v2413
    %v3438 = vunpack.c.l.b16 %v2414
    %v3439 = vunpack.c.l.b16 %v2415
    %v3440 = vunpack.c.l.b16 %v2416
    %v3441 = vunpack.c.l.b16 %v2417
    %v3442 = vunpack.c.l.b16 %v2418
    %v3443 = vunpack.c.l.b16 %v2419
    %v3444 = vunpack.c.l.b16 %v2420
    %v3445 = vunpack.c.l.b16 %v2421
    %v3446 = vunpack.c.l.b16 %v2422
    %v3447 = vunpack.c.l.b16 %v2423
    %v3448 = vunpack.c.l.b16 %v2424
    %v3449 = vunpack.c.l.b16 %v2425
    %v3450 = vunpack.c.l.b16 %v2426
    %v3451 = vunpack.c.l.b16 %v2427
    %v3452 = vunpack.c.l.b16 %v2428
    %v3453 = vunpack.c.l.b16 %v2429
    %v3454 = vunpack.c.l.b16 %v2430
    %v3455 = vunpack.c.l.b16 %v2431
    %v3456 = vunpack.c.l.b16 %v2432
    %v3457 = vunpack.c.l.b16 %v2433
    %v3458 = vunpack.c.l.b16 %v2434
    %v3459 = vunpack.c.l.b16 %v2435
    %v3460 = vunpack.c.l.b16 %v2436
    %v3461 = vunpack.c.l.b16 %v2437
    %v3462 = vunpack.c.l.b16 %v2438
    %v3463 = vunpack.c.l.b16 %v2439
    %v3464 = vunpack.c.l.b16 %v2440
    %v3465 = vunpack.c.l.b16 %v2441
    %v3466 = vunpack.c.l.b16 %v2442
    %v3467 = vunpack.c.l.b16 %v2443
    %v3468 = vunpack.c.l.b16 %v2444
    %v3469 = vunpack.c.l.b16 %v2445
    %v3470 = vunpack.c.l.b16 %v2446
    %v3471 = vunpack.c.l.b16 %v2447
    %v3472 = vunpack.c.l.b16 %v2448
    %v3473 = vunpack.c.l.b16 %v2449
    %v3474 = vunpack.c.l.b16 %v2450
    %v3475 = vunpack.c.l.b16 %v2451
    %v3476 = vunpack.c.l.b16 %v2452
    %v3477 = vunpack.c.l.b16 %v2453
    %v3478 = vunpack.c.l.b16 %v2454
    %v3479 = vunpack.c.l.b16 %v2455
    %v3480 = vunpack.c.l.b16 %v2456
    %v3481 = vunpack.c.l.b16 %v2457
    %v3482 = vunpack.c.l.b16 %v2458
    %v3483 = vunpack.c.l.b16 %v2459
    %v3484 = vunpack.c.l.b16 %v2460
    %v3485 = vunpack.c.l.b16 %v2461
    %v3486 = vunpack.c.l.b16 %v2462
    %v3487 = vunpack.c.l.b16 %v2463
    %v3488 = vunpack.c.l.b16 %v2464
    %v3489 = vunpack.c.l.b16 %v2465
    %v3490 = vunpack.c.l.b16 %v2466
    %v3491 = vunpack.c.l.b16 %v2467
    %v3492 = vunpack.c.l.b16 %v2468
    %v3493 = vunpack.c.l.b16 %v2469
    %v3494 = vunpack.c.l.b16 %v2470
    %v3495 = vunpack.c.l.b16 %v2471
    %v3496 = vunpack.c.l.b16 %v2472
    %v3497 = vunpack.c.l.b16 %v2473
    %v3498 = vunpack.c.l.b16 %v2474
    %v3499 = vunpack.c.l.b16 %v2475
    %v3500 = vunpack.c.l.b16 %v2476
    %v3501 = vunpack.c.l.b16 %v2477
    %v3502 = vunpack.c.l.b16 %v2478
    %v3503 = vunpack.c.l.b16 %v2479
    %v3504 = vunpack.c.l.b16 %v2480
    %v3505 = vunpack.c.l.b16 %v2481
    %v3506 = vunpack.c.l.b16 %v2482
    %v3507 = vunpack.c.l.b16 %v2483
    %v3508 = vunpack.c.l.b16 %v2484
    %v3509 = vunpack.c.l.b16 %v2485
    %v3510 = vunpack.c.l.b16 %v2486
    %v3511 = vunpack.c.l.b16 %v2487
    %v3512 = vunpack.c.l.b16 %v2488
    %v3513 = vunpack.c.l.b16 %v2489
    %v3514 = vunpack.c.l.b16 %v2490
    %v3515 = vunpack.c.l.b16 %v2491
    %v3516 = vunpack.c.l.b16 %v2492
    %v3517 = vunpack.c.l.b16 %v2493
    %v3518 = vunpack.c.l.b16 %v2494
    %v3519 = vunpack.c.l.b16 %v2495
    %v3520 = vunpack.c.l.b16 %v2496
    %v3521 = vunpack.c.l.b16 %v2497
    %v3522 = vunpack.c.l.b16 %v2498
    %v3523 = vunpack.c.l.b16 %v2499
    %v3524 = vunpack.c.l.b16 %v2500
    %v3525 = vunpack.c.l.b16 %v2501
    %v3526 = vunpack.c.l.b16 %v2502
    %v3527 = vunpack.c.l.b16 %v2503
    %v3528 = vunpack.c.l.b16 %v2504
    %v3529 = vunpack.c.l.b16 %v2505
    %v3530 = vunpack.c.l.b16 %v2506
    %v3531 = vunpack.c.l.b16 %v2507
    %v3532 = vunpack.c.l.b16 %v2508
    %v3533 = vunpack.c.l.b16 %v2509
    %v3534 = vunpack.c.l.b16 %v2510
    %v3535 = vunpack.c.l.b16 %v2511
    %v3536 = vunpack.c.l.b16 %v2512
    %v3537 = vunpack.c.l.b16 %v2513
    %v3538 = vunpack.c.l.b16 %v2514
    %v3539 = vunpack.c.l.b16 %v2515
    %v3540 = vunpack.c.l.b16 %v2516
    %v3541 = vunpack.c.l.b16 %v2517
    %v3542 = vunpack.c.l.b16 %v2518
    %v3543 = vunpack.c.l.b16 %v2519
    %v3544 = vunpack.c.l.b16 %v2520
    %v3545 = vunpack.c.l.b16 %v2521
    %v3546 = vunpack.c.l.b16 %v2522
    %v3547 = vunpack.c.l.b16 %v2523
    %v3548 = vunpack.c.l.b16 %v2524
    %v3549 = vunpack.c.l.b16 %v2525
    %v3550 = vunpack.c.l.b16 %v2526
    %v3551 = vunpack.c.l.b16 %v2527
    %v3552 = vunpack.c.l.b16 %v2528
    %v3553 = vunpack.c.l.b16 %v2529
    %v3554 = vunpack.c.l.b16 %v2530
    %v3555 = vunpack.c.l.b16 %v2531
    %v3556 = vunpack.c.l.b16 %v2532
    %v3557 = vunpack.c.l.b16 %v2533
    %v3558 = vunpack.c.l.b16 %v2534
    %v3559 = vunpack.c.l.b16 %v2535
    %v3560 = vunpack.c.l.b16 %v2536
    %v3561 = vunpack.c.l.b16 %v2537
    %v3562 = vunpack.c.l.b16 %v2538
    %v3563 = vunpack.c.l.b16 %v2539
    %v3564 = vunpack.c.l.b16 %v2540
    %v3565 = vunpack.c.l.b16 %v2541
    %v3566 = vunpack.c.l.b16 %v2542
    %v3567 = vunpack.c.l.b16 %v2543
    %v3568 = vunpack.c.l.b16 %v2544
    %v3569 = vunpack.c.l.b16 %v2545
    %v3570 = vunpack.c.l.b16 %v2546
    %v3571 = vunpack.c.l.b16 %v2547
    %v3572 = vunpack.c.l.b16 %v2548
    %v3573 = vunpack.c.l.b16 %v2549
    %v3574 = vunpack.c.l.b16 %v2550
    %v3575 = vunpack.c.l.b16 %v2551
    %v3576 = vunpack.c.l.b16 %v2552
    %v3577 = vunpack.c.l.b16 %v2553
    %v3578 = vunpack.c.l.b16 %v2554
    %v3579 = vunpack.c.l.b16 %v2555
    %v3580 = vunpack.c.l.b16 %v2556
    %v3581 = vunpack.c.l.b16 %v2557
    %v3582 = vunpack.c.l.b16 %v2558
    %v3583 = vunpack.c.l.b16 %v2559
    %v3584 = vunpack.c.l.b16 %v2560
    %v3585 = vunpack.c.l.b16 %v2561
    %v3586 = vunpack.c.l.b16 %v2562
    %v3587 = vunpack.c.l.b16 %v2563
    %v3588 = vunpack.c.l.b16 %v2564
    %v3589 = vunpack.c.l.b16 %v2565
    %v3590 = vunpack.c.l.b16 %v2566
    %v3591 = vunpack.c.l.b16 %v2567
    %v3592 = vunpack.c.l.b16 %v2568
    %v3593 = vunpack.c.l.b16 %v2569
    %v3594 = vunpack.c.l.b16 %v2570
    %v3595 = vunpack.c.l.b16 %v2571
    %v3596 = vunpack.c.l.b16 %v2572
    %v3597 = vunpack.c.l.b16 %v2573
    %v3598 = vunpack.c.l.b16 %v2574
    %v3599 = vunpack.c.l.b16 %v2575
    %v3600 = vunpack.c.l.b16 %v2576
    %v3601 = vunpack.c.l.b16 %v2577
    %v3602 = vunpack.c.l.b16 %v2578
    %v3603 = vunpack.c.l.b16 %v2579
    %v3604 = vunpack.c.l.b16 %v2580
    %v3605 = vunpack.c.l.b16 %v2581
    %v3606 = vunpack.c.l.b16 %v2582
    %v3607 = vunpack.c.l.b16 %v2583
    %v3608 = vunpack.c.l.b16 %v2584
    %v3609 = vunpack.c.l.b16 %v2585
    %v3610 = vunpack.c.l.b16 %v2586
    %v3611 = vunpack.c.l.b16 %v2587
    %v3612 = vunpack.c.l.b16 %v2588
    %v3613 = vunpack.c.l.b16 %v2589
    %v3614 = vunpack.c.l.b16 %v2590
    %v3615 = vunpack.c.l.b16 %v2591
    %v3616 = vunpack.c.l.b16 %v2592
    %v3617 = vunpack.c.l.b16 %v2593
    %v3618 = vunpack.c.l.b16 %v2594
    %v3619 = vunpack.c.l.b16 %v2595
    %v3620 = vunpack.c.l.b16 %v2596
    %v3621 = vunpack.c.l.b16 %v2597
    %v3622 = vunpack.c.l.b16 %v2598
    %v3623 = vunpack.c.l.b16 %v2599
    %v3624 = vunpack.c.l.b16 %v2600
    %v3625 = vunpack.c.l.b16 %v2601
    %v3626 = vunpack.c.l.b16 %v2602
    %v3627 = vunpack.c.l.b16 %v2603
    %v3628 = vunpack.c.l.b16 %v2604
    %v3629 = vunpack.c.l.b16 %v2605
    %v3630 = vunpack.c.l.b16 %v2606
    %v3631 = vunpack.c.l.b16 %v2607
    %v3632 = vunpack.c.l.b16 %v2608
    %v3633 = vunpack.c.l.b16 %v2609
    %v3634 = vunpack.c.l.b16 %v2610
    %v3635 = vunpack.c.l.b16 %v2611
    %v3636 = vunpack.c.l.b16 %v2612
    %v3637 = vunpack.c.l.b16 %v2613
    %v3638 = vunpack.c.l.b16 %v2614
    %v3639 = vunpack.c.l.b16 %v2615
    %v3640 = vunpack.c.l.b16 %v2616
    %v3641 = vunpack.c.l.b16 %v2617
    %v3642 = vunpack.c.l.b16 %v2618
    %v3643 = vunpack.c.l.b16 %v2619
    %v3644 = vunpack.c.l.b16 %v2620
    %v3645 = vunpack.c.l.b16 %v2621
    %v3646 = vunpack.c.l.b16 %v2622
    %v3647 = vunpack.c.l.b16 %v2623
    %v3648 = vunpack.c.l.b16 %v2624
    %v3649 = vunpack.c.l.b16 %v2625
    %v3650 = vunpack.c.l.b16 %v2626
    %v3651 = vunpack.c.l.b16 %v2627
    %v3652 = vunpack.c.l.b16 %v2628
    %v3653 = vunpack.c.l.b16 %v2629
    %v3654 = vunpack.c.l.b16 %v2630
    %v3655 = vunpack.c.l.b16 %v2631
    %v3656 = vunpack.c.l.b16 %v2632
    %v3657 = vunpack.c.l.b16 %v2633
    %v3658 = vunpack.c.l.b16 %v2634
    %v3659 = vunpack.c.l.b16 %v2635
    %v3660 = vunpack.c.l.b16 %v2636
    %v3661 = vunpack.c.l.b16 %v2637
    %v3662 = vunpack.c.l.b16 %v2638
    %v3663 = vunpack.c.l.b16 %v2639
    %v3664 = vunpack.c.l.b16 %v2640
    %v3665 = vunpack.c.l.b16 %v2641
    %v3666 = vunpack.c.l.b16 %v2642
    %v3667 = vunpack.c.l.b16 %v2643
    %v3668 = vunpack.c.l.b16 %v2644
    %v3669 = vunpack.c.l.b16 %v2645
    %v3670 = vunpack.c.l.b16 %v2646
    %v3671 = vunpack.c.l.b16 %v2647
    %v3672 = vunpack.c.l.b16 %v2648
    %v3673 = vunpack.c.l.b16 %v2649
    %v3674 = vunpack.c.l.b16 %v2650
    %v3675 = vunpack.c.l.b16 %v2651
    %v3676 = vunpack.c.l.b16 %v2652
    %v3677 = vunpack.c.l.b16 %v2653
    %v3678 = vunpack.c.l.b16 %v2654
    %v3679 = vunpack.c.l.b16 %v2655
    %v3680 = vunpack.c.l.b16 %v2656
    %v3681 = vunpack.c.l.b16 %v2657
    %v3682 = vunpack.c.l.b16 %v2658
    %v3683 = vunpack.c.l.b16 %v2659
    %v3684 = vunpack.c.l.b16 %v2660
    %v3685 = vunpack.c.l.b16 %v2661
    %v3686 = vunpack.c.l.b16 %v2662
    %v3687 = vunpack.c.l.b16 %v2663
    %v3688 = vunpack.c.l.b16 %v2664
    %v3689 = vunpack.c.l.b16 %v2665
    %v3690 = vunpack.c.l.b16 %v2666
    %v3691 = vunpack.c.l.b16 %v2667
    %v3692 = vunpack.c.l.b16 %v2668
    %v3693 = vunpack.c.l.b16 %v2669
    %v3694 = vunpack.c.l.b16 %v2670
    %v3695 = vunpack.c.l.b16 %v2671
    %v3696 = vunpack.c.l.b16 %v2672
    %v3697 = vunpack.c.l.b16 %v2673
    %v3698 = vunpack.c.l.b16 %v2674
    %v3699 = vunpack.c.l.b16 %v2675
    %v3700 = vunpack.c.l.b16 %v2676
    %v3701 = vunpack.c.l.b16 %v2677
    %v3702 = vunpack.c.l.b16 %v2678
    %v3703 = vunpack.c.l.b16 %v2679
    %v3704 = vunpack.c.l.b16 %v2680
    %v3705 = vunpack.c.l.b16 %v2681
    %v3706 = vunpack.c.l.b16 %v2682
    %v3707 = vunpack.c.l.b16 %v2683
    %v3708 = vunpack.c.l.b16 %v2684
    %v3709 = vunpack.c.l.b16 %v2685
    %v3710 = vunpack.c.l.b16 %v2686
    %v3711 = vunpack.c.l.b16 %v2687
    %v3712 = vunpack.c.l.b16 %v2688
    %v3713 = vunpack.c.l.b16 %v2689
    %v3714 = vunpack.c.l.b16 %v2690
    %v3715 = vunpack.c.l.b16 %v2691
    %v3716 = vunpack.c.l.b16 %v2692
    %v3717 = vunpack.c.l.b16 %v2693
    %v3718 = vunpack.c.l.b16 %v2694
    %v3719 = vunpack.c.l.b16 %v2695
    %v3720 = vunpack.c.l.b16 %v2696
    %v3721 = vunpack.c.l.b16 %v2697
    %v3722 = vunpack.c.l.b16 %v2698
    %v3723 = vunpack.c.l.b16 %v2699
    %v3724 = vunpack.c.l.b16 %v2700
    %v3725 = vunpack.c.l.b16 %v2701
    %v3726 = vunpack.c.l.b16 %v2702
    %v3727 = vunpack.c.l.b16 %v2703
    %v3728 = vunpack.c.l.b16 %v2704
    %v3729 = vunpack.c.l.b16 %v2705
    %v3730 = vunpack.c.l.b16 %v2706
    %v3731 = vunpack.c.l.b16 %v2707
    %v3732 = vunpack.c.l.b16 %v2708
    %v3733 = vunpack.c.l.b16 %v2709
    %v3734 = vunpack.c.l.b16 %v2710
    %v3735 = vunpack.c.l.b16 %v2711
    %v3736 = vunpack.c.l.b16 %v2712
    %v3737 = vunpack.c.l.b16 %v2713
    %v3738 = vunpack.c.l.b16 %v2714
    %v3739 = vunpack.c.l.b16 %v2715
    %v3740 = vunpack.c.l.b16 %v2716
    %v3741 = vunpack.c.l.b16 %v2717
    %v3742 = vunpack.c.l.b16 %v2718
    %v3743 = vunpack.c.l.b16 %v2719
    %v3744 = vunpack.c.l.b16 %v2720
    %v3745 = vunpack.c.l.b16 %v2721
    %v3746 = vunpack.c.l.b16 %v2722
    %v3747 = vunpack.c.l.b16 %v2723
    %v3748 = vunpack.c.l.b16 %v2724
    %v3749 = vunpack.c.l.b16 %v2725
    %v3750 = vunpack.c.l.b16 %v2726
    %v3751 = vunpack.c.l.b16 %v2727
    %v3752 = vunpack.c.l.b16 %v2728
    %v3753 = vunpack.c.l.b16 %v2729
    %v3754 = vunpack.c.l.b16 %v2730
    %v3755 = vunpack.c.l.b16 %v2731
    %v3756 = vunpack.c.l.b16 %v2732
    %v3757 = vunpack.c.l.b16 %v2733
    %v3758 = vunpack.c.l.b16 %v2734
    %v3759 = vunpack.c.l.b16 %v2735
    %v3760 = vunpack.c.l.b16 %v2736
    %v3761 = vpack.c.b16 %v3250, %v3249
    %v3762 = vpack.c.b16 %v3252, %v3251
    %v3763 = vpack.c.b16 %v3254, %v3253
    %v3764 = vpack.c.b16 %v3256, %v3255
    %v3765 = vpack.c.b16 %v3258, %v3257
    %v3766 = vpack.c.b16 %v3260, %v3259
    %v3767 = vpack.c.b16 %v3262, %v3261
    %v3768 = vpack.c.b16 %v3264, %v3263
    %v3769 = vpack.c.b16 %v3266, %v3265
    %v3770 = vpack.c.b16 %v3268, %v3267
    %v3771 = vpack.c.b16 %v3270, %v3269
    %v3772 = vpack.c.b16 %v3272, %v3271
    %v3773 = vpack.c.b16 %v3274, %v3273
    %v3774 = vpack.c.b16 %v3276, %v3275
    %v3775 = vpack.c.b16 %v3278, %v3277
    %v3776 = vpack.c.b16 %v3280, %v3279
    %v3777 = vpack.c.b16 %v3282, %v3281
    %v3778 = vpack.c.b16 %v3284, %v3283
    %v3779 = vpack.c.b16 %v3286, %v3285
    %v3780 = vpack.c.b16 %v3288, %v3287
    %v3781 = vpack.c.b16 %v3290, %v3289
    %v3782 = vpack.c.b16 %v3292, %v3291
    %v3783 = vpack.c.b16 %v3294, %v3293
    %v3784 = vpack.c.b16 %v3296, %v3295
    %v3785 = vpack.c.b16 %v3298, %v3297
    %v3786 = vpack.c.b16 %v3300, %v3299
    %v3787 = vpack.c.b16 %v3302, %v3301
    %v3788 = vpack.c.b16 %v3304, %v3303
    %v3789 = vpack.c.b16 %v3306, %v3305
    %v3790 = vpack.c.b16 %v3308, %v3307
    %v3791 = vpack.c.b16 %v3310, %v3309
    %v3792 = vpack.c.b16 %v3312, %v3311
    %v3793 = vpack.c.b16 %v3314, %v3313
    %v3794 = vpack.c.b16 %v3316, %v3315
    %v3795 = vpack.c.b16 %v3318, %v3317
    %v3796 = vpack.c.b16 %v3320, %v3319
    %v3797 = vpack.c.b16 %v3322, %v3321
    %v3798 = vpack.c.b16 %v3324, %v3323
    %v3799 = vpack.c.b16 %v3326, %v3325
    %v3800 = vpack.c.b16 %v3328, %v3327
    %v3801 = vpack.c.b16 %v3330, %v3329
    %v3802 = vpack.c.b16 %v3332, %v3331
    %v3803 = vpack.c.b16 %v3334, %v3333
    %v3804 = vpack.c.b16 %v3336, %v3335
    %v3805 = vpack.c.b16 %v3338, %v3337
    %v3806 = vpack.c.b16 %v3340, %v3339
    %v3807 = vpack.c.b16 %v3342, %v3341
    %v3808 = vpack.c.b16 %v3344, %v3343
    %v3809 = vpack.c.b16 %v3346, %v3345
    %v3810 = vpack.c.b16 %v3348, %v3347
    %v3811 = vpack.c.b16 %v3350, %v3349
    %v3812 = vpack.c.b16 %v3352, %v3351
    %v3813 = vpack.c.b16 %v3354, %v3353
    %v3814 = vpack.c.b16 %v3356, %v3355
    %v3815 = vpack.c.b16 %v3358, %v3357
    %v3816 = vpack.c.b16 %v3360, %v3359
    %v3817 = vpack.c.b16 %v3362, %v3361
    %v3818 = vpack.c.b16 %v3364, %v3363
    %v3819 = vpack.c.b16 %v3366, %v3365
    %v3820 = vpack.c.b16 %v3368, %v3367
    %v3821 = vpack.c.b16 %v3370, %v3369
    %v3822 = vpack.c.b16 %v3372, %v3371
    %v3823 = vpack.c.b16 %v3374, %v3373
    %v3824 = vpack.c.b16 %v3376, %v3375
    %v3825 = vpack.c.b16 %v3378, %v3377
    %v3826 = vpack.c.b16 %v3380, %v3379
    %v3827 = vpack.c.b16 %v3382, %v3381
    %v3828 = vpack.c.b16 %v3384, %v3383
    %v3829 = vpack.c.b16 %v3386, %v3385
    %v3830 = vpack.c.b16 %v3388, %v3387
    %v3831 = vpack.c.b16 %v3390, %v3389
    %v3832 = vpack.c.b16 %v3392, %v3391
    %v3833 = vpack.c.b16 %v3394, %v3393
    %v3834 = vpack.c.b16 %v3396, %v3395
    %v3835 = vpack.c.b16 %v3398, %v3397
    %v3836 = vpack.c.b16 %v3400, %v3399
    %v3837 = vpack.c.b16 %v3402, %v3401
    %v3838 = vpack.c.b16 %v3404, %v3403
    %v3839 = vpack.c.b16 %v3406, %v3405
    %v3840 = vpack.c.b16 %v3408, %v3407
    %v3841 = vpack.c.b16 %v3410, %v3409
    %v3842 = vpack.c.b16 %v3412, %v3411
    %v3843 = vpack.c.b16 %v3414, %v3413
    %v3844 = vpack.c.b16 %v3416, %v3415
    %v3845 = vpack.c.b16 %v3418, %v3417
    %v3846 = vpack.c.b16 %v3420, %v3419
    %v3847 = vpack.c.b16 %v3422, %v3421
    %v3848 = vpack.c.b16 %v3424, %v3423
    %v3849 = vpack.c.b16 %v3426, %v3425
    %v3850 = vpack.c.b16 %v3428, %v3427
    %v3851 = vpack.c.b16 %v3430, %v3429
    %v3852 = vpack.c.b16 %v3432, %v3431
    %v3853 = vpack.c.b16 %v3434, %v3433
    %v3854 = vpack.c.b16 %v3436, %v3435
    %v3855 = vpack.c.b16 %v3438, %v3437
    %v3856 = vpack.c.b16 %v3440, %v3439
    %v3857 = vpack.c.b16 %v3442, %v3441
    %v3858 = vpack.c.b16 %v3444, %v3443
    %v3859 = vpack.c.b16 %v3446, %v3445
    %v3860 = vpack.c.b16 %v3448, %v3447
    %v3861 = vpack.c.b16 %v3450, %v3449
    %v3862 = vpack.c.b16 %v3452, %v3451
    %v3863 = vpack.c.b16 %v3454, %v3453
    %v3864 = vpack.c.b16 %v3456, %v3455
    %v3865 = vpack.c.b16 %v3458, %v3457
    %v3866 = vpack.c.b16 %v3460, %v3459
    %v3867 = vpack.c.b16 %v3462, %v3461
    %v3868 = vpack.c.b16 %v3464, %v3463
    %v3869 = vpack.c.b16 %v3466, %v3465
    %v3870 = vpack.c.b16 %v3468, %v3467
    %v3871 = vpack.c.b16 %v3470, %v3469
    %v3872 = vpack.c.b16 %v3472, %v3471
    %v3873 = vpack.c.b16 %v3474, %v3473
    %v3874 = vpack.c.b16 %v3476, %v3475
    %v3875 = vpack.c.b16 %v3478, %v3477
    %v3876 = vpack.c.b16 %v3480, %v3479
    %v3877 = vpack.c.b16 %v3482, %v3481
    %v3878 = vpack.c.b16 %v3484, %v3483
    %v3879 = vpack.c.b16 %v3486, %v3485
    %v3880 = vpack.c.b16 %v3488, %v3487
    %v3881 = vpack.c.b16 %v3490, %v3489
    %v3882 = vpack.c.b16 %v3492, %v3491
    %v3883 = vpack.c.b16 %v3494, %v3493
    %v3884 = vpack.c.b16 %v3496, %v3495
    %v3885 = vpack.c.b16 %v3498, %v3497
    %v3886 = vpack.c.b16 %v3500, %v3499
    %v3887 = vpack.c.b16 %v3502, %v3501
    %v3888 = vpack.c.b16 %v3504, %v3503
    %v3889 = vpack.c.b16 %v3506, %v3505
    %v3890 = vpack.c.b16 %v3508, %v3507
    %v3891 = vpack.c.b16 %v3510, %v3509
    %v3892 = vpack.c.b16 %v3512, %v3511
    %v3893 = vpack.c.b16 %v3514, %v3513
    %v3894 = vpack.c.b16 %v3516, %v3515
    %v3895 = vpack.c.b16 %v3518, %v3517
    %v3896 = vpack.c.b16 %v3520, %v3519
    %v3897 = vpack.c.b16 %v3522, %v3521
    %v3898 = vpack.c.b16 %v3524, %v3523
    %v3899 = vpack.c.b16 %v3526, %v3525
    %v3900 = vpack.c.b16 %v3528, %v3527
    %v3901 = vpack.c.b16 %v3530, %v3529
    %v3902 = vpack.c.b16 %v3532, %v3531
    %v3903 = vpack.c.b16 %v3534, %v3533
    %v3904 = vpack.c.b16 %v3536, %v3535
    %v3905 = vpack.c.b16 %v3538, %v3537
    %v3906 = vpack.c.b16 %v3540, %v3539
    %v3907 = vpack.c.b16 %v3542, %v3541
    %v3908 = vpack.c.b16 %v3544, %v3543
    %v3909 = vpack.c.b16 %v3546, %v3545
    %v3910 = vpack.c.b16 %v3548, %v3547
    %v3911 = vpack.c.b16 %v3550, %v3549
    %v3912 = vpack.c.b16 %v3552, %v3551
    %v3913 = vpack.c.b16 %v3554, %v3553
    %v3914 = vpack.c.b16 %v3556, %v3555
    %v3915 = vpack.c.b16 %v3558, %v3557
    %v3916 = vpack.c.b16 %v3560, %v3559
    %v3917 = vpack.c.b16 %v3562, %v3561
    %v3918 = vpack.c.b16 %v3564, %v3563
    %v3919 = vpack.c.b16 %v3566, %v3565
    %v3920 = vpack.c.b16 %v3568, %v3567
    %v3921 = vpack.c.b16 %v3570, %v3569
    %v3922 = vpack.c.b16 %v3572, %v3571
    %v3923 = vpack.c.b16 %v3574, %v3573
    %v3924 = vpack.c.b16 %v3576, %v3575
    %v3925 = vpack.c.b16 %v3578, %v3577
    %v3926 = vpack.c.b16 %v3580, %v3579
    %v3927 = vpack.c.b16 %v3582, %v3581
    %v3928 = vpack.c.b16 %v3584, %v3583
    %v3929 = vpack.c.b16 %v3586, %v3585
    %v3930 = vpack.c.b16 %v3588, %v3587
    %v3931 = vpack.c.b16 %v3590, %v3589
    %v3932 = vpack.c.b16 %v3592, %v3591
    %v3933 = vpack.c.b16 %v3594, %v3593
    %v3934 = vpack.c.b16 %v3596, %v3595
    %v3935 = vpack.c.b16 %v3598, %v3597
    %v3936 = vpack.c.b16 %v3600, %v3599
    %v3937 = vpack.c.b16 %v3602, %v3601
    %v3938 = vpack.c.b16 %v3604, %v3603
    %v3939 = vpack.c.b16 %v3606, %v3605
    %v3940 = vpack.c.b16 %v3608, %v3607
    %v3941 = vpack.c.b16 %v3610, %v3609
    %v3942 = vpack.c.b16 %v3612, %v3611
    %v3943 = vpack.c.b16 %v3614, %v3613
    %v3944 = vpack.c.b16 %v3616, %v3615
    %v3945 = vpack.c.b16 %v3618, %v3617
    %v3946 = vpack.c.b16 %v3620, %v3619
    %v3947 = vpack.c.b16 %v3622, %v3621
    %v3948 = vpack.c.b16 %v3624, %v3623
    %v3949 = vpack.c.b16 %v3626, %v3625
    %v3950 = vpack.c.b16 %v3628, %v3627
    %v3951 = vpack.c.b16 %v3630, %v3629
    %v3952 = vpack.c.b16 %v3632, %v3631
    %v3953 = vpack.c.b16 %v3634, %v3633
    %v3954 = vpack.c.b16 %v3636, %v3635
    %v3955 = vpack.c.b16 %v3638, %v3637
    %v3956 = vpack.c.b16 %v3640, %v3639
    %v3957 = vpack.c.b16 %v3642, %v3641
    %v3958 = vpack.c.b16 %v3644, %v3643
    %v3959 = vpack.c.b16 %v3646, %v3645
    %v3960 = vpack.c.b16 %v3648, %v3647
    %v3961 = vpack.c.b16 %v3650, %v3649
    %v3962 = vpack.c.b16 %v3652, %v3651
    %v3963 = vpack.c.b16 %v3654, %v3653
    %v3964 = vpack.c.b16 %v3656, %v3655
    %v3965 = vpack.c.b16 %v3658, %v3657
    %v3966 = vpack.c.b16 %v3660, %v3659
    %v3967 = vpack.c.b16 %v3662, %v3661
    %v3968 = vpack.c.b16 %v3664, %v3663
    %v3969 = vpack.c.b16 %v3666, %v3665
    %v3970 = vpack.c.b16 %v3668, %v3667
    %v3971 = vpack.c.b16 %v3670, %v3669
    %v3972 = vpack.c.b16 %v3672, %v3671
    %v3973 = vpack.c.b16 %v3674, %v3673
    %v3974 = vpack.c.b16 %v3676, %v3675
    %v3975 = vpack.c.b16 %v3678, %v3677
    %v3976 = vpack.c.b16 %v3680, %v3679
    %v3977 = vpack.c.b16 %v3682, %v3681
    %v3978 = vpack.c.b16 %v3684, %v3683
    %v3979 = vpack.c.b16 %v3686, %v3685
    %v3980 = vpack.c.b16 %v3688, %v3687
    %v3981 = vpack.c.b16 %v3690, %v3689
    %v3982 = vpack.c.b16 %v3692, %v3691
    %v3983 = vpack.c.b16 %v3694, %v3693
    %v3984 = vpack.c.b16 %v3696, %v3695
    %v3985 = vpack.c.b16 %v3698, %v3697
    %v3986 = vpack.c.b16 %v3700, %v3699
    %v3987 = vpack.c.b16 %v3702, %v3701
    %v3988 = vpack.c.b16 %v3704, %v3703
    %v3989 = vpack.c.b16 %v3706, %v3705
    %v3990 = vpack.c.b16 %v3708, %v3707
    %v3991 = vpack.c.b16 %v3710, %v3709
    %v3992 = vpack.c.b16 %v3712, %v3711
    %v3993 = vpack.c.b16 %v3714, %v3713
    %v3994 = vpack.c.b16 %v3716, %v3715
    %v3995 = vpack.c.b16 %v3718, %v3717
    %v3996 = vpack.c.b16 %v3720, %v3719
    %v3997 = vpack.c.b16 %v3722, %v3721
    %v3998 = vpack.c.b16 %v3724, %v3723
    %v3999 = vpack.c.b16 %v3726, %v3725
    %v4000 = vpack.c.b16 %v3728, %v3727
    %v4001 = vpack.c.b16 %v3730, %v3729
    %v4002 = vpack.c.b16 %v3732, %v3731
    %v4003 = vpack.c.b16 %v3734, %v3733
    %v4004 = vpack.c.b16 %v3736, %v3735
    %v4005 = vpack.c.b16 %v3738, %v3737
    %v4006 = vpack.c.b16 %v3740, %v3739
    %v4007 = vpack.c.b16 %v3742, %v3741
    %v4008 = vpack.c.b16 %v3744, %v3743
    %v4009 = vpack.c.b16 %v3746, %v3745
    %v4010 = vpack.c.b16 %v3748, %v3747
    %v4011 = vpack.c.b16 %v3750, %v3749
    %v4012 = vpack.c.b16 %v3752, %v3751
    %v4013 = vpack.c.b16 %v3754, %v3753
    %v4014 = vpack.c.b16 %v3756, %v3755
    %v4015 = vpack.c.b16 %v3758, %v3757
    %v4016 = vpack.c.b16 %v3760, %v3759
    %4273 = vmatpush.bf16.msra.mxu0 %v3768
    %4274 = vmatpush.bf16.msra.mxu0 %v3767
    %4275 = vmatpush.bf16.msra.mxu0 %v3766
    %4276 = vmatpush.bf16.msra.mxu0 %v3765
    %4277 = vmatpush.bf16.msra.mxu0 %v3764
    %4278 = vmatpush.bf16.msra.mxu0 %v3763
    %4279 = vmatpush.bf16.msra.mxu0 %v3762
    %4280 = vmatpush.bf16.msra.mxu0 %v3761
    %4281 = vmatmul.bf16.gmra.mxu0 %v2193
    %v4282 = vpop.f32.mrf.mxu0
    %v4283 = vadd.f32 0.0, %v4282
    %v4284 = vpop.f32.mrf.mxu0
    %4285 = vdwg.mxu0
    %4286 = vmatpush.bf16.msra.mxu0 %v3776
    %4287 = vmatpush.bf16.msra.mxu0 %v3775
    %4288 = vmatpush.bf16.msra.mxu0 %v3774
    %4289 = vmatpush.bf16.msra.mxu0 %v3773
    %4290 = vmatpush.bf16.msra.mxu0 %v3772
    %4291 = vmatpush.bf16.msra.mxu0 %v3771
    %4292 = vmatpush.bf16.msra.mxu0 %v3770
    %4293 = vmatpush.bf16.msra.mxu0 %v3769
    %4294 = vmatmul.bf16.gmra.mxu0 %v2194
    %v4295 = vpop.f32.mrf.mxu0
    %v4296 = vadd.f32 %v4283, %v4295
    %v4297 = vpop.f32.mrf.mxu0
    %4298 = vdwg.mxu0
    %4299 = vmatpush.bf16.msra.mxu0 %v3784
    %4300 = vmatpush.bf16.msra.mxu0 %v3783
    %4301 = vmatpush.bf16.msra.mxu0 %v3782
    %4302 = vmatpush.bf16.msra.mxu0 %v3781
    %4303 = vmatpush.bf16.msra.mxu0 %v3780
    %4304 = vmatpush.bf16.msra.mxu0 %v3779
    %4305 = vmatpush.bf16.msra.mxu0 %v3778
    %4306 = vmatpush.bf16.msra.mxu0 %v3777
    %4307 = vmatmul.bf16.gmra.mxu0 %v2195
    %v4308 = vpop.f32.mrf.mxu0
    %v4309 = vadd.f32 %v4296, %v4308
    %v4310 = vpop.f32.mrf.mxu0
    %4311 = vdwg.mxu0
    %4312 = vmatpush.bf16.msra.mxu0 %v3792
    %4313 = vmatpush.bf16.msra.mxu0 %v3791
    %4314 = vmatpush.bf16.msra.mxu0 %v3790
    %4315 = vmatpush.bf16.msra.mxu0 %v3789
    %4316 = vmatpush.bf16.msra.mxu0 %v3788
    %4317 = vmatpush.bf16.msra.mxu0 %v3787
    %4318 = vmatpush.bf16.msra.mxu0 %v3786
    %4319 = vmatpush.bf16.msra.mxu0 %v3785
    %4320 = vmatmul.bf16.gmra.mxu0 %v2196
    %v4321 = vpop.f32.mrf.mxu0
    %v4322 = vadd.f32 %v4309, %v4321
    %v4323 = vpop.f32.mrf.mxu0
    %4324 = vdwg.mxu0
    %4325 = vmatpush.bf16.msra.mxu0 %v3800
    %4326 = vmatpush.bf16.msra.mxu0 %v3799
    %4327 = vmatpush.bf16.msra.mxu0 %v3798
    %4328 = vmatpush.bf16.msra.mxu0 %v3797
    %4329 = vmatpush.bf16.msra.mxu0 %v3796
    %4330 = vmatpush.bf16.msra.mxu0 %v3795
    %4331 = vmatpush.bf16.msra.mxu0 %v3794
    %4332 = vmatpush.bf16.msra.mxu0 %v3793
    %4333 = vmatmul.bf16.gmra.mxu0 %v2197
    %v4334 = vpop.f32.mrf.mxu0
    %v4335 = vadd.f32 %v4322, %v4334
    %v4336 = vpop.f32.mrf.mxu0
    %4337 = vdwg.mxu0
    %4338 = vmatpush.bf16.msra.mxu0 %v3808
    %4339 = vmatpush.bf16.msra.mxu0 %v3807
    %4340 = vmatpush.bf16.msra.mxu0 %v3806
    %4341 = vmatpush.bf16.msra.mxu0 %v3805
    %4342 = vmatpush.bf16.msra.mxu0 %v3804
    %4343 = vmatpush.bf16.msra.mxu0 %v3803
    %4344 = vmatpush.bf16.msra.mxu0 %v3802
    %4345 = vmatpush.bf16.msra.mxu0 %v3801
    %4346 = vmatmul.bf16.gmra.mxu0 %v2198
    %v4347 = vpop.f32.mrf.mxu0
    %v4348 = vadd.f32 %v4335, %v4347
    %v4349 = vpop.f32.mrf.mxu0
    %4350 = vdwg.mxu0
    %4351 = vmatpush.bf16.msra.mxu0 %v3816
    %4352 = vmatpush.bf16.msra.mxu0 %v3815
    %4353 = vmatpush.bf16.msra.mxu0 %v3814
    %4354 = vmatpush.bf16.msra.mxu0 %v3813
    %4355 = vmatpush.bf16.msra.mxu0 %v3812
    %4356 = vmatpush.bf16.msra.mxu0 %v3811
    %4357 = vmatpush.bf16.msra.mxu0 %v3810
    %4358 = vmatpush.bf16.msra.mxu0 %v3809
    %4359 = vmatmul.bf16.gmra.mxu0 %v2199
    %v4360 = vpop.f32.mrf.mxu0
    %v4361 = vadd.f32 %v4348, %v4360
    %v4362 = vpop.f32.mrf.mxu0
    %4363 = vdwg.mxu0
    %4364 = vmatpush.bf16.msra.mxu0 %v3824
    %4365 = vmatpush.bf16.msra.mxu0 %v3823
    %4366 = vmatpush.bf16.msra.mxu0 %v3822
    %4367 = vmatpush.bf16.msra.mxu0 %v3821
    %4368 = vmatpush.bf16.msra.mxu0 %v3820
    %4369 = vmatpush.bf16.msra.mxu0 %v3819
    %4370 = vmatpush.bf16.msra.mxu0 %v3818
    %4371 = vmatpush.bf16.msra.mxu0 %v3817
    %4372 = vmatmul.bf16.gmra.mxu0 %v2200
    %v4373 = vpop.f32.mrf.mxu0
    %v4374 = vadd.f32 %v4361, %v4373
    %v4375 = vpop.f32.mrf.mxu0
    %4376 = vdwg.mxu0
    %4377 = vmatpush.bf16.msra.mxu0 %v3832
    %4378 = vmatpush.bf16.msra.mxu0 %v3831
    %4379 = vmatpush.bf16.msra.mxu0 %v3830
    %4380 = vmatpush.bf16.msra.mxu0 %v3829
    %4381 = vmatpush.bf16.msra.mxu0 %v3828
    %4382 = vmatpush.bf16.msra.mxu0 %v3827
    %4383 = vmatpush.bf16.msra.mxu0 %v3826
    %4384 = vmatpush.bf16.msra.mxu0 %v3825
    %4385 = vmatmul.bf16.gmra.mxu0 %v2201
    %v4386 = vpop.f32.mrf.mxu0
    %v4387 = vadd.f32 %v4374, %v4386
    %v4388 = vpop.f32.mrf.mxu0
    %4389 = vdwg.mxu0
    %4390 = vmatpush.bf16.msra.mxu0 %v3840
    %4391 = vmatpush.bf16.msra.mxu0 %v3839
    %4392 = vmatpush.bf16.msra.mxu0 %v3838
    %4393 = vmatpush.bf16.msra.mxu0 %v3837
    %4394 = vmatpush.bf16.msra.mxu0 %v3836
    %4395 = vmatpush.bf16.msra.mxu0 %v3835
    %4396 = vmatpush.bf16.msra.mxu0 %v3834
    %4397 = vmatpush.bf16.msra.mxu0 %v3833
    %4398 = vmatmul.bf16.gmra.mxu0 %v2202
    %v4399 = vpop.f32.mrf.mxu0
    %v4400 = vadd.f32 %v4387, %v4399
    %v4401 = vpop.f32.mrf.mxu0
    %4402 = vdwg.mxu0
    %4403 = vmatpush.bf16.msra.mxu0 %v3848
    %4404 = vmatpush.bf16.msra.mxu0 %v3847
    %4405 = vmatpush.bf16.msra.mxu0 %v3846
    %4406 = vmatpush.bf16.msra.mxu0 %v3845
    %4407 = vmatpush.bf16.msra.mxu0 %v3844
    %4408 = vmatpush.bf16.msra.mxu0 %v3843
    %4409 = vmatpush.bf16.msra.mxu0 %v3842
    %4410 = vmatpush.bf16.msra.mxu0 %v3841
    %4411 = vmatmul.bf16.gmra.mxu0 %v2203
    %v4412 = vpop.f32.mrf.mxu0
    %v4413 = vadd.f32 %v4400, %v4412
    %v4414 = vpop.f32.mrf.mxu0
    %4415 = vdwg.mxu0
    %4416 = vmatpush.bf16.msra.mxu0 %v3856
    %4417 = vmatpush.bf16.msra.mxu0 %v3855
    %4418 = vmatpush.bf16.msra.mxu0 %v3854
    %4419 = vmatpush.bf16.msra.mxu0 %v3853
    %4420 = vmatpush.bf16.msra.mxu0 %v3852
    %4421 = vmatpush.bf16.msra.mxu0 %v3851
    %4422 = vmatpush.bf16.msra.mxu0 %v3850
    %4423 = vmatpush.bf16.msra.mxu0 %v3849
    %4424 = vmatmul.bf16.gmra.mxu0 %v2204
    %v4425 = vpop.f32.mrf.mxu0
    %v4426 = vadd.f32 %v4413, %v4425
    %v4427 = vpop.f32.mrf.mxu0
    %4428 = vdwg.mxu0
    %4429 = vmatpush.bf16.msra.mxu0 %v3864
    %4430 = vmatpush.bf16.msra.mxu0 %v3863
    %4431 = vmatpush.bf16.msra.mxu0 %v3862
    %4432 = vmatpush.bf16.msra.mxu0 %v3861
    %4433 = vmatpush.bf16.msra.mxu0 %v3860
    %4434 = vmatpush.bf16.msra.mxu0 %v3859
    %4435 = vmatpush.bf16.msra.mxu0 %v3858
    %4436 = vmatpush.bf16.msra.mxu0 %v3857
    %4437 = vmatmul.bf16.gmra.mxu0 %v2205
    %v4438 = vpop.f32.mrf.mxu0
    %v4439 = vadd.f32 %v4426, %v4438
    %v4440 = vpop.f32.mrf.mxu0
    %4441 = vdwg.mxu0
    %4442 = vmatpush.bf16.msra.mxu0 %v3872
    %4443 = vmatpush.bf16.msra.mxu0 %v3871
    %4444 = vmatpush.bf16.msra.mxu0 %v3870
    %4445 = vmatpush.bf16.msra.mxu0 %v3869
    %4446 = vmatpush.bf16.msra.mxu0 %v3868
    %4447 = vmatpush.bf16.msra.mxu0 %v3867
    %4448 = vmatpush.bf16.msra.mxu0 %v3866
    %4449 = vmatpush.bf16.msra.mxu0 %v3865
    %4450 = vmatmul.bf16.gmra.mxu0 %v2206
    %v4451 = vpop.f32.mrf.mxu0
    %v4452 = vadd.f32 %v4439, %v4451
    %v4453 = vpop.f32.mrf.mxu0
    %4454 = vdwg.mxu0
    %4455 = vmatpush.bf16.msra.mxu0 %v3880
    %4456 = vmatpush.bf16.msra.mxu0 %v3879
    %4457 = vmatpush.bf16.msra.mxu0 %v3878
    %4458 = vmatpush.bf16.msra.mxu0 %v3877
    %4459 = vmatpush.bf16.msra.mxu0 %v3876
    %4460 = vmatpush.bf16.msra.mxu0 %v3875
    %4461 = vmatpush.bf16.msra.mxu0 %v3874
    %4462 = vmatpush.bf16.msra.mxu0 %v3873
    %4463 = vmatmul.bf16.gmra.mxu0 %v2207
    %v4464 = vpop.f32.mrf.mxu0
    %v4465 = vadd.f32 %v4452, %v4464
    %v4466 = vpop.f32.mrf.mxu0
    %4467 = vdwg.mxu0
    %4468 = vmatpush.bf16.msra.mxu0 %v3888
    %4469 = vmatpush.bf16.msra.mxu0 %v3887
    %4470 = vmatpush.bf16.msra.mxu0 %v3886
    %4471 = vmatpush.bf16.msra.mxu0 %v3885
    %4472 = vmatpush.bf16.msra.mxu0 %v3884
    %4473 = vmatpush.bf16.msra.mxu0 %v3883
    %4474 = vmatpush.bf16.msra.mxu0 %v3882
    %4475 = vmatpush.bf16.msra.mxu0 %v3881
    %4476 = vmatmul.bf16.gmra.mxu0 %v2208
    %v4477 = vpop.f32.mrf.mxu0
    %v4478 = vadd.f32 %v4465, %v4477
    %v4479 = vpop.f32.mrf.mxu0
    %4480 = vdwg.mxu0
    %4481 = vmatpush.bf16.msra.mxu0 %v3896
    %4482 = vmatpush.bf16.msra.mxu0 %v3895
    %4483 = vmatpush.bf16.msra.mxu0 %v3894
    %4484 = vmatpush.bf16.msra.mxu0 %v3893
    %4485 = vmatpush.bf16.msra.mxu0 %v3892
    %4486 = vmatpush.bf16.msra.mxu0 %v3891
    %4487 = vmatpush.bf16.msra.mxu0 %v3890
    %4488 = vmatpush.bf16.msra.mxu0 %v3889
    %4489 = vmatmul.bf16.gmra.mxu0 %v2209
    %v4490 = vpop.f32.mrf.mxu0
    %v4491 = vadd.f32 %v4478, %v4490
    %v4492 = vpop.f32.mrf.mxu0
    %4493 = vdwg.mxu0
    %4494 = vmatpush.bf16.msra.mxu0 %v3904
    %4495 = vmatpush.bf16.msra.mxu0 %v3903
    %4496 = vmatpush.bf16.msra.mxu0 %v3902
    %4497 = vmatpush.bf16.msra.mxu0 %v3901
    %4498 = vmatpush.bf16.msra.mxu0 %v3900
    %4499 = vmatpush.bf16.msra.mxu0 %v3899
    %4500 = vmatpush.bf16.msra.mxu0 %v3898
    %4501 = vmatpush.bf16.msra.mxu0 %v3897
    %4502 = vmatmul.bf16.gmra.mxu0 %v2210
    %v4503 = vpop.f32.mrf.mxu0
    %v4504 = vadd.f32 %v4491, %v4503
    %v4505 = vpop.f32.mrf.mxu0
    %4506 = vdwg.mxu0
    %4507 = vmatpush.bf16.msra.mxu0 %v3912
    %4508 = vmatpush.bf16.msra.mxu0 %v3911
    %4509 = vmatpush.bf16.msra.mxu0 %v3910
    %4510 = vmatpush.bf16.msra.mxu0 %v3909
    %4511 = vmatpush.bf16.msra.mxu0 %v3908
    %4512 = vmatpush.bf16.msra.mxu0 %v3907
    %4513 = vmatpush.bf16.msra.mxu0 %v3906
    %4514 = vmatpush.bf16.msra.mxu0 %v3905
    %4515 = vmatmul.bf16.gmra.mxu0 %v2211
    %v4516 = vpop.f32.mrf.mxu0
    %v4517 = vadd.f32 %v4504, %v4516
    %v4518 = vpop.f32.mrf.mxu0
    %4519 = vdwg.mxu0
    %4520 = vmatpush.bf16.msra.mxu0 %v3920
    %4521 = vmatpush.bf16.msra.mxu0 %v3919
    %4522 = vmatpush.bf16.msra.mxu0 %v3918
    %4523 = vmatpush.bf16.msra.mxu0 %v3917
    %4524 = vmatpush.bf16.msra.mxu0 %v3916
    %4525 = vmatpush.bf16.msra.mxu0 %v3915
    %4526 = vmatpush.bf16.msra.mxu0 %v3914
    %4527 = vmatpush.bf16.msra.mxu0 %v3913
    %4528 = vmatmul.bf16.gmra.mxu0 %v2212
    %v4529 = vpop.f32.mrf.mxu0
    %v4530 = vadd.f32 %v4517, %v4529
    %v4531 = vpop.f32.mrf.mxu0
    %4532 = vdwg.mxu0
    %4533 = vmatpush.bf16.msra.mxu0 %v3928
    %4534 = vmatpush.bf16.msra.mxu0 %v3927
    %4535 = vmatpush.bf16.msra.mxu0 %v3926
    %4536 = vmatpush.bf16.msra.mxu0 %v3925
    %4537 = vmatpush.bf16.msra.mxu0 %v3924
    %4538 = vmatpush.bf16.msra.mxu0 %v3923
    %4539 = vmatpush.bf16.msra.mxu0 %v3922
    %4540 = vmatpush.bf16.msra.mxu0 %v3921
    %4541 = vmatmul.bf16.gmra.mxu0 %v2213
    %v4542 = vpop.f32.mrf.mxu0
    %v4543 = vadd.f32 %v4530, %v4542
    %v4544 = vpop.f32.mrf.mxu0
    %4545 = vdwg.mxu0
    %4546 = vmatpush.bf16.msra.mxu0 %v3936
    %4547 = vmatpush.bf16.msra.mxu0 %v3935
    %4548 = vmatpush.bf16.msra.mxu0 %v3934
    %4549 = vmatpush.bf16.msra.mxu0 %v3933
    %4550 = vmatpush.bf16.msra.mxu0 %v3932
    %4551 = vmatpush.bf16.msra.mxu0 %v3931
    %4552 = vmatpush.bf16.msra.mxu0 %v3930
    %4553 = vmatpush.bf16.msra.mxu0 %v3929
    %4554 = vmatmul.bf16.gmra.mxu0 %v2214
    %v4555 = vpop.f32.mrf.mxu0
    %v4556 = vadd.f32 %v4543, %v4555
    %v4557 = vpop.f32.mrf.mxu0
    %4558 = vdwg.mxu0
    %4559 = vmatpush.bf16.msra.mxu0 %v3944
    %4560 = vmatpush.bf16.msra.mxu0 %v3943
    %4561 = vmatpush.bf16.msra.mxu0 %v3942
    %4562 = vmatpush.bf16.msra.mxu0 %v3941
    %4563 = vmatpush.bf16.msra.mxu0 %v3940
    %4564 = vmatpush.bf16.msra.mxu0 %v3939
    %4565 = vmatpush.bf16.msra.mxu0 %v3938
    %4566 = vmatpush.bf16.msra.mxu0 %v3937
    %4567 = vmatmul.bf16.gmra.mxu0 %v2215
    %v4568 = vpop.f32.mrf.mxu0
    %v4569 = vadd.f32 %v4556, %v4568
    %v4570 = vpop.f32.mrf.mxu0
    %4571 = vdwg.mxu0
    %4572 = vmatpush.bf16.msra.mxu0 %v3952
    %4573 = vmatpush.bf16.msra.mxu0 %v3951
    %4574 = vmatpush.bf16.msra.mxu0 %v3950
    %4575 = vmatpush.bf16.msra.mxu0 %v3949
    %4576 = vmatpush.bf16.msra.mxu0 %v3948
    %4577 = vmatpush.bf16.msra.mxu0 %v3947
    %4578 = vmatpush.bf16.msra.mxu0 %v3946
    %4579 = vmatpush.bf16.msra.mxu0 %v3945
    %4580 = vmatmul.bf16.gmra.mxu0 %v2216
    %v4581 = vpop.f32.mrf.mxu0
    %v4582 = vadd.f32 %v4569, %v4581
    %v4583 = vpop.f32.mrf.mxu0
    %4584 = vdwg.mxu0
    %4585 = vmatpush.bf16.msra.mxu0 %v3960
    %4586 = vmatpush.bf16.msra.mxu0 %v3959
    %4587 = vmatpush.bf16.msra.mxu0 %v3958
    %4588 = vmatpush.bf16.msra.mxu0 %v3957
    %4589 = vmatpush.bf16.msra.mxu0 %v3956
    %4590 = vmatpush.bf16.msra.mxu0 %v3955
    %4591 = vmatpush.bf16.msra.mxu0 %v3954
    %4592 = vmatpush.bf16.msra.mxu0 %v3953
    %4593 = vmatmul.bf16.gmra.mxu0 %v2217
    %v4594 = vpop.f32.mrf.mxu0
    %v4595 = vadd.f32 %v4582, %v4594
    %v4596 = vpop.f32.mrf.mxu0
    %4597 = vdwg.mxu0
    %4598 = vmatpush.bf16.msra.mxu0 %v3968
    %4599 = vmatpush.bf16.msra.mxu0 %v3967
    %4600 = vmatpush.bf16.msra.mxu0 %v3966
    %4601 = vmatpush.bf16.msra.mxu0 %v3965
    %4602 = vmatpush.bf16.msra.mxu0 %v3964
    %4603 = vmatpush.bf16.msra.mxu0 %v3963
    %4604 = vmatpush.bf16.msra.mxu0 %v3962
    %4605 = vmatpush.bf16.msra.mxu0 %v3961
    %4606 = vmatmul.bf16.gmra.mxu0 %v2218
    %v4607 = vpop.f32.mrf.mxu0
    %v4608 = vadd.f32 %v4595, %v4607
    %v4609 = vpop.f32.mrf.mxu0
    %4610 = vdwg.mxu0
    %4611 = vmatpush.bf16.msra.mxu0 %v3976
    %4612 = vmatpush.bf16.msra.mxu0 %v3975
    %4613 = vmatpush.bf16.msra.mxu0 %v3974
    %4614 = vmatpush.bf16.msra.mxu0 %v3973
    %4615 = vmatpush.bf16.msra.mxu0 %v3972
    %4616 = vmatpush.bf16.msra.mxu0 %v3971
    %4617 = vmatpush.bf16.msra.mxu0 %v3970
    %4618 = vmatpush.bf16.msra.mxu0 %v3969
    %4619 = vmatmul.bf16.gmra.mxu0 %v2219
    %v4620 = vpop.f32.mrf.mxu0
    %v4621 = vadd.f32 %v4608, %v4620
    %v4622 = vpop.f32.mrf.mxu0
    %4623 = vdwg.mxu0
    %4624 = vmatpush.bf16.msra.mxu0 %v3984
    %4625 = vmatpush.bf16.msra.mxu0 %v3983
    %4626 = vmatpush.bf16.msra.mxu0 %v3982
    %4627 = vmatpush.bf16.msra.mxu0 %v3981
    %4628 = vmatpush.bf16.msra.mxu0 %v3980
    %4629 = vmatpush.bf16.msra.mxu0 %v3979
    %4630 = vmatpush.bf16.msra.mxu0 %v3978
    %4631 = vmatpush.bf16.msra.mxu0 %v3977
    %4632 = vmatmul.bf16.gmra.mxu0 %v2220
    %v4633 = vpop.f32.mrf.mxu0
    %v4634 = vadd.f32 %v4621, %v4633
    %v4635 = vpop.f32.mrf.mxu0
    %4636 = vdwg.mxu0
    %4637 = vmatpush.bf16.msra.mxu0 %v3992
    %4638 = vmatpush.bf16.msra.mxu0 %v3991
    %4639 = vmatpush.bf16.msra.mxu0 %v3990
    %4640 = vmatpush.bf16.msra.mxu0 %v3989
    %4641 = vmatpush.bf16.msra.mxu0 %v3988
    %4642 = vmatpush.bf16.msra.mxu0 %v3987
    %4643 = vmatpush.bf16.msra.mxu0 %v3986
    %4644 = vmatpush.bf16.msra.mxu0 %v3985
    %4645 = vmatmul.bf16.gmra.mxu0 %v2221
    %v4646 = vpop.f32.mrf.mxu0
    %v4647 = vadd.f32 %v4634, %v4646
    %v4648 = vpop.f32.mrf.mxu0
    %4649 = vdwg.mxu0
    %4650 = vmatpush.bf16.msra.mxu0 %v4000
    %4651 = vmatpush.bf16.msra.mxu0 %v3999
    %4652 = vmatpush.bf16.msra.mxu0 %v3998
    %4653 = vmatpush.bf16.msra.mxu0 %v3997
    %4654 = vmatpush.bf16.msra.mxu0 %v3996
    %4655 = vmatpush.bf16.msra.mxu0 %v3995
    %4656 = vmatpush.bf16.msra.mxu0 %v3994
    %4657 = vmatpush.bf16.msra.mxu0 %v3993
    %4658 = vmatmul.bf16.gmra.mxu0 %v2222
    %v4659 = vpop.f32.mrf.mxu0
    %v4660 = vadd.f32 %v4647, %v4659
    %v4661 = vpop.f32.mrf.mxu0
    %4662 = vdwg.mxu0
    %4663 = vmatpush.bf16.msra.mxu0 %v4008
    %4664 = vmatpush.bf16.msra.mxu0 %v4007
    %4665 = vmatpush.bf16.msra.mxu0 %v4006
    %4666 = vmatpush.bf16.msra.mxu0 %v4005
    %4667 = vmatpush.bf16.msra.mxu0 %v4004
    %4668 = vmatpush.bf16.msra.mxu0 %v4003
    %4669 = vmatpush.bf16.msra.mxu0 %v4002
    %4670 = vmatpush.bf16.msra.mxu0 %v4001
    %4671 = vmatmul.bf16.gmra.mxu0 %v2223
    %v4672 = vpop.f32.mrf.mxu0
    %v4673 = vadd.f32 %v4660, %v4672
    %v4674 = vpop.f32.mrf.mxu0
    %4675 = vdwg.mxu0
    %4676 = vmatpush.bf16.msra.mxu0 %v4016
    %4677 = vmatpush.bf16.msra.mxu0 %v4015
    %4678 = vmatpush.bf16.msra.mxu0 %v4014
    %4679 = vmatpush.bf16.msra.mxu0 %v4013
    %4680 = vmatpush.bf16.msra.mxu0 %v4012
    %4681 = vmatpush.bf16.msra.mxu0 %v4011
    %4682 = vmatpush.bf16.msra.mxu0 %v4010
    %4683 = vmatpush.bf16.msra.mxu0 %v4009
    %4684 = vmatmul.bf16.gmra.mxu0 %v2224
    %v4685 = vpop.f32.mrf.mxu0
    %v4686 = vadd.f32 %v4673, %v4685
    %v4687 = vpop.f32.mrf.mxu0
    %4688 = vdwg.mxu0
    %v4689 = vadd.f32 %v2192, %v4686
    %4690 = vst [vmem:[#allocation2] sm:$0xff] %v4689
    // Predicated region
    $region38: #{sem_align.1} parent=1 // pred_check
      %p4691 = pneg %p66
    $region39: #{sem_align.1} parent=1 // pred_check_branch
      %4693 = sbr.rel (%p4691) target = $region41
    $region40: #{sem_align.1} parent=1 // pred_region
      %v4694 = vld [vmem:[#allocation2] sm:$0xff]
      %v4695 = vld [vmem:[%s4] sm:$0x1]
      %v4697 = vperm.slane %v4695, 0
      %v4699 = vadd.f32 %v4694, %v4697
      %4700 = vst [vmem:[#allocation9] sm:$0xff] %v4699
    $region41: #{sem_align.1} parent=1 // pred_fallthru
      _
    // Predicated region
    $region42: #{sem_align.1} parent=1 // pred_check
      _
    $region43: #{sem_align.1} parent=1 // pred_check_branch
      %4702 = sbr.rel (0) target = $region45
    $region44: #{sem_align.1} parent=1 // pred_region
      %4704 = vsyncadd [#allocation5], 0
      %s4706 = sshll.u32 [#allocation9], 4
      %s4707 = int_to_ptr.vmem [resolvable:$true] %s4706
      %s4708 = sshll.u32 %s5, 4
      %s4709 = int_to_ptr.hbm [resolvable:$true] %s4708
      %4711 = dma.vmem_to_hbm [thread:$0]  %s4707, 128, %s4709, [#allocation5]
    $region45: #{sem_align.1} parent=1 // pred_fallthru
      _
    // Predicated region
    $region46: #{sem_align.1} parent=1 // pred_check
      _
    $region47: #{sem_align.1} parent=1 // pred_check_branch
      %4713 = sbr.rel (0) target = $region49
    $region48: #{sem_align.1} parent=1 // pred_region
      %4715 = dma.done [#allocation5], 128
    $region49: #{sem_align.1} parent=1 // pred_fallthru
      _
    %4716 = vsyncpa [#allocation4], 1
    %4717 = vsyncpa [#allocation7], 1
    %4718 = vsyncpa [#allocation5], 1

</llo_original>
